<compile_context>
chip_gen: v7x
topology: tpu7x:2x2x1
jax: 0.10.0
libtpu: 0.0.40
codegen_flags: <defaults>
</compile_context>

<pallas_src>
import functools

import jax
import jax.numpy as jnp
from jax import lax
from jax.experimental import pallas as pl
from jax.experimental.pallas import tpu as pltpu

LN_EPS = 1e-5


def _layernorm(x, w, b):
    # PyTorch LayerNorm: biased variance, eps=1e-5, affine.  w,b broadcast over rows.
    mu = jnp.mean(x, axis=-1, keepdims=True)
    xc = x - mu
    var = jnp.mean(xc * xc, axis=-1, keepdims=True)
    return xc * lax.rsqrt(var + LN_EPS) * w + b


def fused_forward_kernel(x_ref,
                         wqkv_ref, bqkv_ref, wo_ref, bo_ref,
                         ln1w_ref, ln1b_ref,
                         w1_ref, b1_ref, w2_ref, b2_ref,
                         ln2w_ref, ln2b_ref,
                         *rest,
                         num_heads, num_layers, num_linear, seq_len,
                         approx_softmax):
    if num_linear > 0:
        wl_ref, bl_ref, wm_ref, bm_ref, out_ref, ctx_ref = rest
    else:
        wm_ref, bm_ref, out_ref, ctx_ref = rest

    cdt = wqkv_ref.dtype                        # bf16 matmul operands, f32 accumulation
    x = x_ref[...].astype(jnp.float32)          # (M, D) residual stream kept in f32
    M, D = x.shape
    Bblk = M // seq_len
    hd = D // num_heads

    # num_layers is tiny & static here -> unrolled.  (See TODO at top for large L.)
    for l in range(num_layers):
        # ---- fused QKV projection over the whole row block (one big matmul) ----
        qkv = jnp.dot(x.astype(cdt), wqkv_ref[l],
                      preferred_element_type=jnp.float32) + bqkv_ref[l]   # (M, 3D) f32
        q3 = qkv[:, 0 * D:1 * D].reshape(Bblk, seq_len, D)
        k3 = qkv[:, 1 * D:2 * D].reshape(Bblk, seq_len, D)
        v3 = qkv[:, 2 * D:3 * D].reshape(Bblk, seq_len, D)

        # ---- per-head softmax attention; heads assembled into a VMEM scratch ----
        for h in range(num_heads):
            lo, hi = h * hd, (h + 1) * hd
            qh = q3[:, :, lo:hi].astype(cdt)                   # (Bblk, S, hd)
            kh = k3[:, :, lo:hi].astype(cdt)
            vh = v3[:, :, lo:hi].astype(cdt)
            # scale already folded into Wq / bq host-side
            s = jnp.einsum("bqd,bkd->bqk", qh, kh,
                           preferred_element_type=jnp.float32)  # (Bblk, S, S)
            s = s - jnp.max(s, axis=-1, keepdims=True)
            e = jnp.exp(s)
            denom = jnp.sum(e, axis=-1, keepdims=True)
            p = e * pl.reciprocal(denom, approx=approx_softmax)  # EUP divide when approx
            oh = jnp.einsum("bqk,bkd->bqd", p.astype(cdt), vh,
                            preferred_element_type=jnp.float32)  # (Bblk, S, hd)
            ctx_ref[:, :, lo:hi] = oh

        # ---- ONE full-width output projection instead of per-head matmuls ----
        ctx = ctx_ref[...].reshape(M, D).astype(cdt)
        attn = jnp.dot(ctx, wo_ref[l],
                       preferred_element_type=jnp.float32) + bo_ref[l]

        # ---- residual + LayerNorm 1 (post-norm, norm_first=False) ----
        x = _layernorm(x + attn, ln1w_ref[l], ln1b_ref[l])

        # ---- feed-forward (relu) + residual + LayerNorm 2 ----
        ff = jnp.dot(x.astype(cdt), w1_ref[l],
                     preferred_element_type=jnp.float32) + b1_ref[l]
        ff = jnp.maximum(ff, 0.0)
        ff = jnp.dot(ff.astype(cdt), w2_ref[l],
                     preferred_element_type=jnp.float32) + b2_ref[l]
        x = _layernorm(x + ff, ln2w_ref[l], ln2b_ref[l])

    # ---- optional Linear + ReLU6 stack ----
    for i in range(num_linear):
        x = jnp.dot(x.astype(cdt), wl_ref[i],
                    preferred_element_type=jnp.float32) + bl_ref[i]
        x = jnp.clip(x, 0.0, 6.0)

    # ---- final memory_match projection (lane-padded -> unmasked stores) ----
    out = jnp.dot(x.astype(cdt), wm_ref[...],
                  preferred_element_type=jnp.float32) + bm_ref[...]
    out_ref[...] = out.astype(out_ref.dtype)


def prepare_params(params, compute_dtype=jnp.bfloat16):
    """One-time host-side parameter prep: fold attention scale into Q, pad the head
    projection to a lane-dense width, cast weight matrices to the compute dtype."""
    enc = params["encoder_layers"]
    H = params["num_heads"]
    L, D, _ = enc["wqkv"].shape
    hd = D // H
    scale = 1.0 / (hd ** 0.5)

    wqkv = enc["wqkv"].at[:, :, :D].multiply(scale)     # fold scale into Wq
    bqkv = enc["bqkv"].at[:, :, :D].multiply(scale)     # ... and into bq

    tgt_dim = params["wm"].shape[1]
    tgt_pad = ((tgt_dim + 127) // 128) * 128
    wm = jnp.zeros((D, tgt_pad), jnp.float32).at[:, :tgt_dim].set(params["wm"])
    bm = jnp.zeros((1, tgt_pad), jnp.float32).at[:, :tgt_dim].set(params["bm"])

    return dict(
        num_heads=H, tgt_dim=tgt_dim,
        wqkv=wqkv.astype(compute_dtype), bqkv=bqkv,
        wo=enc["wo"].astype(compute_dtype), bo=enc["bo"],
        ln1_w=enc["ln1_w"], ln1_b=enc["ln1_b"],
        w1=enc["w1"].astype(compute_dtype), b1=enc["b1"],
        w2=enc["w2"].astype(compute_dtype), b2=enc["b2"],
        ln2_w=enc["ln2_w"], ln2_b=enc["ln2_b"],
        linear_w=(None if params["linear_w"] is None
                  else params["linear_w"].astype(compute_dtype)),
        linear_b=params["linear_b"],
        wm=wm.astype(compute_dtype), bm=bm,
    )


def ts_transformer_forward(src, tgt, prep, *, target_block_rows=256, approx_softmax=True):
    # tgt is accepted but unused, exactly like the PyTorch forward().
    del tgt
    B, S, D = src.shape
    H = prep["num_heads"]
    assert D % H == 0
    L = prep["wqkv"].shape[0]
    dff = prep["w1"].shape[2]
    NL = 0 if prep["linear_w"] is None else prep["linear_w"].shape[0]
    tgt_pad = prep["wm"].shape[1]
    tgt_dim = prep["tgt_dim"]

    # ---- choose rows-per-block: whole sequences, aim for ~256 MXU rows ----
    bblk = max(1, min(B, target_block_rows // max(S, 1)))
    while B % bblk:
        bblk -= 1
    if (bblk * S) % 8 and bblk != B:
        bblk = B                    # single block -> block dim == full dim (exempt)
    mblk = bblk * S
    n_blocks = B // bblk
    R = B * S

    x2d = src.reshape(R, D)

    kernel = functools.partial(
        fused_forward_kernel, num_heads=H, num_layers=L, num_linear=NL,
        seq_len=S, approx_softmax=approx_softmax)

    def const_spec(arr):
        # whole array, same block for every grid step -> DMA'd into VMEM once
        shape = arr.shape
        return pl.BlockSpec(shape, lambda i, _nd=len(shape): (0,) * _nd)

    weight_args = [prep["wqkv"], prep["bqkv"], prep["wo"], prep["bo"],
                   prep["ln1_w"], prep["ln1_b"], prep["w1"], prep["b1"],
                   prep["w2"], prep["b2"], prep["ln2_w"], prep["ln2_b"]]
    if NL > 0:
        weight_args += [prep["linear_w"], prep["linear_b"]]
    weight_args += [prep["wm"], prep["bm"]]

    in_specs = ([pl.BlockSpec((mblk, D), lambda i: (i, 0))] +
                [const_spec(a) for a in weight_args])
    out_spec = pl.BlockSpec((mblk, tgt_pad), lambda i: (i, 0))

    # VMEM budget from the actual resident footprint, capped by the chip's capacity.
    weight_bytes = sum(int(a.size) * a.dtype.itemsize for a in weight_args)
    act_bytes = mblk * (D + 3 * D + dff + tgt_pad) * 4
    try:
        vmem_cap = pltpu.get_tpu_info().vmem_capacity_bytes
    except Exception:  # pragma: no cover - conservative fallback
        vmem_cap = 64 * 1024 * 1024
    vmem_limit = int(min(int(0.75 * vmem_cap),
                         max(32 * 1024 * 1024, 3 * (weight_bytes + act_bytes))))

    out2d = pl.pallas_call(
        kernel,
        out_shape=jax.ShapeDtypeStruct((R, tgt_pad), src.dtype),
        grid=(n_blocks,),
        in_specs=in_specs,
        out_specs=out_spec,
        scratch_shapes=[pltpu.VMEM((bblk, S, D), jnp.float32)],   # per-head ctx assembly
        compiler_params=pltpu.CompilerParams(
            dimension_semantics=("parallel",),
            vmem_limit_bytes=vmem_limit),
    )(x2d, *weight_args)

    return out2d.reshape(B, S, tgt_pad)[..., :tgt_dim]


# ----------------- pure-JAX reference (for correctness check) -----------------
def _ref_forward(src, prep):
    # Mirrors the kernel's numerics (bf16 matmul operands, f32 accumulation, folded
    # Q scale, padded head projection) so the comparison is apples-to-apples.
    cdt = prep["wqkv"].dtype
    H = prep["num_heads"]
    B, S, D = src.shape
    hd = D // H
    L = prep["wqkv"].shape[0]
    x = src.astype(jnp.float32)
    for l in range(L):
        qkv = jnp.dot(x.astype(cdt), prep["wqkv"][l],
                      preferred_element_type=jnp.float32) + prep["bqkv"][l]
        q, k, v = qkv[..., :D], qkv[..., D:2 * D], qkv[..., 2 * D:]

        def heads(t):  # (B,S,D) -> (B,H,S,hd)
            return t.reshape(B, S, H, hd).transpose(0, 2, 1, 3)

        qh, kh, vh = heads(q).astype(cdt), heads(k).astype(cdt), heads(v).astype(cdt)
        sc = jnp.einsum("bhqd,bhkd->bhqk", qh, kh,
                        preferred_element_type=jnp.float32)     # scale already folded
        at = jax.nn.softmax(sc, axis=-1)
        ctx = jnp.einsum("bhqk,bhkd->bhqd", at.astype(cdt), vh,
                         preferred_element_type=jnp.float32)
        ctx = ctx.transpose(0, 2, 1, 3).reshape(B, S, D)
        o = jnp.dot(ctx.astype(cdt), prep["wo"][l],
                    preferred_element_type=jnp.float32) + prep["bo"][l]
        x = _layernorm(x + o, prep["ln1_w"][l], prep["ln1_b"][l])

        ff = jnp.dot(x.astype(cdt), prep["w1"][l],
                     preferred_element_type=jnp.float32) + prep["b1"][l]
        ff = jnp.maximum(ff, 0.0)
        ff = jnp.dot(ff.astype(cdt), prep["w2"][l],
                     preferred_element_type=jnp.float32) + prep["b2"][l]
        x = _layernorm(x + ff, prep["ln2_w"][l], prep["ln2_b"][l])

    if prep["linear_w"] is not None:
        for i in range(prep["linear_w"].shape[0]):
            x = jnp.dot(x.astype(cdt), prep["linear_w"][i],
                        preferred_element_type=jnp.float32) + prep["linear_b"][i]
            x = jnp.clip(x, 0.0, 6.0)
    out = jnp.dot(x.astype(cdt), prep["wm"],
                  preferred_element_type=jnp.float32) + prep["bm"]
    return out[..., :prep["tgt_dim"]]


# ----------------- deterministic parameter init (stacked layout) -----------------
def init_params(key, src_dim, tgt_dim, num_heads, num_layers, dff, num_linear):
    def nrm(k, shape, scale):
        return (jax.random.normal(k, shape, jnp.float32) * scale).astype(jnp.float32)

    keys = jax.random.split(key, 4 * num_layers + 2 * num_linear + 2)
    ki = iter(keys)
    wqkv, wo, w1, w2 = [], [], [], []
    for _ in range(num_layers):
        wqkv.append(nrm(next(ki), (src_dim, 3 * src_dim), src_dim ** -0.5))
        wo.append(nrm(next(ki), (src_dim, src_dim), src_dim ** -0.5))
        w1.append(nrm(next(ki), (src_dim, dff), src_dim ** -0.5))
        w2.append(nrm(next(ki), (dff, src_dim), dff ** -0.5))
    enc = dict(
        wqkv=jnp.stack(wqkv),
        bqkv=jnp.zeros((num_layers, 1, 3 * src_dim), jnp.float32),
        wo=jnp.stack(wo),
        bo=jnp.zeros((num_layers, 1, src_dim), jnp.float32),
        ln1_w=jnp.ones((num_layers, 1, src_dim), jnp.float32),
        ln1_b=jnp.zeros((num_layers, 1, src_dim), jnp.float32),
        w1=jnp.stack(w1),
        b1=jnp.zeros((num_layers, 1, dff), jnp.float32),
        w2=jnp.stack(w2),
        b2=jnp.zeros((num_layers, 1, src_dim), jnp.float32),
        ln2_w=jnp.ones((num_layers, 1, src_dim), jnp.float32),
        ln2_b=jnp.zeros((num_layers, 1, src_dim), jnp.float32),
    )
    lw, lb = [], []
    for _ in range(num_linear):
        lw.append(nrm(next(ki), (src_dim, src_dim), src_dim ** -0.5))
        lb.append(nrm(next(ki), (1, src_dim), 0.02))
    linear_w = jnp.stack(lw) if num_linear > 0 else None
    linear_b = jnp.stack(lb) if num_linear > 0 else None
    wm = nrm(next(ki), (src_dim, tgt_dim), src_dim ** -0.5)
    bm = nrm(next(ki), (1, tgt_dim), 0.02)
    return dict(encoder_layers=enc, linear_w=linear_w, linear_b=linear_b,
                wm=wm, bm=bm, num_heads=num_heads)


if __name__ == "__main__":
    B, S = 2, 8
    src_dim, tgt_dim = 32, 16
    num_heads = 4
    num_encoder_layers = 2
    dim_feedforward = 64
    num_linear_layers = 1   # each entry = Linear(src_dim, src_dim) + ReLU6

    key = jax.random.PRNGKey(0)
    kp, ks, kt = jax.random.split(key, 3)
    params = init_params(kp, src_dim, tgt_dim, num_heads,
                         num_encoder_layers, dim_feedforward, num_linear_layers)
    prep = prepare_params(params, compute_dtype=jnp.bfloat16)   # one-time host prep

    src = jax.random.normal(ks, (B, S, src_dim), jnp.float32)
    tgt = jax.random.normal(kt, (B, S, tgt_dim), jnp.float32)   # unused, as in PyTorch

    out = ts_transformer_forward(src, tgt, prep)
    out = jax.block_until_ready(out)
    assert out.shape == (B, S, tgt_dim), out.shape

    ref = _ref_forward(src, prep)
    err = float(jnp.max(jnp.abs(out - ref)))
    # Remaining diffs: approx softmax reciprocal (~1e-4 rel) + MXU accumulation order.
    assert err < 2e-2, f"mismatch vs reference: {err}"

    print("KERNEL_OK")
</pallas_src>

<mosaic_0001>
module attributes {stable_mosaic.version = 11 : i64} {
  func.func @fused_forward_kernel(%arg0: i32, %arg1: memref<16x32xf32, #tpu.memory_space<vmem>>, %arg2: memref<2x32x96xbf16, #tpu.memory_space<vmem>>, %arg3: memref<2x1x96xf32, #tpu.memory_space<vmem>>, %arg4: memref<2x32x32xbf16, #tpu.memory_space<vmem>>, %arg5: memref<2x1x32xf32, #tpu.memory_space<vmem>>, %arg6: memref<2x1x32xf32, #tpu.memory_space<vmem>>, %arg7: memref<2x1x32xf32, #tpu.memory_space<vmem>>, %arg8: memref<2x32x64xbf16, #tpu.memory_space<vmem>>, %arg9: memref<2x1x64xf32, #tpu.memory_space<vmem>>, %arg10: memref<2x64x32xbf16, #tpu.memory_space<vmem>>, %arg11: memref<2x1x32xf32, #tpu.memory_space<vmem>>, %arg12: memref<2x1x32xf32, #tpu.memory_space<vmem>>, %arg13: memref<2x1x32xf32, #tpu.memory_space<vmem>>, %arg14: memref<1x32x32xbf16, #tpu.memory_space<vmem>>, %arg15: memref<1x1x32xf32, #tpu.memory_space<vmem>>, %arg16: memref<32x128xbf16, #tpu.memory_space<vmem>>, %arg17: memref<1x128xf32, #tpu.memory_space<vmem>>, %arg18: memref<16x128xf32, #tpu.memory_space<vmem>>, %arg19: memref<2x8x32xf32, #tpu.memory_space<vmem>>) attributes {dimension_semantics = [#tpu.dimension_semantics<parallel>], iteration_bounds = array<i64: 1>, scalar_prefetch = 0 : i64, scratch_operands = 1 : i64, tpu.core_type = #tpu.core_type<tc>, window_params = [{transform_indices = @transform_0, window_bounds = array<i64: 16, 32>}, {pipeline_mode = #tpu.pipeline_mode<synchronous>, transform_indices = @transform_1, window_bounds = array<i64: 2, 32, 96>}, {pipeline_mode = #tpu.pipeline_mode<synchronous>, transform_indices = @transform_2, window_bounds = array<i64: 2, 1, 96>}, {pipeline_mode = #tpu.pipeline_mode<synchronous>, transform_indices = @transform_3, window_bounds = array<i64: 2, 32, 32>}, {pipeline_mode = #tpu.pipeline_mode<synchronous>, transform_indices = @transform_4, window_bounds = array<i64: 2, 1, 32>}, {pipeline_mode = #tpu.pipeline_mode<synchronous>, transform_indices = @transform_5, window_bounds = array<i64: 2, 1, 32>}, {pipeline_mode = #tpu.pipeline_mode<synchronous>, transform_indices = @transform_6, window_bounds = array<i64: 2, 1, 32>}, {pipeline_mode = #tpu.pipeline_mode<synchronous>, transform_indices = @transform_7, window_bounds = array<i64: 2, 32, 64>}, {pipeline_mode = #tpu.pipeline_mode<synchronous>, transform_indices = @transform_8, window_bounds = array<i64: 2, 1, 64>}, {pipeline_mode = #tpu.pipeline_mode<synchronous>, transform_indices = @transform_9, window_bounds = array<i64: 2, 64, 32>}, {pipeline_mode = #tpu.pipeline_mode<synchronous>, transform_indices = @transform_10, window_bounds = array<i64: 2, 1, 32>}, {pipeline_mode = #tpu.pipeline_mode<synchronous>, transform_indices = @transform_11, window_bounds = array<i64: 2, 1, 32>}, {pipeline_mode = #tpu.pipeline_mode<synchronous>, transform_indices = @transform_12, window_bounds = array<i64: 2, 1, 32>}, {pipeline_mode = #tpu.pipeline_mode<synchronous>, transform_indices = @transform_13, window_bounds = array<i64: 1, 32, 32>}, {pipeline_mode = #tpu.pipeline_mode<synchronous>, transform_indices = @transform_14, window_bounds = array<i64: 1, 1, 32>}, {pipeline_mode = #tpu.pipeline_mode<synchronous>, transform_indices = @transform_15, window_bounds = array<i64: 32, 128>}, {pipeline_mode = #tpu.pipeline_mode<synchronous>, transform_indices = @transform_16, window_bounds = array<i64: 1, 128>}, {transform_indices = @transform_17, window_bounds = array<i64: 16, 128>}]} {
    %c0 = arith.constant 0 : index
    %c0_0 = arith.constant 0 : index
    %0 = vector.load %arg1[%c0, %c0_0] : memref<16x32xf32, #tpu.memory_space<vmem>>, vector<16x32xf32>
    %1 = arith.truncf %0 : vector<16x32xf32> to vector<16x32xbf16>
    %c0_1 = arith.constant 0 : index
    %c0_2 = arith.constant 0 : index
    %c0_3 = arith.constant 0 : index
    %2 = vector.load %arg2[%c0_1, %c0_2, %c0_3] : memref<2x32x96xbf16, #tpu.memory_space<vmem>>, vector<1x32x96xbf16>
    %3 = vector.shape_cast %2 : vector<1x32x96xbf16> to vector<32x96xbf16>
    %cst = arith.constant dense<0.000000e+00> : vector<16x96xf32>
    %4 = tpu.matmul %1, %3, %cst {dimension_numbers = #tpu.dot_dimension_numbers<[1], [0], [0], [1], [0, 0, 1, 1], [], []>} : vector<16x32xbf16>, vector<32x96xbf16>, vector<16x96xf32> -> vector<16x96xf32>
    %c0_4 = arith.constant 0 : index
    %c0_5 = arith.constant 0 : index
    %c0_6 = arith.constant 0 : index
    %5 = vector.load %arg3[%c0_4, %c0_5, %c0_6] : memref<2x1x96xf32, #tpu.memory_space<vmem>>, vector<1x1x96xf32>
    %6 = vector.shape_cast %5 : vector<1x1x96xf32> to vector<1x96xf32>
    %7 = vector.broadcast %6 : vector<1x96xf32> to vector<16x96xf32>
    %8 = arith.addf %4, %7 : vector<16x96xf32>
    %9 = vector.extract_strided_slice %8 {offsets = [0, 0], sizes = [16, 32], strides = [1, 1]} : vector<16x96xf32> to vector<16x32xf32>
    %10 = vector.shape_cast %9 : vector<16x32xf32> to vector<2x8x32xf32>
    %11 = vector.extract_strided_slice %8 {offsets = [0, 32], sizes = [16, 32], strides = [1, 1]} : vector<16x96xf32> to vector<16x32xf32>
    %12 = vector.shape_cast %11 : vector<16x32xf32> to vector<2x8x32xf32>
    %13 = vector.extract_strided_slice %8 {offsets = [0, 64], sizes = [16, 32], strides = [1, 1]} : vector<16x96xf32> to vector<16x32xf32>
    %14 = vector.shape_cast %13 : vector<16x32xf32> to vector<2x8x32xf32>
    %15 = vector.extract_strided_slice %10 {offsets = [0, 0, 0], sizes = [2, 8, 8], strides = [1, 1, 1]} : vector<2x8x32xf32> to vector<2x8x8xf32>
    %16 = arith.truncf %15 : vector<2x8x8xf32> to vector<2x8x8xbf16>
    %17 = vector.extract_strided_slice %12 {offsets = [0, 0, 0], sizes = [2, 8, 8], strides = [1, 1, 1]} : vector<2x8x32xf32> to vector<2x8x8xf32>
    %18 = arith.truncf %17 : vector<2x8x8xf32> to vector<2x8x8xbf16>
    %19 = vector.extract_strided_slice %14 {offsets = [0, 0, 0], sizes = [2, 8, 8], strides = [1, 1, 1]} : vector<2x8x32xf32> to vector<2x8x8xf32>
    %20 = arith.truncf %19 : vector<2x8x8xf32> to vector<2x8x8xbf16>
    "tpu.trace_start"() <{level = 10 : i32, message = "bqd,bkd->bqk"}> : () -> ()
    %cst_7 = arith.constant dense<0.000000e+00> : vector<2x8x8xf32>
    %21 = tpu.matmul %16, %18, %cst_7 {dimension_numbers = #tpu.dot_dimension_numbers<[2], [2], [1], [1], [0, 0, 0, 1, 1, 1], [0], [0]>} : vector<2x8x8xbf16>, vector<2x8x8xbf16>, vector<2x8x8xf32> -> vector<2x8x8xf32>
    "tpu.trace_stop"() : () -> ()
    %cst_8 = arith.constant dense<0xFF800000> : vector<2x8xf32>
    %22 = vector.multi_reduction <maximumf>, %21, %cst_8 [2] : vector<2x8x8xf32> to vector<2x8xf32>
    %23 = vector.shape_cast %22 : vector<2x8xf32> to vector<2x8x1xf32>
    %24 = vector.broadcast %23 : vector<2x8x1xf32> to vector<2x8x8xf32>
    %25 = arith.subf %21, %24 : vector<2x8x8xf32>
    %26 = math.exp %25 : vector<2x8x8xf32>
    %cst_9 = arith.constant dense<0.000000e+00> : vector<2x8xf32>
    %27 = vector.multi_reduction <add>, %26, %cst_9 [2] : vector<2x8x8xf32> to vector<2x8xf32>
    %28 = vector.shape_cast %27 : vector<2x8xf32> to vector<2x8x1xf32>
    %29 = tpu.reciprocal %28 {approx = true} : vector<2x8x1xf32> -> vector<2x8x1xf32>
    %30 = vector.broadcast %29 : vector<2x8x1xf32> to vector<2x8x8xf32>
    %31 = arith.mulf %26, %30 : vector<2x8x8xf32>
    %32 = arith.truncf %31 : vector<2x8x8xf32> to vector<2x8x8xbf16>
    "tpu.trace_start"() <{level = 10 : i32, message = "bqk,bkd->bqd"}> : () -> ()
    %cst_10 = arith.constant dense<0.000000e+00> : vector<2x8x8xf32>
    %33 = tpu.matmul %32, %20, %cst_10 {dimension_numbers = #tpu.dot_dimension_numbers<[2], [1], [1], [2], [0, 0, 0, 1, 1, 2], [0], [0]>} : vector<2x8x8xbf16>, vector<2x8x8xbf16>, vector<2x8x8xf32> -> vector<2x8x8xf32>
    "tpu.trace_stop"() : () -> ()
    %c0_11 = arith.constant 0 : index
    %c0_12 = arith.constant 0 : index
    %c0_13 = arith.constant 0 : index
    %34 = vector.load %arg19[%c0_11, %c0_12, %c0_13] : memref<2x8x32xf32, #tpu.memory_space<vmem>>, vector<2x8x8xf32>
    tpu.vector_store %arg19[%c0_11, %c0_12, %c0_13], %33 {strides = array<i32>} : memref<2x8x32xf32, #tpu.memory_space<vmem>>, vector<2x8x8xf32>,
    %35 = vector.extract_strided_slice %10 {offsets = [0, 0, 8], sizes = [2, 8, 8], strides = [1, 1, 1]} : vector<2x8x32xf32> to vector<2x8x8xf32>
    %36 = arith.truncf %35 : vector<2x8x8xf32> to vector<2x8x8xbf16>
    %37 = vector.extract_strided_slice %12 {offsets = [0, 0, 8], sizes = [2, 8, 8], strides = [1, 1, 1]} : vector<2x8x32xf32> to vector<2x8x8xf32>
    %38 = arith.truncf %37 : vector<2x8x8xf32> to vector<2x8x8xbf16>
    %39 = vector.extract_strided_slice %14 {offsets = [0, 0, 8], sizes = [2, 8, 8], strides = [1, 1, 1]} : vector<2x8x32xf32> to vector<2x8x8xf32>
    %40 = arith.truncf %39 : vector<2x8x8xf32> to vector<2x8x8xbf16>
    "tpu.trace_start"() <{level = 10 : i32, message = "bqd,bkd->bqk"}> : () -> ()
    %cst_14 = arith.constant dense<0.000000e+00> : vector<2x8x8xf32>
    %41 = tpu.matmul %36, %38, %cst_14 {dimension_numbers = #tpu.dot_dimension_numbers<[2], [2], [1], [1], [0, 0, 0, 1, 1, 1], [0], [0]>} : vector<2x8x8xbf16>, vector<2x8x8xbf16>, vector<2x8x8xf32> -> vector<2x8x8xf32>
    "tpu.trace_stop"() : () -> ()
    %cst_15 = arith.constant dense<0xFF800000> : vector<2x8xf32>
    %42 = vector.multi_reduction <maximumf>, %41, %cst_15 [2] : vector<2x8x8xf32> to vector<2x8xf32>
    %43 = vector.shape_cast %42 : vector<2x8xf32> to vector<2x8x1xf32>
    %44 = vector.broadcast %43 : vector<2x8x1xf32> to vector<2x8x8xf32>
    %45 = arith.subf %41, %44 : vector<2x8x8xf32>
    %46 = math.exp %45 : vector<2x8x8xf32>
    %cst_16 = arith.constant dense<0.000000e+00> : vector<2x8xf32>
    %47 = vector.multi_reduction <add>, %46, %cst_16 [2] : vector<2x8x8xf32> to vector<2x8xf32>
    %48 = vector.shape_cast %47 : vector<2x8xf32> to vector<2x8x1xf32>
    %49 = tpu.reciprocal %48 {approx = true} : vector<2x8x1xf32> -> vector<2x8x1xf32>
    %50 = vector.broadcast %49 : vector<2x8x1xf32> to vector<2x8x8xf32>
    %51 = arith.mulf %46, %50 : vector<2x8x8xf32>
    %52 = arith.truncf %51 : vector<2x8x8xf32> to vector<2x8x8xbf16>
    "tpu.trace_start"() <{level = 10 : i32, message = "bqk,bkd->bqd"}> : () -> ()
    %cst_17 = arith.constant dense<0.000000e+00> : vector<2x8x8xf32>
    %53 = tpu.matmul %52, %40, %cst_17 {dimension_numbers = #tpu.dot_dimension_numbers<[2], [1], [1], [2], [0, 0, 0, 1, 1, 2], [0], [0]>} : vector<2x8x8xbf16>, vector<2x8x8xbf16>, vector<2x8x8xf32> -> vector<2x8x8xf32>
    "tpu.trace_stop"() : () -> ()
    %c0_18 = arith.constant 0 : index
    %c0_19 = arith.constant 0 : index
    %c8 = arith.constant 8 : index
    %54 = vector.load %arg19[%c0_18, %c0_19, %c8] : memref<2x8x32xf32, #tpu.memory_space<vmem>>, vector<2x8x8xf32>
    tpu.vector_store %arg19[%c0_18, %c0_19, %c8], %53 {strides = array<i32>} : memref<2x8x32xf32, #tpu.memory_space<vmem>>, vector<2x8x8xf32>,
    %55 = vector.extract_strided_slice %10 {offsets = [0, 0, 16], sizes = [2, 8, 8], strides = [1, 1, 1]} : vector<2x8x32xf32> to vector<2x8x8xf32>
    %56 = arith.truncf %55 : vector<2x8x8xf32> to vector<2x8x8xbf16>
    %57 = vector.extract_strided_slice %12 {offsets = [0, 0, 16], sizes = [2, 8, 8], strides = [1, 1, 1]} : vector<2x8x32xf32> to vector<2x8x8xf32>
    %58 = arith.truncf %57 : vector<2x8x8xf32> to vector<2x8x8xbf16>
    %59 = vector.extract_strided_slice %14 {offsets = [0, 0, 16], sizes = [2, 8, 8], strides = [1, 1, 1]} : vector<2x8x32xf32> to vector<2x8x8xf32>
    %60 = arith.truncf %59 : vector<2x8x8xf32> to vector<2x8x8xbf16>
    "tpu.trace_start"() <{level = 10 : i32, message = "bqd,bkd->bqk"}> : () -> ()
    %cst_20 = arith.constant dense<0.000000e+00> : vector<2x8x8xf32>
    %61 = tpu.matmul %56, %58, %cst_20 {dimension_numbers = #tpu.dot_dimension_numbers<[2], [2], [1], [1], [0, 0, 0, 1, 1, 1], [0], [0]>} : vector<2x8x8xbf16>, vector<2x8x8xbf16>, vector<2x8x8xf32> -> vector<2x8x8xf32>
    "tpu.trace_stop"() : () -> ()
    %cst_21 = arith.constant dense<0xFF800000> : vector<2x8xf32>
    %62 = vector.multi_reduction <maximumf>, %61, %cst_21 [2] : vector<2x8x8xf32> to vector<2x8xf32>
    %63 = vector.shape_cast %62 : vector<2x8xf32> to vector<2x8x1xf32>
    %64 = vector.broadcast %63 : vector<2x8x1xf32> to vector<2x8x8xf32>
    %65 = arith.subf %61, %64 : vector<2x8x8xf32>
    %66 = math.exp %65 : vector<2x8x8xf32>
    %cst_22 = arith.constant dense<0.000000e+00> : vector<2x8xf32>
    %67 = vector.multi_reduction <add>, %66, %cst_22 [2] : vector<2x8x8xf32> to vector<2x8xf32>
    %68 = vector.shape_cast %67 : vector<2x8xf32> to vector<2x8x1xf32>
    %69 = tpu.reciprocal %68 {approx = true} : vector<2x8x1xf32> -> vector<2x8x1xf32>
    %70 = vector.broadcast %69 : vector<2x8x1xf32> to vector<2x8x8xf32>
    %71 = arith.mulf %66, %70 : vector<2x8x8xf32>
    %72 = arith.truncf %71 : vector<2x8x8xf32> to vector<2x8x8xbf16>
    "tpu.trace_start"() <{level = 10 : i32, message = "bqk,bkd->bqd"}> : () -> ()
    %cst_23 = arith.constant dense<0.000000e+00> : vector<2x8x8xf32>
    %73 = tpu.matmul %72, %60, %cst_23 {dimension_numbers = #tpu.dot_dimension_numbers<[2], [1], [1], [2], [0, 0, 0, 1, 1, 2], [0], [0]>} : vector<2x8x8xbf16>, vector<2x8x8xbf16>, vector<2x8x8xf32> -> vector<2x8x8xf32>
    "tpu.trace_stop"() : () -> ()
    %c0_24 = arith.constant 0 : index
    %c0_25 = arith.constant 0 : index
    %c16 = arith.constant 16 : index
    %74 = vector.load %arg19[%c0_24, %c0_25, %c16] : memref<2x8x32xf32, #tpu.memory_space<vmem>>, vector<2x8x8xf32>
    tpu.vector_store %arg19[%c0_24, %c0_25, %c16], %73 {strides = array<i32>} : memref<2x8x32xf32, #tpu.memory_space<vmem>>, vector<2x8x8xf32>,
    %75 = vector.extract_strided_slice %10 {offsets = [0, 0, 24], sizes = [2, 8, 8], strides = [1, 1, 1]} : vector<2x8x32xf32> to vector<2x8x8xf32>
    %76 = arith.truncf %75 : vector<2x8x8xf32> to vector<2x8x8xbf16>
    %77 = vector.extract_strided_slice %12 {offsets = [0, 0, 24], sizes = [2, 8, 8], strides = [1, 1, 1]} : vector<2x8x32xf32> to vector<2x8x8xf32>
    %78 = arith.truncf %77 : vector<2x8x8xf32> to vector<2x8x8xbf16>
    %79 = vector.extract_strided_slice %14 {offsets = [0, 0, 24], sizes = [2, 8, 8], strides = [1, 1, 1]} : vector<2x8x32xf32> to vector<2x8x8xf32>
    %80 = arith.truncf %79 : vector<2x8x8xf32> to vector<2x8x8xbf16>
    "tpu.trace_start"() <{level = 10 : i32, message = "bqd,bkd->bqk"}> : () -> ()
    %cst_26 = arith.constant dense<0.000000e+00> : vector<2x8x8xf32>
    %81 = tpu.matmul %76, %78, %cst_26 {dimension_numbers = #tpu.dot_dimension_numbers<[2], [2], [1], [1], [0, 0, 0, 1, 1, 1], [0], [0]>} : vector<2x8x8xbf16>, vector<2x8x8xbf16>, vector<2x8x8xf32> -> vector<2x8x8xf32>
    "tpu.trace_stop"() : () -> ()
    %cst_27 = arith.constant dense<0xFF800000> : vector<2x8xf32>
    %82 = vector.multi_reduction <maximumf>, %81, %cst_27 [2] : vector<2x8x8xf32> to vector<2x8xf32>
    %83 = vector.shape_cast %82 : vector<2x8xf32> to vector<2x8x1xf32>
    %84 = vector.broadcast %83 : vector<2x8x1xf32> to vector<2x8x8xf32>
    %85 = arith.subf %81, %84 : vector<2x8x8xf32>
    %86 = math.exp %85 : vector<2x8x8xf32>
    %cst_28 = arith.constant dense<0.000000e+00> : vector<2x8xf32>
    %87 = vector.multi_reduction <add>, %86, %cst_28 [2] : vector<2x8x8xf32> to vector<2x8xf32>
    %88 = vector.shape_cast %87 : vector<2x8xf32> to vector<2x8x1xf32>
    %89 = tpu.reciprocal %88 {approx = true} : vector<2x8x1xf32> -> vector<2x8x1xf32>
    %90 = vector.broadcast %89 : vector<2x8x1xf32> to vector<2x8x8xf32>
    %91 = arith.mulf %86, %90 : vector<2x8x8xf32>
    %92 = arith.truncf %91 : vector<2x8x8xf32> to vector<2x8x8xbf16>
    "tpu.trace_start"() <{level = 10 : i32, message = "bqk,bkd->bqd"}> : () -> ()
    %cst_29 = arith.constant dense<0.000000e+00> : vector<2x8x8xf32>
    %93 = tpu.matmul %92, %80, %cst_29 {dimension_numbers = #tpu.dot_dimension_numbers<[2], [1], [1], [2], [0, 0, 0, 1, 1, 2], [0], [0]>} : vector<2x8x8xbf16>, vector<2x8x8xbf16>, vector<2x8x8xf32> -> vector<2x8x8xf32>
    "tpu.trace_stop"() : () -> ()
    %c0_30 = arith.constant 0 : index
    %c0_31 = arith.constant 0 : index
    %c24 = arith.constant 24 : index
    %94 = vector.load %arg19[%c0_30, %c0_31, %c24] : memref<2x8x32xf32, #tpu.memory_space<vmem>>, vector<2x8x8xf32>
    tpu.vector_store %arg19[%c0_30, %c0_31, %c24], %93 {strides = array<i32>} : memref<2x8x32xf32, #tpu.memory_space<vmem>>, vector<2x8x8xf32>,
    %c0_32 = arith.constant 0 : index
    %c0_33 = arith.constant 0 : index
    %c0_34 = arith.constant 0 : index
    %95 = vector.load %arg19[%c0_32, %c0_33, %c0_34] : memref<2x8x32xf32, #tpu.memory_space<vmem>>, vector<2x8x32xf32>
    %96 = vector.shape_cast %95 : vector<2x8x32xf32> to vector<16x32xf32>
    %97 = arith.truncf %96 : vector<16x32xf32> to vector<16x32xbf16>
    %c0_35 = arith.constant 0 : index
    %c0_36 = arith.constant 0 : index
    %c0_37 = arith.constant 0 : index
    %98 = vector.load %arg4[%c0_35, %c0_36, %c0_37] : memref<2x32x32xbf16, #tpu.memory_space<vmem>>, vector<1x32x32xbf16>
    %99 = vector.shape_cast %98 : vector<1x32x32xbf16> to vector<32x32xbf16>
    %cst_38 = arith.constant dense<0.000000e+00> : vector<16x32xf32>
    %100 = tpu.matmul %97, %99, %cst_38 {dimension_numbers = #tpu.dot_dimension_numbers<[1], [0], [0], [1], [0, 0, 1, 1], [], []>} : vector<16x32xbf16>, vector<32x32xbf16>, vector<16x32xf32> -> vector<16x32xf32>
    %c0_39 = arith.constant 0 : index
    %c0_40 = arith.constant 0 : index
    %c0_41 = arith.constant 0 : index
    %101 = vector.load %arg5[%c0_39, %c0_40, %c0_41] : memref<2x1x32xf32, #tpu.memory_space<vmem>>, vector<1x1x32xf32>
    %102 = vector.shape_cast %101 : vector<1x1x32xf32> to vector<1x32xf32>
    %103 = vector.broadcast %102 : vector<1x32xf32> to vector<16x32xf32>
    %104 = arith.addf %100, %103 : vector<16x32xf32>
    %105 = arith.addf %0, %104 : vector<16x32xf32>
    %c0_42 = arith.constant 0 : index
    %c0_43 = arith.constant 0 : index
    %c0_44 = arith.constant 0 : index
    %106 = vector.load %arg6[%c0_42, %c0_43, %c0_44] : memref<2x1x32xf32, #tpu.memory_space<vmem>>, vector<1x1x32xf32>
    %107 = vector.shape_cast %106 : vector<1x1x32xf32> to vector<1x32xf32>
    %c0_45 = arith.constant 0 : index
    %c0_46 = arith.constant 0 : index
    %c0_47 = arith.constant 0 : index
    %108 = vector.load %arg7[%c0_45, %c0_46, %c0_47] : memref<2x1x32xf32, #tpu.memory_space<vmem>>, vector<1x1x32xf32>
    %109 = vector.shape_cast %108 : vector<1x1x32xf32> to vector<1x32xf32>
    %cst_48 = arith.constant dense<0.000000e+00> : vector<16xf32>
    %110 = vector.multi_reduction <add>, %105, %cst_48 [1] : vector<16x32xf32> to vector<16xf32>
    %111 = vector.shape_cast %110 : vector<16xf32> to vector<16x1xf32>
    %cst_49 = arith.constant 3.200000e+01 : f32
    %112 = vector.broadcast %cst_49 : f32 to vector<16x1xf32>
    %113 = arith.divf %111, %112 : vector<16x1xf32>
    %114 = vector.broadcast %113 : vector<16x1xf32> to vector<16x32xf32>
    %115 = arith.subf %105, %114 : vector<16x32xf32>
    %116 = arith.mulf %115, %115 : vector<16x32xf32>
    %cst_50 = arith.constant dense<0.000000e+00> : vector<16xf32>
    %117 = vector.multi_reduction <add>, %116, %cst_50 [1] : vector<16x32xf32> to vector<16xf32>
    %118 = vector.shape_cast %117 : vector<16xf32> to vector<16x1xf32>
    %cst_51 = arith.constant 3.200000e+01 : f32
    %119 = vector.broadcast %cst_51 : f32 to vector<16x1xf32>
    %120 = arith.divf %118, %119 : vector<16x1xf32>
    %cst_52 = arith.constant 9.99999974E-6 : f32
    %121 = vector.broadcast %cst_52 : f32 to vector<16x1xf32>
    %122 = arith.addf %120, %121 : vector<16x1xf32>
    %123 = math.rsqrt %122 : vector<16x1xf32>
    %124 = vector.broadcast %123 : vector<16x1xf32> to vector<16x32xf32>
    %125 = arith.mulf %115, %124 : vector<16x32xf32>
    %126 = vector.broadcast %107 : vector<1x32xf32> to vector<16x32xf32>
    %127 = arith.mulf %125, %126 : vector<16x32xf32>
    %128 = vector.broadcast %109 : vector<1x32xf32> to vector<16x32xf32>
    %129 = arith.addf %127, %128 : vector<16x32xf32>
    %130 = arith.truncf %129 : vector<16x32xf32> to vector<16x32xbf16>
    %c0_53 = arith.constant 0 : index
    %c0_54 = arith.constant 0 : index
    %c0_55 = arith.constant 0 : index
    %131 = vector.load %arg8[%c0_53, %c0_54, %c0_55] : memref<2x32x64xbf16, #tpu.memory_space<vmem>>, vector<1x32x64xbf16>
    %132 = vector.shape_cast %131 : vector<1x32x64xbf16> to vector<32x64xbf16>
    %cst_56 = arith.constant dense<0.000000e+00> : vector<16x64xf32>
    %133 = tpu.matmul %130, %132, %cst_56 {dimension_numbers = #tpu.dot_dimension_numbers<[1], [0], [0], [1], [0, 0, 1, 1], [], []>} : vector<16x32xbf16>, vector<32x64xbf16>, vector<16x64xf32> -> vector<16x64xf32>
    %c0_57 = arith.constant 0 : index
    %c0_58 = arith.constant 0 : index
    %c0_59 = arith.constant 0 : index
    %134 = vector.load %arg9[%c0_57, %c0_58, %c0_59] : memref<2x1x64xf32, #tpu.memory_space<vmem>>, vector<1x1x64xf32>
    %135 = vector.shape_cast %134 : vector<1x1x64xf32> to vector<1x64xf32>
    %136 = vector.broadcast %135 : vector<1x64xf32> to vector<16x64xf32>
    %137 = arith.addf %133, %136 : vector<16x64xf32>
    %cst_60 = arith.constant 0.000000e+00 : f32
    %138 = vector.broadcast %cst_60 : f32 to vector<16x64xf32>
    %139 = arith.maximumf %137, %138 : vector<16x64xf32>
    %140 = arith.truncf %139 : vector<16x64xf32> to vector<16x64xbf16>
    %c0_61 = arith.constant 0 : index
    %c0_62 = arith.constant 0 : index
    %c0_63 = arith.constant 0 : index
    %141 = vector.load %arg10[%c0_61, %c0_62, %c0_63] : memref<2x64x32xbf16, #tpu.memory_space<vmem>>, vector<1x64x32xbf16>
    %142 = vector.shape_cast %141 : vector<1x64x32xbf16> to vector<64x32xbf16>
    %cst_64 = arith.constant dense<0.000000e+00> : vector<16x32xf32>
    %143 = tpu.matmul %140, %142, %cst_64 {dimension_numbers = #tpu.dot_dimension_numbers<[1], [0], [0], [1], [0, 0, 1, 1], [], []>} : vector<16x64xbf16>, vector<64x32xbf16>, vector<16x32xf32> -> vector<16x32xf32>
    %c0_65 = arith.constant 0 : index
    %c0_66 = arith.constant 0 : index
    %c0_67 = arith.constant 0 : index
    %144 = vector.load %arg11[%c0_65, %c0_66, %c0_67] : memref<2x1x32xf32, #tpu.memory_space<vmem>>, vector<1x1x32xf32>
    %145 = vector.shape_cast %144 : vector<1x1x32xf32> to vector<1x32xf32>
    %146 = vector.broadcast %145 : vector<1x32xf32> to vector<16x32xf32>
    %147 = arith.addf %143, %146 : vector<16x32xf32>
    %148 = arith.addf %129, %147 : vector<16x32xf32>
    %c0_68 = arith.constant 0 : index
    %c0_69 = arith.constant 0 : index
    %c0_70 = arith.constant 0 : index
    %149 = vector.load %arg12[%c0_68, %c0_69, %c0_70] : memref<2x1x32xf32, #tpu.memory_space<vmem>>, vector<1x1x32xf32>
    %150 = vector.shape_cast %149 : vector<1x1x32xf32> to vector<1x32xf32>
    %c0_71 = arith.constant 0 : index
    %c0_72 = arith.constant 0 : index
    %c0_73 = arith.constant 0 : index
    %151 = vector.load %arg13[%c0_71, %c0_72, %c0_73] : memref<2x1x32xf32, #tpu.memory_space<vmem>>, vector<1x1x32xf32>
    %152 = vector.shape_cast %151 : vector<1x1x32xf32> to vector<1x32xf32>
    %cst_74 = arith.constant dense<0.000000e+00> : vector<16xf32>
    %153 = vector.multi_reduction <add>, %148, %cst_74 [1] : vector<16x32xf32> to vector<16xf32>
    %154 = vector.shape_cast %153 : vector<16xf32> to vector<16x1xf32>
    %cst_75 = arith.constant 3.200000e+01 : f32
    %155 = vector.broadcast %cst_75 : f32 to vector<16x1xf32>
    %156 = arith.divf %154, %155 : vector<16x1xf32>
    %157 = vector.broadcast %156 : vector<16x1xf32> to vector<16x32xf32>
    %158 = arith.subf %148, %157 : vector<16x32xf32>
    %159 = arith.mulf %158, %158 : vector<16x32xf32>
    %cst_76 = arith.constant dense<0.000000e+00> : vector<16xf32>
    %160 = vector.multi_reduction <add>, %159, %cst_76 [1] : vector<16x32xf32> to vector<16xf32>
    %161 = vector.shape_cast %160 : vector<16xf32> to vector<16x1xf32>
    %cst_77 = arith.constant 3.200000e+01 : f32
    %162 = vector.broadcast %cst_77 : f32 to vector<16x1xf32>
    %163 = arith.divf %161, %162 : vector<16x1xf32>
    %cst_78 = arith.constant 9.99999974E-6 : f32
    %164 = vector.broadcast %cst_78 : f32 to vector<16x1xf32>
    %165 = arith.addf %163, %164 : vector<16x1xf32>
    %166 = math.rsqrt %165 : vector<16x1xf32>
    %167 = vector.broadcast %166 : vector<16x1xf32> to vector<16x32xf32>
    %168 = arith.mulf %158, %167 : vector<16x32xf32>
    %169 = vector.broadcast %150 : vector<1x32xf32> to vector<16x32xf32>
    %170 = arith.mulf %168, %169 : vector<16x32xf32>
    %171 = vector.broadcast %152 : vector<1x32xf32> to vector<16x32xf32>
    %172 = arith.addf %170, %171 : vector<16x32xf32>
    %173 = arith.truncf %172 : vector<16x32xf32> to vector<16x32xbf16>
    %c1 = arith.constant 1 : index
    %c0_79 = arith.constant 0 : index
    %c0_80 = arith.constant 0 : index
    %174 = vector.load %arg2[%c1, %c0_79, %c0_80] : memref<2x32x96xbf16, #tpu.memory_space<vmem>>, vector<1x32x96xbf16>
    %175 = vector.shape_cast %174 : vector<1x32x96xbf16> to vector<32x96xbf16>
    %cst_81 = arith.constant dense<0.000000e+00> : vector<16x96xf32>
    %176 = tpu.matmul %173, %175, %cst_81 {dimension_numbers = #tpu.dot_dimension_numbers<[1], [0], [0], [1], [0, 0, 1, 1], [], []>} : vector<16x32xbf16>, vector<32x96xbf16>, vector<16x96xf32> -> vector<16x96xf32>
    %c1_82 = arith.constant 1 : index
    %c0_83 = arith.constant 0 : index
    %c0_84 = arith.constant 0 : index
    %177 = vector.load %arg3[%c1_82, %c0_83, %c0_84] : memref<2x1x96xf32, #tpu.memory_space<vmem>>, vector<1x1x96xf32>
    %178 = vector.shape_cast %177 : vector<1x1x96xf32> to vector<1x96xf32>
    %179 = vector.broadcast %178 : vector<1x96xf32> to vector<16x96xf32>
    %180 = arith.addf %176, %179 : vector<16x96xf32>
    %181 = vector.extract_strided_slice %180 {offsets = [0, 0], sizes = [16, 32], strides = [1, 1]} : vector<16x96xf32> to vector<16x32xf32>
    %182 = vector.shape_cast %181 : vector<16x32xf32> to vector<2x8x32xf32>
    %183 = vector.extract_strided_slice %180 {offsets = [0, 32], sizes = [16, 32], strides = [1, 1]} : vector<16x96xf32> to vector<16x32xf32>
    %184 = vector.shape_cast %183 : vector<16x32xf32> to vector<2x8x32xf32>
    %185 = vector.extract_strided_slice %180 {offsets = [0, 64], sizes = [16, 32], strides = [1, 1]} : vector<16x96xf32> to vector<16x32xf32>
    %186 = vector.shape_cast %185 : vector<16x32xf32> to vector<2x8x32xf32>
    %187 = vector.extract_strided_slice %182 {offsets = [0, 0, 0], sizes = [2, 8, 8], strides = [1, 1, 1]} : vector<2x8x32xf32> to vector<2x8x8xf32>
    %188 = arith.truncf %187 : vector<2x8x8xf32> to vector<2x8x8xbf16>
    %189 = vector.extract_strided_slice %184 {offsets = [0, 0, 0], sizes = [2, 8, 8], strides = [1, 1, 1]} : vector<2x8x32xf32> to vector<2x8x8xf32>
    %190 = arith.truncf %189 : vector<2x8x8xf32> to vector<2x8x8xbf16>
    %191 = vector.extract_strided_slice %186 {offsets = [0, 0, 0], sizes = [2, 8, 8], strides = [1, 1, 1]} : vector<2x8x32xf32> to vector<2x8x8xf32>
    %192 = arith.truncf %191 : vector<2x8x8xf32> to vector<2x8x8xbf16>
    "tpu.trace_start"() <{level = 10 : i32, message = "bqd,bkd->bqk"}> : () -> ()
    %cst_85 = arith.constant dense<0.000000e+00> : vector<2x8x8xf32>
    %193 = tpu.matmul %188, %190, %cst_85 {dimension_numbers = #tpu.dot_dimension_numbers<[2], [2], [1], [1], [0, 0, 0, 1, 1, 1], [0], [0]>} : vector<2x8x8xbf16>, vector<2x8x8xbf16>, vector<2x8x8xf32> -> vector<2x8x8xf32>
    "tpu.trace_stop"() : () -> ()
    %cst_86 = arith.constant dense<0xFF800000> : vector<2x8xf32>
    %194 = vector.multi_reduction <maximumf>, %193, %cst_86 [2] : vector<2x8x8xf32> to vector<2x8xf32>
    %195 = vector.shape_cast %194 : vector<2x8xf32> to vector<2x8x1xf32>
    %196 = vector.broadcast %195 : vector<2x8x1xf32> to vector<2x8x8xf32>
    %197 = arith.subf %193, %196 : vector<2x8x8xf32>
    %198 = math.exp %197 : vector<2x8x8xf32>
    %cst_87 = arith.constant dense<0.000000e+00> : vector<2x8xf32>
    %199 = vector.multi_reduction <add>, %198, %cst_87 [2] : vector<2x8x8xf32> to vector<2x8xf32>
    %200 = vector.shape_cast %199 : vector<2x8xf32> to vector<2x8x1xf32>
    %201 = tpu.reciprocal %200 {approx = true} : vector<2x8x1xf32> -> vector<2x8x1xf32>
    %202 = vector.broadcast %201 : vector<2x8x1xf32> to vector<2x8x8xf32>
    %203 = arith.mulf %198, %202 : vector<2x8x8xf32>
    %204 = arith.truncf %203 : vector<2x8x8xf32> to vector<2x8x8xbf16>
    "tpu.trace_start"() <{level = 10 : i32, message = "bqk,bkd->bqd"}> : () -> ()
    %cst_88 = arith.constant dense<0.000000e+00> : vector<2x8x8xf32>
    %205 = tpu.matmul %204, %192, %cst_88 {dimension_numbers = #tpu.dot_dimension_numbers<[2], [1], [1], [2], [0, 0, 0, 1, 1, 2], [0], [0]>} : vector<2x8x8xbf16>, vector<2x8x8xbf16>, vector<2x8x8xf32> -> vector<2x8x8xf32>
    "tpu.trace_stop"() : () -> ()
    %c0_89 = arith.constant 0 : index
    %c0_90 = arith.constant 0 : index
    %c0_91 = arith.constant 0 : index
    %206 = vector.load %arg19[%c0_89, %c0_90, %c0_91] : memref<2x8x32xf32, #tpu.memory_space<vmem>>, vector<2x8x8xf32>
    tpu.vector_store %arg19[%c0_89, %c0_90, %c0_91], %205 {strides = array<i32>} : memref<2x8x32xf32, #tpu.memory_space<vmem>>, vector<2x8x8xf32>,
    %207 = vector.extract_strided_slice %182 {offsets = [0, 0, 8], sizes = [2, 8, 8], strides = [1, 1, 1]} : vector<2x8x32xf32> to vector<2x8x8xf32>
    %208 = arith.truncf %207 : vector<2x8x8xf32> to vector<2x8x8xbf16>
    %209 = vector.extract_strided_slice %184 {offsets = [0, 0, 8], sizes = [2, 8, 8], strides = [1, 1, 1]} : vector<2x8x32xf32> to vector<2x8x8xf32>
    %210 = arith.truncf %209 : vector<2x8x8xf32> to vector<2x8x8xbf16>
    %211 = vector.extract_strided_slice %186 {offsets = [0, 0, 8], sizes = [2, 8, 8], strides = [1, 1, 1]} : vector<2x8x32xf32> to vector<2x8x8xf32>
    %212 = arith.truncf %211 : vector<2x8x8xf32> to vector<2x8x8xbf16>
    "tpu.trace_start"() <{level = 10 : i32, message = "bqd,bkd->bqk"}> : () -> ()
    %cst_92 = arith.constant dense<0.000000e+00> : vector<2x8x8xf32>
    %213 = tpu.matmul %208, %210, %cst_92 {dimension_numbers = #tpu.dot_dimension_numbers<[2], [2], [1], [1], [0, 0, 0, 1, 1, 1], [0], [0]>} : vector<2x8x8xbf16>, vector<2x8x8xbf16>, vector<2x8x8xf32> -> vector<2x8x8xf32>
    "tpu.trace_stop"() : () -> ()
    %cst_93 = arith.constant dense<0xFF800000> : vector<2x8xf32>
    %214 = vector.multi_reduction <maximumf>, %213, %cst_93 [2] : vector<2x8x8xf32> to vector<2x8xf32>
    %215 = vector.shape_cast %214 : vector<2x8xf32> to vector<2x8x1xf32>
    %216 = vector.broadcast %215 : vector<2x8x1xf32> to vector<2x8x8xf32>
    %217 = arith.subf %213, %216 : vector<2x8x8xf32>
    %218 = math.exp %217 : vector<2x8x8xf32>
    %cst_94 = arith.constant dense<0.000000e+00> : vector<2x8xf32>
    %219 = vector.multi_reduction <add>, %218, %cst_94 [2] : vector<2x8x8xf32> to vector<2x8xf32>
    %220 = vector.shape_cast %219 : vector<2x8xf32> to vector<2x8x1xf32>
    %221 = tpu.reciprocal %220 {approx = true} : vector<2x8x1xf32> -> vector<2x8x1xf32>
    %222 = vector.broadcast %221 : vector<2x8x1xf32> to vector<2x8x8xf32>
    %223 = arith.mulf %218, %222 : vector<2x8x8xf32>
    %224 = arith.truncf %223 : vector<2x8x8xf32> to vector<2x8x8xbf16>
    "tpu.trace_start"() <{level = 10 : i32, message = "bqk,bkd->bqd"}> : () -> ()
    %cst_95 = arith.constant dense<0.000000e+00> : vector<2x8x8xf32>
    %225 = tpu.matmul %224, %212, %cst_95 {dimension_numbers = #tpu.dot_dimension_numbers<[2], [1], [1], [2], [0, 0, 0, 1, 1, 2], [0], [0]>} : vector<2x8x8xbf16>, vector<2x8x8xbf16>, vector<2x8x8xf32> -> vector<2x8x8xf32>
    "tpu.trace_stop"() : () -> ()
    %c0_96 = arith.constant 0 : index
    %c0_97 = arith.constant 0 : index
    %c8_98 = arith.constant 8 : index
    %226 = vector.load %arg19[%c0_96, %c0_97, %c8_98] : memref<2x8x32xf32, #tpu.memory_space<vmem>>, vector<2x8x8xf32>
    tpu.vector_store %arg19[%c0_96, %c0_97, %c8_98], %225 {strides = array<i32>} : memref<2x8x32xf32, #tpu.memory_space<vmem>>, vector<2x8x8xf32>,
    %227 = vector.extract_strided_slice %182 {offsets = [0, 0, 16], sizes = [2, 8, 8], strides = [1, 1, 1]} : vector<2x8x32xf32> to vector<2x8x8xf32>
    %228 = arith.truncf %227 : vector<2x8x8xf32> to vector<2x8x8xbf16>
    %229 = vector.extract_strided_slice %184 {offsets = [0, 0, 16], sizes = [2, 8, 8], strides = [1, 1, 1]} : vector<2x8x32xf32> to vector<2x8x8xf32>
    %230 = arith.truncf %229 : vector<2x8x8xf32> to vector<2x8x8xbf16>
    %231 = vector.extract_strided_slice %186 {offsets = [0, 0, 16], sizes = [2, 8, 8], strides = [1, 1, 1]} : vector<2x8x32xf32> to vector<2x8x8xf32>
    %232 = arith.truncf %231 : vector<2x8x8xf32> to vector<2x8x8xbf16>
    "tpu.trace_start"() <{level = 10 : i32, message = "bqd,bkd->bqk"}> : () -> ()
    %cst_99 = arith.constant dense<0.000000e+00> : vector<2x8x8xf32>
    %233 = tpu.matmul %228, %230, %cst_99 {dimension_numbers = #tpu.dot_dimension_numbers<[2], [2], [1], [1], [0, 0, 0, 1, 1, 1], [0], [0]>} : vector<2x8x8xbf16>, vector<2x8x8xbf16>, vector<2x8x8xf32> -> vector<2x8x8xf32>
    "tpu.trace_stop"() : () -> ()
    %cst_100 = arith.constant dense<0xFF800000> : vector<2x8xf32>
    %234 = vector.multi_reduction <maximumf>, %233, %cst_100 [2] : vector<2x8x8xf32> to vector<2x8xf32>
    %235 = vector.shape_cast %234 : vector<2x8xf32> to vector<2x8x1xf32>
    %236 = vector.broadcast %235 : vector<2x8x1xf32> to vector<2x8x8xf32>
    %237 = arith.subf %233, %236 : vector<2x8x8xf32>
    %238 = math.exp %237 : vector<2x8x8xf32>
    %cst_101 = arith.constant dense<0.000000e+00> : vector<2x8xf32>
    %239 = vector.multi_reduction <add>, %238, %cst_101 [2] : vector<2x8x8xf32> to vector<2x8xf32>
    %240 = vector.shape_cast %239 : vector<2x8xf32> to vector<2x8x1xf32>
    %241 = tpu.reciprocal %240 {approx = true} : vector<2x8x1xf32> -> vector<2x8x1xf32>
    %242 = vector.broadcast %241 : vector<2x8x1xf32> to vector<2x8x8xf32>
    %243 = arith.mulf %238, %242 : vector<2x8x8xf32>
    %244 = arith.truncf %243 : vector<2x8x8xf32> to vector<2x8x8xbf16>
    "tpu.trace_start"() <{level = 10 : i32, message = "bqk,bkd->bqd"}> : () -> ()
    %cst_102 = arith.constant dense<0.000000e+00> : vector<2x8x8xf32>
    %245 = tpu.matmul %244, %232, %cst_102 {dimension_numbers = #tpu.dot_dimension_numbers<[2], [1], [1], [2], [0, 0, 0, 1, 1, 2], [0], [0]>} : vector<2x8x8xbf16>, vector<2x8x8xbf16>, vector<2x8x8xf32> -> vector<2x8x8xf32>
    "tpu.trace_stop"() : () -> ()
    %c0_103 = arith.constant 0 : index
    %c0_104 = arith.constant 0 : index
    %c16_105 = arith.constant 16 : index
    %246 = vector.load %arg19[%c0_103, %c0_104, %c16_105] : memref<2x8x32xf32, #tpu.memory_space<vmem>>, vector<2x8x8xf32>
    tpu.vector_store %arg19[%c0_103, %c0_104, %c16_105], %245 {strides = array<i32>} : memref<2x8x32xf32, #tpu.memory_space<vmem>>, vector<2x8x8xf32>,
    %247 = vector.extract_strided_slice %182 {offsets = [0, 0, 24], sizes = [2, 8, 8], strides = [1, 1, 1]} : vector<2x8x32xf32> to vector<2x8x8xf32>
    %248 = arith.truncf %247 : vector<2x8x8xf32> to vector<2x8x8xbf16>
    %249 = vector.extract_strided_slice %184 {offsets = [0, 0, 24], sizes = [2, 8, 8], strides = [1, 1, 1]} : vector<2x8x32xf32> to vector<2x8x8xf32>
    %250 = arith.truncf %249 : vector<2x8x8xf32> to vector<2x8x8xbf16>
    %251 = vector.extract_strided_slice %186 {offsets = [0, 0, 24], sizes = [2, 8, 8], strides = [1, 1, 1]} : vector<2x8x32xf32> to vector<2x8x8xf32>
    %252 = arith.truncf %251 : vector<2x8x8xf32> to vector<2x8x8xbf16>
    "tpu.trace_start"() <{level = 10 : i32, message = "bqd,bkd->bqk"}> : () -> ()
    %cst_106 = arith.constant dense<0.000000e+00> : vector<2x8x8xf32>
    %253 = tpu.matmul %248, %250, %cst_106 {dimension_numbers = #tpu.dot_dimension_numbers<[2], [2], [1], [1], [0, 0, 0, 1, 1, 1], [0], [0]>} : vector<2x8x8xbf16>, vector<2x8x8xbf16>, vector<2x8x8xf32> -> vector<2x8x8xf32>
    "tpu.trace_stop"() : () -> ()
    %cst_107 = arith.constant dense<0xFF800000> : vector<2x8xf32>
    %254 = vector.multi_reduction <maximumf>, %253, %cst_107 [2] : vector<2x8x8xf32> to vector<2x8xf32>
    %255 = vector.shape_cast %254 : vector<2x8xf32> to vector<2x8x1xf32>
    %256 = vector.broadcast %255 : vector<2x8x1xf32> to vector<2x8x8xf32>
    %257 = arith.subf %253, %256 : vector<2x8x8xf32>
    %258 = math.exp %257 : vector<2x8x8xf32>
    %cst_108 = arith.constant dense<0.000000e+00> : vector<2x8xf32>
    %259 = vector.multi_reduction <add>, %258, %cst_108 [2] : vector<2x8x8xf32> to vector<2x8xf32>
    %260 = vector.shape_cast %259 : vector<2x8xf32> to vector<2x8x1xf32>
    %261 = tpu.reciprocal %260 {approx = true} : vector<2x8x1xf32> -> vector<2x8x1xf32>
    %262 = vector.broadcast %261 : vector<2x8x1xf32> to vector<2x8x8xf32>
    %263 = arith.mulf %258, %262 : vector<2x8x8xf32>
    %264 = arith.truncf %263 : vector<2x8x8xf32> to vector<2x8x8xbf16>
    "tpu.trace_start"() <{level = 10 : i32, message = "bqk,bkd->bqd"}> : () -> ()
    %cst_109 = arith.constant dense<0.000000e+00> : vector<2x8x8xf32>
    %265 = tpu.matmul %264, %252, %cst_109 {dimension_numbers = #tpu.dot_dimension_numbers<[2], [1], [1], [2], [0, 0, 0, 1, 1, 2], [0], [0]>} : vector<2x8x8xbf16>, vector<2x8x8xbf16>, vector<2x8x8xf32> -> vector<2x8x8xf32>
    "tpu.trace_stop"() : () -> ()
    %c0_110 = arith.constant 0 : index
    %c0_111 = arith.constant 0 : index
    %c24_112 = arith.constant 24 : index
    %266 = vector.load %arg19[%c0_110, %c0_111, %c24_112] : memref<2x8x32xf32, #tpu.memory_space<vmem>>, vector<2x8x8xf32>
    tpu.vector_store %arg19[%c0_110, %c0_111, %c24_112], %265 {strides = array<i32>} : memref<2x8x32xf32, #tpu.memory_space<vmem>>, vector<2x8x8xf32>,
    %c0_113 = arith.constant 0 : index
    %c0_114 = arith.constant 0 : index
    %c0_115 = arith.constant 0 : index
    %267 = vector.load %arg19[%c0_113, %c0_114, %c0_115] : memref<2x8x32xf32, #tpu.memory_space<vmem>>, vector<2x8x32xf32>
    %268 = vector.shape_cast %267 : vector<2x8x32xf32> to vector<16x32xf32>
    %269 = arith.truncf %268 : vector<16x32xf32> to vector<16x32xbf16>
    %c1_116 = arith.constant 1 : index
    %c0_117 = arith.constant 0 : index
    %c0_118 = arith.constant 0 : index
    %270 = vector.load %arg4[%c1_116, %c0_117, %c0_118] : memref<2x32x32xbf16, #tpu.memory_space<vmem>>, vector<1x32x32xbf16>
    %271 = vector.shape_cast %270 : vector<1x32x32xbf16> to vector<32x32xbf16>
    %cst_119 = arith.constant dense<0.000000e+00> : vector<16x32xf32>
    %272 = tpu.matmul %269, %271, %cst_119 {dimension_numbers = #tpu.dot_dimension_numbers<[1], [0], [0], [1], [0, 0, 1, 1], [], []>} : vector<16x32xbf16>, vector<32x32xbf16>, vector<16x32xf32> -> vector<16x32xf32>
    %c1_120 = arith.constant 1 : index
    %c0_121 = arith.constant 0 : index
    %c0_122 = arith.constant 0 : index
    %273 = vector.load %arg5[%c1_120, %c0_121, %c0_122] : memref<2x1x32xf32, #tpu.memory_space<vmem>>, vector<1x1x32xf32>
    %274 = vector.shape_cast %273 : vector<1x1x32xf32> to vector<1x32xf32>
    %275 = vector.broadcast %274 : vector<1x32xf32> to vector<16x32xf32>
    %276 = arith.addf %272, %275 : vector<16x32xf32>
    %277 = arith.addf %172, %276 : vector<16x32xf32>
    %c1_123 = arith.constant 1 : index
    %c0_124 = arith.constant 0 : index
    %c0_125 = arith.constant 0 : index
    %278 = vector.load %arg6[%c1_123, %c0_124, %c0_125] : memref<2x1x32xf32, #tpu.memory_space<vmem>>, vector<1x1x32xf32>
    %279 = vector.shape_cast %278 : vector<1x1x32xf32> to vector<1x32xf32>
    %c1_126 = arith.constant 1 : index
    %c0_127 = arith.constant 0 : index
    %c0_128 = arith.constant 0 : index
    %280 = vector.load %arg7[%c1_126, %c0_127, %c0_128] : memref<2x1x32xf32, #tpu.memory_space<vmem>>, vector<1x1x32xf32>
    %281 = vector.shape_cast %280 : vector<1x1x32xf32> to vector<1x32xf32>
    %cst_129 = arith.constant dense<0.000000e+00> : vector<16xf32>
    %282 = vector.multi_reduction <add>, %277, %cst_129 [1] : vector<16x32xf32> to vector<16xf32>
    %283 = vector.shape_cast %282 : vector<16xf32> to vector<16x1xf32>
    %cst_130 = arith.constant 3.200000e+01 : f32
    %284 = vector.broadcast %cst_130 : f32 to vector<16x1xf32>
    %285 = arith.divf %283, %284 : vector<16x1xf32>
    %286 = vector.broadcast %285 : vector<16x1xf32> to vector<16x32xf32>
    %287 = arith.subf %277, %286 : vector<16x32xf32>
    %288 = arith.mulf %287, %287 : vector<16x32xf32>
    %cst_131 = arith.constant dense<0.000000e+00> : vector<16xf32>
    %289 = vector.multi_reduction <add>, %288, %cst_131 [1] : vector<16x32xf32> to vector<16xf32>
    %290 = vector.shape_cast %289 : vector<16xf32> to vector<16x1xf32>
    %cst_132 = arith.constant 3.200000e+01 : f32
    %291 = vector.broadcast %cst_132 : f32 to vector<16x1xf32>
    %292 = arith.divf %290, %291 : vector<16x1xf32>
    %cst_133 = arith.constant 9.99999974E-6 : f32
    %293 = vector.broadcast %cst_133 : f32 to vector<16x1xf32>
    %294 = arith.addf %292, %293 : vector<16x1xf32>
    %295 = math.rsqrt %294 : vector<16x1xf32>
    %296 = vector.broadcast %295 : vector<16x1xf32> to vector<16x32xf32>
    %297 = arith.mulf %287, %296 : vector<16x32xf32>
    %298 = vector.broadcast %279 : vector<1x32xf32> to vector<16x32xf32>
    %299 = arith.mulf %297, %298 : vector<16x32xf32>
    %300 = vector.broadcast %281 : vector<1x32xf32> to vector<16x32xf32>
    %301 = arith.addf %299, %300 : vector<16x32xf32>
    %302 = arith.truncf %301 : vector<16x32xf32> to vector<16x32xbf16>
    %c1_134 = arith.constant 1 : index
    %c0_135 = arith.constant 0 : index
    %c0_136 = arith.constant 0 : index
    %303 = vector.load %arg8[%c1_134, %c0_135, %c0_136] : memref<2x32x64xbf16, #tpu.memory_space<vmem>>, vector<1x32x64xbf16>
    %304 = vector.shape_cast %303 : vector<1x32x64xbf16> to vector<32x64xbf16>
    %cst_137 = arith.constant dense<0.000000e+00> : vector<16x64xf32>
    %305 = tpu.matmul %302, %304, %cst_137 {dimension_numbers = #tpu.dot_dimension_numbers<[1], [0], [0], [1], [0, 0, 1, 1], [], []>} : vector<16x32xbf16>, vector<32x64xbf16>, vector<16x64xf32> -> vector<16x64xf32>
    %c1_138 = arith.constant 1 : index
    %c0_139 = arith.constant 0 : index
    %c0_140 = arith.constant 0 : index
    %306 = vector.load %arg9[%c1_138, %c0_139, %c0_140] : memref<2x1x64xf32, #tpu.memory_space<vmem>>, vector<1x1x64xf32>
    %307 = vector.shape_cast %306 : vector<1x1x64xf32> to vector<1x64xf32>
    %308 = vector.broadcast %307 : vector<1x64xf32> to vector<16x64xf32>
    %309 = arith.addf %305, %308 : vector<16x64xf32>
    %cst_141 = arith.constant 0.000000e+00 : f32
    %310 = vector.broadcast %cst_141 : f32 to vector<16x64xf32>
    %311 = arith.maximumf %309, %310 : vector<16x64xf32>
    %312 = arith.truncf %311 : vector<16x64xf32> to vector<16x64xbf16>
    %c1_142 = arith.constant 1 : index
    %c0_143 = arith.constant 0 : index
    %c0_144 = arith.constant 0 : index
    %313 = vector.load %arg10[%c1_142, %c0_143, %c0_144] : memref<2x64x32xbf16, #tpu.memory_space<vmem>>, vector<1x64x32xbf16>
    %314 = vector.shape_cast %313 : vector<1x64x32xbf16> to vector<64x32xbf16>
    %cst_145 = arith.constant dense<0.000000e+00> : vector<16x32xf32>
    %315 = tpu.matmul %312, %314, %cst_145 {dimension_numbers = #tpu.dot_dimension_numbers<[1], [0], [0], [1], [0, 0, 1, 1], [], []>} : vector<16x64xbf16>, vector<64x32xbf16>, vector<16x32xf32> -> vector<16x32xf32>
    %c1_146 = arith.constant 1 : index
    %c0_147 = arith.constant 0 : index
    %c0_148 = arith.constant 0 : index
    %316 = vector.load %arg11[%c1_146, %c0_147, %c0_148] : memref<2x1x32xf32, #tpu.memory_space<vmem>>, vector<1x1x32xf32>
    %317 = vector.shape_cast %316 : vector<1x1x32xf32> to vector<1x32xf32>
    %318 = vector.broadcast %317 : vector<1x32xf32> to vector<16x32xf32>
    %319 = arith.addf %315, %318 : vector<16x32xf32>
    %320 = arith.addf %301, %319 : vector<16x32xf32>
    %c1_149 = arith.constant 1 : index
    %c0_150 = arith.constant 0 : index
    %c0_151 = arith.constant 0 : index
    %321 = vector.load %arg12[%c1_149, %c0_150, %c0_151] : memref<2x1x32xf32, #tpu.memory_space<vmem>>, vector<1x1x32xf32>
    %322 = vector.shape_cast %321 : vector<1x1x32xf32> to vector<1x32xf32>
    %c1_152 = arith.constant 1 : index
    %c0_153 = arith.constant 0 : index
    %c0_154 = arith.constant 0 : index
    %323 = vector.load %arg13[%c1_152, %c0_153, %c0_154] : memref<2x1x32xf32, #tpu.memory_space<vmem>>, vector<1x1x32xf32>
    %324 = vector.shape_cast %323 : vector<1x1x32xf32> to vector<1x32xf32>
    %cst_155 = arith.constant dense<0.000000e+00> : vector<16xf32>
    %325 = vector.multi_reduction <add>, %320, %cst_155 [1] : vector<16x32xf32> to vector<16xf32>
    %326 = vector.shape_cast %325 : vector<16xf32> to vector<16x1xf32>
    %cst_156 = arith.constant 3.200000e+01 : f32
    %327 = vector.broadcast %cst_156 : f32 to vector<16x1xf32>
    %328 = arith.divf %326, %327 : vector<16x1xf32>
    %329 = vector.broadcast %328 : vector<16x1xf32> to vector<16x32xf32>
    %330 = arith.subf %320, %329 : vector<16x32xf32>
    %331 = arith.mulf %330, %330 : vector<16x32xf32>
    %cst_157 = arith.constant dense<0.000000e+00> : vector<16xf32>
    %332 = vector.multi_reduction <add>, %331, %cst_157 [1] : vector<16x32xf32> to vector<16xf32>
    %333 = vector.shape_cast %332 : vector<16xf32> to vector<16x1xf32>
    %cst_158 = arith.constant 3.200000e+01 : f32
    %334 = vector.broadcast %cst_158 : f32 to vector<16x1xf32>
    %335 = arith.divf %333, %334 : vector<16x1xf32>
    %cst_159 = arith.constant 9.99999974E-6 : f32
    %336 = vector.broadcast %cst_159 : f32 to vector<16x1xf32>
    %337 = arith.addf %335, %336 : vector<16x1xf32>
    %338 = math.rsqrt %337 : vector<16x1xf32>
    %339 = vector.broadcast %338 : vector<16x1xf32> to vector<16x32xf32>
    %340 = arith.mulf %330, %339 : vector<16x32xf32>
    %341 = vector.broadcast %322 : vector<1x32xf32> to vector<16x32xf32>
    %342 = arith.mulf %340, %341 : vector<16x32xf32>
    %343 = vector.broadcast %324 : vector<1x32xf32> to vector<16x32xf32>
    %344 = arith.addf %342, %343 : vector<16x32xf32>
    %345 = arith.truncf %344 : vector<16x32xf32> to vector<16x32xbf16>
    %c0_160 = arith.constant 0 : index
    %c0_161 = arith.constant 0 : index
    %c0_162 = arith.constant 0 : index
    %346 = vector.load %arg14[%c0_160, %c0_161, %c0_162] : memref<1x32x32xbf16, #tpu.memory_space<vmem>>, vector<1x32x32xbf16>
    %347 = vector.shape_cast %346 : vector<1x32x32xbf16> to vector<32x32xbf16>
    %cst_163 = arith.constant dense<0.000000e+00> : vector<16x32xf32>
    %348 = tpu.matmul %345, %347, %cst_163 {dimension_numbers = #tpu.dot_dimension_numbers<[1], [0], [0], [1], [0, 0, 1, 1], [], []>} : vector<16x32xbf16>, vector<32x32xbf16>, vector<16x32xf32> -> vector<16x32xf32>
    %c0_164 = arith.constant 0 : index
    %c0_165 = arith.constant 0 : index
    %c0_166 = arith.constant 0 : index
    %349 = vector.load %arg15[%c0_164, %c0_165, %c0_166] : memref<1x1x32xf32, #tpu.memory_space<vmem>>, vector<1x1x32xf32>
    %350 = vector.shape_cast %349 : vector<1x1x32xf32> to vector<1x32xf32>
    %351 = vector.broadcast %350 : vector<1x32xf32> to vector<16x32xf32>
    %352 = arith.addf %348, %351 : vector<16x32xf32>
    %cst_167 = arith.constant 0.000000e+00 : f32
    %cst_168 = arith.constant 6.000000e+00 : f32
    %353 = vector.broadcast %cst_167 : f32 to vector<16x32xf32>
    %354 = arith.maximumf %353, %352 : vector<16x32xf32>
    %355 = vector.broadcast %cst_168 : f32 to vector<16x32xf32>
    %356 = arith.minimumf %355, %354 : vector<16x32xf32>
    %357 = arith.truncf %356 : vector<16x32xf32> to vector<16x32xbf16>
    %c0_169 = arith.constant 0 : index
    %c0_170 = arith.constant 0 : index
    %358 = vector.load %arg16[%c0_169, %c0_170] : memref<32x128xbf16, #tpu.memory_space<vmem>>, vector<32x128xbf16>
    %cst_171 = arith.constant dense<0.000000e+00> : vector<16x128xf32>
    %359 = tpu.matmul %357, %358, %cst_171 {dimension_numbers = #tpu.dot_dimension_numbers<[1], [0], [0], [1], [0, 0, 1, 1], [], []>} : vector<16x32xbf16>, vector<32x128xbf16>, vector<16x128xf32> -> vector<16x128xf32>
    %c0_172 = arith.constant 0 : index
    %c0_173 = arith.constant 0 : index
    %360 = vector.load %arg17[%c0_172, %c0_173] : memref<1x128xf32, #tpu.memory_space<vmem>>, vector<1x128xf32>
    %361 = vector.broadcast %360 : vector<1x128xf32> to vector<16x128xf32>
    %362 = arith.addf %359, %361 : vector<16x128xf32>
    %c0_174 = arith.constant 0 : index
    %c0_175 = arith.constant 0 : index
    %363 = vector.load %arg18[%c0_174, %c0_175] : memref<16x128xf32, #tpu.memory_space<vmem>>, vector<16x128xf32>
    tpu.vector_store %arg18[%c0_174, %c0_175], %362 {strides = array<i32>} : memref<16x128xf32, #tpu.memory_space<vmem>>, vector<16x128xf32>,
    return
  }
  func.func @transform_0(%arg0: i32) -> (i32, i32) {
    %c0_i32 = arith.constant 0 : i32
    %c0_i32_0 = arith.constant 0 : i32
    return %arg0, %c0_i32 : i32, i32
  }
  func.func @transform_1(%arg0: i32) -> (i32, i32, i32) {
    %c0_i32 = arith.constant 0 : i32
    %c0_i32_0 = arith.constant 0 : i32
    %c0_i32_1 = arith.constant 0 : i32
    %c0_i32_2 = arith.constant 0 : i32
    return %c0_i32, %c0_i32_0, %c0_i32_1 : i32, i32, i32
  }
  func.func @transform_2(%arg0: i32) -> (i32, i32, i32) {
    %c0_i32 = arith.constant 0 : i32
    %c0_i32_0 = arith.constant 0 : i32
    %c0_i32_1 = arith.constant 0 : i32
    %c0_i32_2 = arith.constant 0 : i32
    return %c0_i32, %c0_i32_0, %c0_i32_1 : i32, i32, i32
  }
  func.func @transform_3(%arg0: i32) -> (i32, i32, i32) {
    %c0_i32 = arith.constant 0 : i32
    %c0_i32_0 = arith.constant 0 : i32
    %c0_i32_1 = arith.constant 0 : i32
    %c0_i32_2 = arith.constant 0 : i32
    return %c0_i32, %c0_i32_0, %c0_i32_1 : i32, i32, i32
  }
  func.func @transform_4(%arg0: i32) -> (i32, i32, i32) {
    %c0_i32 = arith.constant 0 : i32
    %c0_i32_0 = arith.constant 0 : i32
    %c0_i32_1 = arith.constant 0 : i32
    %c0_i32_2 = arith.constant 0 : i32
    return %c0_i32, %c0_i32_0, %c0_i32_1 : i32, i32, i32
  }
  func.func @transform_5(%arg0: i32) -> (i32, i32, i32) {
    %c0_i32 = arith.constant 0 : i32
    %c0_i32_0 = arith.constant 0 : i32
    %c0_i32_1 = arith.constant 0 : i32
    %c0_i32_2 = arith.constant 0 : i32
    return %c0_i32, %c0_i32_0, %c0_i32_1 : i32, i32, i32
  }
  func.func @transform_6(%arg0: i32) -> (i32, i32, i32) {
    %c0_i32 = arith.constant 0 : i32
    %c0_i32_0 = arith.constant 0 : i32
    %c0_i32_1 = arith.constant 0 : i32
    %c0_i32_2 = arith.constant 0 : i32
    return %c0_i32, %c0_i32_0, %c0_i32_1 : i32, i32, i32
  }
  func.func @transform_7(%arg0: i32) -> (i32, i32, i32) {
    %c0_i32 = arith.constant 0 : i32
    %c0_i32_0 = arith.constant 0 : i32
    %c0_i32_1 = arith.constant 0 : i32
    %c0_i32_2 = arith.constant 0 : i32
    return %c0_i32, %c0_i32_0, %c0_i32_1 : i32, i32, i32
  }
  func.func @transform_8(%arg0: i32) -> (i32, i32, i32) {
    %c0_i32 = arith.constant 0 : i32
    %c0_i32_0 = arith.constant 0 : i32
    %c0_i32_1 = arith.constant 0 : i32
    %c0_i32_2 = arith.constant 0 : i32
    return %c0_i32, %c0_i32_0, %c0_i32_1 : i32, i32, i32
  }
  func.func @transform_9(%arg0: i32) -> (i32, i32, i32) {
    %c0_i32 = arith.constant 0 : i32
    %c0_i32_0 = arith.constant 0 : i32
    %c0_i32_1 = arith.constant 0 : i32
    %c0_i32_2 = arith.constant 0 : i32
    return %c0_i32, %c0_i32_0, %c0_i32_1 : i32, i32, i32
  }
  func.func @transform_10(%arg0: i32) -> (i32, i32, i32) {
    %c0_i32 = arith.constant 0 : i32
    %c0_i32_0 = arith.constant 0 : i32
    %c0_i32_1 = arith.constant 0 : i32
    %c0_i32_2 = arith.constant 0 : i32
    return %c0_i32, %c0_i32_0, %c0_i32_1 : i32, i32, i32
  }
  func.func @transform_11(%arg0: i32) -> (i32, i32, i32) {
    %c0_i32 = arith.constant 0 : i32
    %c0_i32_0 = arith.constant 0 : i32
    %c0_i32_1 = arith.constant 0 : i32
    %c0_i32_2 = arith.constant 0 : i32
    return %c0_i32, %c0_i32_0, %c0_i32_1 : i32, i32, i32
  }
  func.func @transform_12(%arg0: i32) -> (i32, i32, i32) {
    %c0_i32 = arith.constant 0 : i32
    %c0_i32_0 = arith.constant 0 : i32
    %c0_i32_1 = arith.constant 0 : i32
    %c0_i32_2 = arith.constant 0 : i32
    return %c0_i32, %c0_i32_0, %c0_i32_1 : i32, i32, i32
  }
  func.func @transform_13(%arg0: i32) -> (i32, i32, i32) {
    %c0_i32 = arith.constant 0 : i32
    %c0_i32_0 = arith.constant 0 : i32
    %c0_i32_1 = arith.constant 0 : i32
    %c0_i32_2 = arith.constant 0 : i32
    return %c0_i32, %c0_i32_0, %c0_i32_1 : i32, i32, i32
  }
  func.func @transform_14(%arg0: i32) -> (i32, i32, i32) {
    %c0_i32 = arith.constant 0 : i32
    %c0_i32_0 = arith.constant 0 : i32
    %c0_i32_1 = arith.constant 0 : i32
    %c0_i32_2 = arith.constant 0 : i32
    return %c0_i32, %c0_i32_0, %c0_i32_1 : i32, i32, i32
  }
  func.func @transform_15(%arg0: i32) -> (i32, i32) {
    %c0_i32 = arith.constant 0 : i32
    %c0_i32_0 = arith.constant 0 : i32
    %c0_i32_1 = arith.constant 0 : i32
    return %c0_i32, %c0_i32_0 : i32, i32
  }
  func.func @transform_16(%arg0: i32) -> (i32, i32) {
    %c0_i32 = arith.constant 0 : i32
    %c0_i32_0 = arith.constant 0 : i32
    %c0_i32_1 = arith.constant 0 : i32
    return %c0_i32, %c0_i32_0 : i32, i32
  }
  func.func @transform_17(%arg0: i32) -> (i32, i32) {
    %c0_i32 = arith.constant 0 : i32
    %c0_i32_0 = arith.constant 0 : i32
    return %arg0, %c0_i32 : i32, i32
  }
}

</mosaic_0001>

<llo_original>
// kernel: tpu_custom_call.1
$region0: #{tpu_custom_call.1}
  #allocation0 [shape = 'u32[]', space=smem, size = 0x4, offset = 0x4, fixed_abs, tag = 'smem constant byte address 0x4 - core index']
  #allocation1 [shape = 'u32[144,128]{1,0:T(1,128)}', space=vmem, size = 0x12000, scoped, tag = 'internal scratch']
  #allocation2 [shape = 'f32[2,8,32]{2,1,0:T(8,128)}', space=vmem, size = 0x2000, scoped, tag = 'scratch operand']
  %s0 = inlined_call_operand.hbm [shape: f32[16,32], index: 0, kind: input, shape index: {}]
  %s1 = inlined_call_operand.vmem [shape: bf16[2,32,96], index: 1, kind: input, shape index: {}]
  %s2 = inlined_call_operand.hbm [shape: f32[2,1,96], index: 2, kind: input, shape index: {}]
  %s3 = inlined_call_operand.vmem [shape: bf16[2,32,32], index: 3, kind: input, shape index: {}]
  %s4 = inlined_call_operand.hbm [shape: f32[2,1,32], index: 4, kind: input, shape index: {}]
  %s5 = inlined_call_operand.hbm [shape: f32[2,1,32], index: 5, kind: input, shape index: {}]
  %s6 = inlined_call_operand.hbm [shape: f32[2,1,32], index: 6, kind: input, shape index: {}]
  %s7 = inlined_call_operand.vmem [shape: bf16[2,32,64], index: 7, kind: input, shape index: {}]
  %s8 = inlined_call_operand.hbm [shape: f32[2,1,64], index: 8, kind: input, shape index: {}]
  %s9 = inlined_call_operand.vmem [shape: bf16[2,64,32], index: 9, kind: input, shape index: {}]
  %s10 = inlined_call_operand.hbm [shape: f32[2,1,32], index: 10, kind: input, shape index: {}]
  %s11 = inlined_call_operand.hbm [shape: f32[2,1,32], index: 11, kind: input, shape index: {}]
  %s12 = inlined_call_operand.hbm [shape: f32[2,1,32], index: 12, kind: input, shape index: {}]
  %s13 = inlined_call_operand.vmem [shape: bf16[1,32,32], index: 13, kind: input, shape index: {}]
  %s14 = inlined_call_operand.vmem [shape: f32[1,1,32], index: 14, kind: input, shape index: {}]
  %s15 = inlined_call_operand.hbm [shape: bf16[32,128], index: 15, kind: input, shape index: {}]
  %s16 = inlined_call_operand.vmem [shape: f32[1,128], index: 16, kind: input, shape index: {}]
  %s17 = inlined_call_operand.hbm [shape: f32[16,128], index: 17, kind: output, shape index: {}]
  %s18 = sld [smem:[#allocation0]]
  $region118: #{tpu_custom_call.1} parent=0
    _
  %s20 = ssub.s32 1, %s18
  %s21 = scalar_select 0, %s20, %s18
  $region1: #{tpu_custom_call.1} parent=0
    #allocation3 [shape = 'u8[8192]{0}', space=vmem, size = 0x2000, scoped, tag = 'input window, operand 0, single buffered']
    #allocation4 [shape = 's32[1]{0}', space=sflag, size = 0x4, scoped, tag = 'scoped memory for tpu_custom_call.1']
    #allocation5 [shape = 's32[1]{0}', space=sflag, size = 0x4, scoped, tag = 'scoped memory for tpu_custom_call.1']
    #allocation6 [shape = 'u8[1024]{0}', space=vmem, size = 0x400, scoped, tag = 'input window, operand 2, single buffered']
    #allocation7 [shape = 's32[1]{0}', space=sflag, size = 0x4, scoped, tag = 'scoped memory for tpu_custom_call.1']
    #allocation8 [shape = 'u8[1024]{0}', space=vmem, size = 0x400, scoped, tag = 'input window, operand 4, single buffered']
    #allocation9 [shape = 'u8[1024]{0}', space=vmem, size = 0x400, scoped, tag = 'input window, operand 5, single buffered']
    #allocation10 [shape = 's32[1]{0}', space=sflag, size = 0x4, scoped, tag = 'scoped memory for tpu_custom_call.1']
    #allocation11 [shape = 'u8[1024]{0}', space=vmem, size = 0x400, scoped, tag = 'input window, operand 6, single buffered']
    #allocation12 [shape = 'u8[1024]{0}', space=vmem, size = 0x400, scoped, tag = 'input window, operand 8, single buffered']
    #allocation13 [shape = 's32[1]{0}', space=sflag, size = 0x4, scoped, tag = 'scoped memory for tpu_custom_call.1']
    #allocation14 [shape = 'u8[1024]{0}', space=vmem, size = 0x400, scoped, tag = 'input window, operand 10, single buffered']
    #allocation15 [shape = 'u8[1024]{0}', space=vmem, size = 0x400, scoped, tag = 'input window, operand 11, single buffered']
    #allocation16 [shape = 's32[1]{0}', space=sflag, size = 0x4, scoped, tag = 'scoped memory for tpu_custom_call.1']
    #allocation17 [shape = 'u8[1024]{0}', space=vmem, size = 0x400, scoped, tag = 'input window, operand 12, single buffered']
    #allocation18 [shape = 'u8[8192]{0}', space=vmem, size = 0x2000, scoped, tag = 'input window, operand 15, single buffered']
    #allocation19 [shape = 's32[1]{0}', space=sflag, size = 0x4, scoped, tag = 'scoped memory for tpu_custom_call.1']
    #allocation20 [shape = 'u8[8192]{0}', space=vmem, size = 0x2000, scoped, tag = 'output window, operand 0, single buffered']
    %22 = vsyncpa [#allocation4], 0
    %23 = vsyncpa [#allocation7], 0
    %24 = vsyncpa [#allocation10], 0
    %25 = vsyncpa [#allocation13], 0
    %26 = vsyncpa [#allocation16], 0
    %27 = vsyncpa [#allocation19], 0
    %28 = vsyncpa [#allocation5], 0
    // Predicated region
    $region2: #{tpu_custom_call.1} parent=1 // pred_check
      _
    $region3: #{tpu_custom_call.1} parent=1 // pred_check_branch
      %30 = sbr.rel (0) target = $region5
    $region4: #{tpu_custom_call.1} parent=1 // pred_region
      %s32 = ssub.s32 256, 256
      %33 = vsyncadd [#allocation4], %s32
      %s34 = sshll.u32 [#allocation3], 4
      %s35 = int_to_ptr.vmem [resolvable:$true] %s34
      %40 = dma.hbm_to_vmem [thread:$0]  %s0, 256, %s35, [#allocation4], 128, 128, 8
    $region5: #{tpu_custom_call.1} parent=1 // pred_fallthru
      _
    // Predicated region
    $region6: #{tpu_custom_call.1} parent=1 // pred_check
      _
    $region7: #{tpu_custom_call.1} parent=1 // pred_check_branch
      %42 = sbr.rel (0) target = $region9
    $region8: #{tpu_custom_call.1} parent=1 // pred_region
      _
    $region9: #{tpu_custom_call.1} parent=1 // pred_fallthru
      _
    // Predicated region
    $region10: #{tpu_custom_call.1} parent=1 // pred_check
      _
    $region11: #{tpu_custom_call.1} parent=1 // pred_check_branch
      %44 = sbr.rel (0) target = $region13
    $region12: #{tpu_custom_call.1} parent=1 // pred_region
      %s46 = ssub.s32 32, 32
      %47 = vsyncadd [#allocation7], %s46
      %s48 = sshll.u32 [#allocation6], 4
      %s49 = int_to_ptr.vmem [resolvable:$true] %s48
      %54 = dma.hbm_to_vmem [thread:$0]  %s2, 32, %s49, [#allocation7], 16, 16, 1
    $region13: #{tpu_custom_call.1} parent=1 // pred_fallthru
      _
    // Predicated region
    $region14: #{tpu_custom_call.1} parent=1 // pred_check
      _
    $region15: #{tpu_custom_call.1} parent=1 // pred_check_branch
      %56 = sbr.rel (0) target = $region17
    $region16: #{tpu_custom_call.1} parent=1 // pred_region
      _
    $region17: #{tpu_custom_call.1} parent=1 // pred_fallthru
      _
    // Predicated region
    $region18: #{tpu_custom_call.1} parent=1 // pred_check
      _
    $region19: #{tpu_custom_call.1} parent=1 // pred_check_branch
      %58 = sbr.rel (0) target = $region21
    $region20: #{tpu_custom_call.1} parent=1 // pred_region
      %s60 = ssub.s32 32, 32
      %61 = vsyncadd [#allocation7], %s60
      %s62 = sshll.u32 [#allocation8], 4
      %s63 = int_to_ptr.vmem [resolvable:$true] %s62
      %68 = dma.hbm_to_vmem [thread:$0]  %s4, 32, %s63, [#allocation7], 16, 16, 1
    $region21: #{tpu_custom_call.1} parent=1 // pred_fallthru
      _
    // Predicated region
    $region22: #{tpu_custom_call.1} parent=1 // pred_check
      _
    $region23: #{tpu_custom_call.1} parent=1 // pred_check_branch
      %70 = sbr.rel (0) target = $region25
    $region24: #{tpu_custom_call.1} parent=1 // pred_region
      %s72 = ssub.s32 32, 32
      %73 = vsyncadd [#allocation10], %s72
      %s74 = sshll.u32 [#allocation9], 4
      %s75 = int_to_ptr.vmem [resolvable:$true] %s74
      %80 = dma.hbm_to_vmem [thread:$0]  %s5, 32, %s75, [#allocation10], 16, 16, 1
    $region25: #{tpu_custom_call.1} parent=1 // pred_fallthru
      _
    // Predicated region
    $region26: #{tpu_custom_call.1} parent=1 // pred_check
      _
    $region27: #{tpu_custom_call.1} parent=1 // pred_check_branch
      %82 = sbr.rel (0) target = $region29
    $region28: #{tpu_custom_call.1} parent=1 // pred_region
      %s84 = ssub.s32 32, 32
      %85 = vsyncadd [#allocation10], %s84
      %s86 = sshll.u32 [#allocation11], 4
      %s87 = int_to_ptr.vmem [resolvable:$true] %s86
      %92 = dma.hbm_to_vmem [thread:$0]  %s6, 32, %s87, [#allocation10], 16, 16, 1
    $region29: #{tpu_custom_call.1} parent=1 // pred_fallthru
      _
    // Predicated region
    $region30: #{tpu_custom_call.1} parent=1 // pred_check
      _
    $region31: #{tpu_custom_call.1} parent=1 // pred_check_branch
      %94 = sbr.rel (0) target = $region33
    $region32: #{tpu_custom_call.1} parent=1 // pred_region
      _
    $region33: #{tpu_custom_call.1} parent=1 // pred_fallthru
      _
    // Predicated region
    $region34: #{tpu_custom_call.1} parent=1 // pred_check
      _
    $region35: #{tpu_custom_call.1} parent=1 // pred_check_branch
      %96 = sbr.rel (0) target = $region37
    $region36: #{tpu_custom_call.1} parent=1 // pred_region
      %s98 = ssub.s32 32, 32
      %99 = vsyncadd [#allocation13], %s98
      %s100 = sshll.u32 [#allocation12], 4
      %s101 = int_to_ptr.vmem [resolvable:$true] %s100
      %106 = dma.hbm_to_vmem [thread:$0]  %s8, 32, %s101, [#allocation13], 16, 16, 1
    $region37: #{tpu_custom_call.1} parent=1 // pred_fallthru
      _
    // Predicated region
    $region38: #{tpu_custom_call.1} parent=1 // pred_check
      _
    $region39: #{tpu_custom_call.1} parent=1 // pred_check_branch
      %108 = sbr.rel (0) target = $region41
    $region40: #{tpu_custom_call.1} parent=1 // pred_region
      _
    $region41: #{tpu_custom_call.1} parent=1 // pred_fallthru
      _
    // Predicated region
    $region42: #{tpu_custom_call.1} parent=1 // pred_check
      _
    $region43: #{tpu_custom_call.1} parent=1 // pred_check_branch
      %110 = sbr.rel (0) target = $region45
    $region44: #{tpu_custom_call.1} parent=1 // pred_region
      %s112 = ssub.s32 32, 32
      %113 = vsyncadd [#allocation13], %s112
      %s114 = sshll.u32 [#allocation14], 4
      %s115 = int_to_ptr.vmem [resolvable:$true] %s114
      %120 = dma.hbm_to_vmem [thread:$0]  %s10, 32, %s115, [#allocation13], 16, 16, 1
    $region45: #{tpu_custom_call.1} parent=1 // pred_fallthru
      _
    // Predicated region
    $region46: #{tpu_custom_call.1} parent=1 // pred_check
      _
    $region47: #{tpu_custom_call.1} parent=1 // pred_check_branch
      %122 = sbr.rel (0) target = $region49
    $region48: #{tpu_custom_call.1} parent=1 // pred_region
      %s124 = ssub.s32 32, 32
      %125 = vsyncadd [#allocation16], %s124
      %s126 = sshll.u32 [#allocation15], 4
      %s127 = int_to_ptr.vmem [resolvable:$true] %s126
      %132 = dma.hbm_to_vmem [thread:$0]  %s11, 32, %s127, [#allocation16], 16, 16, 1
    $region49: #{tpu_custom_call.1} parent=1 // pred_fallthru
      _
    // Predicated region
    $region50: #{tpu_custom_call.1} parent=1 // pred_check
      _
    $region51: #{tpu_custom_call.1} parent=1 // pred_check_branch
      %134 = sbr.rel (0) target = $region53
    $region52: #{tpu_custom_call.1} parent=1 // pred_region
      %s136 = ssub.s32 32, 32
      %137 = vsyncadd [#allocation16], %s136
      %s138 = sshll.u32 [#allocation17], 4
      %s139 = int_to_ptr.vmem [resolvable:$true] %s138
      %144 = dma.hbm_to_vmem [thread:$0]  %s12, 32, %s139, [#allocation16], 16, 16, 1
    $region53: #{tpu_custom_call.1} parent=1 // pred_fallthru
      _
    // Predicated region
    $region54: #{tpu_custom_call.1} parent=1 // pred_check
      _
    $region55: #{tpu_custom_call.1} parent=1 // pred_check_branch
      %146 = sbr.rel (0) target = $region57
    $region56: #{tpu_custom_call.1} parent=1 // pred_region
      _
    $region57: #{tpu_custom_call.1} parent=1 // pred_fallthru
      _
    // Predicated region
    $region58: #{tpu_custom_call.1} parent=1 // pred_check
      _
    $region59: #{tpu_custom_call.1} parent=1 // pred_check_branch
      %148 = sbr.rel (0) target = $region61
    $region60: #{tpu_custom_call.1} parent=1 // pred_region
      _
    $region61: #{tpu_custom_call.1} parent=1 // pred_fallthru
      _
    // Predicated region
    $region62: #{tpu_custom_call.1} parent=1 // pred_check
      _
    $region63: #{tpu_custom_call.1} parent=1 // pred_check_branch
      %150 = sbr.rel (0) target = $region65
    $region64: #{tpu_custom_call.1} parent=1 // pred_region
      %s152 = ssub.s32 256, 256
      %153 = vsyncadd [#allocation19], %s152
      %s154 = sshll.u32 [#allocation18], 4
      %s155 = int_to_ptr.vmem [resolvable:$true] %s154
      %160 = dma.hbm_to_vmem [thread:$0]  %s15, 256, %s155, [#allocation19], 64, 64, 4
    $region65: #{tpu_custom_call.1} parent=1 // pred_fallthru
      _
    // Predicated region
    $region66: #{tpu_custom_call.1} parent=1 // pred_check
      _
    $region67: #{tpu_custom_call.1} parent=1 // pred_check_branch
      %162 = sbr.rel (0) target = $region69
    $region68: #{tpu_custom_call.1} parent=1 // pred_region
      _
    $region69: #{tpu_custom_call.1} parent=1 // pred_fallthru
      _
    // Predicated region
    $region70: #{tpu_custom_call.1} parent=1 // pred_check
      _
    $region71: #{tpu_custom_call.1} parent=1 // pred_check_branch
      %164 = sbr.rel (0) target = $region73
    $region72: #{tpu_custom_call.1} parent=1 // pred_region
      %165 = dma.done [#allocation4], 256
    $region73: #{tpu_custom_call.1} parent=1 // pred_fallthru
      _
    // Predicated region
    $region74: #{tpu_custom_call.1} parent=1 // pred_check
      _
    $region75: #{tpu_custom_call.1} parent=1 // pred_check_branch
      %167 = sbr.rel (0) target = $region77
    $region76: #{tpu_custom_call.1} parent=1 // pred_region
      %168 = dma.done [#allocation7], 32
    $region77: #{tpu_custom_call.1} parent=1 // pred_fallthru
      _
    // Predicated region
    $region78: #{tpu_custom_call.1} parent=1 // pred_check
      _
    $region79: #{tpu_custom_call.1} parent=1 // pred_check_branch
      %170 = sbr.rel (0) target = $region81
    $region80: #{tpu_custom_call.1} parent=1 // pred_region
      %171 = dma.done [#allocation7], 32
    $region81: #{tpu_custom_call.1} parent=1 // pred_fallthru
      _
    // Predicated region
    $region82: #{tpu_custom_call.1} parent=1 // pred_check
      _
    $region83: #{tpu_custom_call.1} parent=1 // pred_check_branch
      %173 = sbr.rel (0) target = $region85
    $region84: #{tpu_custom_call.1} parent=1 // pred_region
      %174 = dma.done [#allocation10], 32
    $region85: #{tpu_custom_call.1} parent=1 // pred_fallthru
      _
    // Predicated region
    $region86: #{tpu_custom_call.1} parent=1 // pred_check
      _
    $region87: #{tpu_custom_call.1} parent=1 // pred_check_branch
      %176 = sbr.rel (0) target = $region89
    $region88: #{tpu_custom_call.1} parent=1 // pred_region
      %177 = dma.done [#allocation10], 32
    $region89: #{tpu_custom_call.1} parent=1 // pred_fallthru
      _
    // Predicated region
    $region90: #{tpu_custom_call.1} parent=1 // pred_check
      _
    $region91: #{tpu_custom_call.1} parent=1 // pred_check_branch
      %179 = sbr.rel (0) target = $region93
    $region92: #{tpu_custom_call.1} parent=1 // pred_region
      %180 = dma.done [#allocation13], 32
    $region93: #{tpu_custom_call.1} parent=1 // pred_fallthru
      _
    // Predicated region
    $region94: #{tpu_custom_call.1} parent=1 // pred_check
      _
    $region95: #{tpu_custom_call.1} parent=1 // pred_check_branch
      %182 = sbr.rel (0) target = $region97
    $region96: #{tpu_custom_call.1} parent=1 // pred_region
      %183 = dma.done [#allocation13], 32
    $region97: #{tpu_custom_call.1} parent=1 // pred_fallthru
      _
    // Predicated region
    $region98: #{tpu_custom_call.1} parent=1 // pred_check
      _
    $region99: #{tpu_custom_call.1} parent=1 // pred_check_branch
      %185 = sbr.rel (0) target = $region101
    $region100: #{tpu_custom_call.1} parent=1 // pred_region
      %186 = dma.done [#allocation16], 32
    $region101: #{tpu_custom_call.1} parent=1 // pred_fallthru
      _
    // Predicated region
    $region102: #{tpu_custom_call.1} parent=1 // pred_check
      _
    $region103: #{tpu_custom_call.1} parent=1 // pred_check_branch
      %188 = sbr.rel (0) target = $region105
    $region104: #{tpu_custom_call.1} parent=1 // pred_region
      %189 = dma.done [#allocation16], 32
    $region105: #{tpu_custom_call.1} parent=1 // pred_fallthru
      _
    // Predicated region
    $region106: #{tpu_custom_call.1} parent=1 // pred_check
      _
    $region107: #{tpu_custom_call.1} parent=1 // pred_check_branch
      %191 = sbr.rel (0) target = $region109
    $region108: #{tpu_custom_call.1} parent=1 // pred_region
      %192 = dma.done [#allocation19], 256
    $region109: #{tpu_custom_call.1} parent=1 // pred_fallthru
      _
    %v194 = vld [vmem:[#allocation3] sm:$0xff]
    %v195 = vld [vmem:[#allocation3 + $0x8] sm:$0xff]
    %v196 = vpack.c.bf16 %v195, %v194
    %v197 = vld [vmem:[%s1] sm:$0xf]
    %v198 = vld [vmem:[%s1 + $0x4] sm:$0xf]
    %v199 = vld [vmem:[%s1 + $0x8] sm:$0xf]
    %v200 = vld [vmem:[%s1 + $0xc] sm:$0xf]
    %v201 = vld [vmem:[#allocation6] sm:$0x1]
    %v203 = vlaneseq
    %v204 = vshrl.u32 %v203, 7
    %v205 = vsub.s32 0, %v204
    %v206 = vrot.slane %v201, %v205
    %v212 = vunpack.c.l.b16 %v197
    %v213 = vunpack.c.l.b16 %v198
    %v214 = vunpack.c.l.b16 %v199
    %v215 = vunpack.c.l.b16 %v200
    %v216 = vpack.c.b16 %v213, %v212
    %v217 = vpack.c.b16 %v215, %v214
    %vm220 = vcmask 261120
    %v222 = vsel %vm220, %v196, 0
    %224 = vmatprep.subr.bf16.mxu0 0
    %225 = vmatpush1.bf16.msra.mxu0 %v216
    %226 = vmatprep.subr.bf16.mxu0 0
    %227 = vmatpush1.bf16.msra.mxu0 %v217
    %228 = vmatprep.subr.bf16.mxu0 0
    %229 = vmatpush1.bf16.msra.mxu0 0
    %230 = vmatprep.subr.bf16.mxu0 0
    %231 = vmatpush1.bf16.msra.mxu0 0
    %232 = vmatprep.subr.bf16.mxu0 0
    %233 = vmatpush1.bf16.msra.mxu0 0
    %234 = vmatprep.subr.bf16.mxu0 0
    %235 = vmatpush1.bf16.msra.mxu0 0
    %236 = vmatprep.subr.bf16.mxu0 0
    %237 = vmatpush1.bf16.msra.mxu0 0
    %238 = vmatprep.subr.bf16.mxu0 0
    %239 = vmatpush1.bf16.msra.mxu0 0
    %240 = vmatprep.subr.bf16.mxu0 0
    %241 = vmatpush1.bf16.msra.mxu0 0
    %242 = vmatprep.subr.bf16.mxu0 0
    %243 = vmatpush1.bf16.msra.mxu0 0
    %244 = vmatprep.subr.bf16.mxu0 0
    %245 = vmatpush1.bf16.msra.mxu0 0
    %246 = vmatprep.subr.bf16.mxu0 0
    %247 = vmatpush1.bf16.msra.mxu0 0
    %248 = vmatprep.subr.bf16.mxu0 0
    %249 = vmatpush1.bf16.msra.mxu0 0
    %250 = vmatprep.subr.bf16.mxu0 0
    %251 = vmatpush1.bf16.msra.mxu0 0
    %252 = vmatprep.subr.bf16.mxu0 0
    %253 = vmatpush1.bf16.msra.mxu0 0
    %254 = vmatprep.subr.bf16.mxu0 0
    %255 = vmatpush1.bf16.msra.mxu0 0
    %256 = vmatprep.mubr.bf16.mxu0 0
    %257 = vmatmul.mubr.bf16.gmra.mrb[0].mxu0 %v222
    %v258 = vpop.f32.mrb[0].mxu0
    %v259 = vadd.f32 %v206, %v258
    %v260 = vpop.f32.mrb[0].mxu0
    %v261 = vpop.f32.mrb[0].mxu0
    %v262 = vadd.f32 %v206, %v261
    %v263 = vpop.f32.mrb[0].mxu0
    %264 = vdwg.mxu0
    %v265 = vpack.c.bf16 %v259, %v259
    %v266 = vpack.c.bf16 %v262, %v262
    %268 = vrot.lane.b32.xlu0 %v265, 96
    %v269 = vpop.permute.xlu0 %268
    %vm270 = vcmask 64512
    %v272 = vsel %vm270, %v265, 0
    %v275 = vsel %vm270, %v269, 0
    %277 = vmatprep.subr.bf16.mxu0 0
    %278 = vmatpush1.bf16.xpose.msra.mxu0 %v275
    %279 = vmatprep.subr.bf16.mxu0 0
    %280 = vmatpush1.bf16.xpose.msra.mxu0 0
    %281 = vmatprep.subr.bf16.mxu0 0
    %282 = vmatpush1.bf16.xpose.msra.mxu0 0
    %283 = vmatprep.subr.bf16.mxu0 0
    %284 = vmatpush1.bf16.xpose.msra.mxu0 0
    %285 = vmatprep.subr.bf16.mxu0 0
    %286 = vmatpush1.bf16.xpose.msra.mxu0 0
    %287 = vmatprep.subr.bf16.mxu0 0
    %288 = vmatpush1.bf16.xpose.msra.mxu0 0
    %289 = vmatprep.subr.bf16.mxu0 0
    %290 = vmatpush1.bf16.xpose.msra.mxu0 0
    %291 = vmatprep.subr.bf16.mxu0 0
    %292 = vmatpush1.bf16.xpose.msra.mxu0 0
    %293 = vmatprep.subr.bf16.mxu0 0
    %294 = vmatpush1.bf16.xpose.msra.mxu0 0
    %295 = vmatprep.subr.bf16.mxu0 0
    %296 = vmatpush1.bf16.xpose.msra.mxu0 0
    %297 = vmatprep.subr.bf16.mxu0 0
    %298 = vmatpush1.bf16.xpose.msra.mxu0 0
    %299 = vmatprep.subr.bf16.mxu0 0
    %300 = vmatpush1.bf16.xpose.msra.mxu0 0
    %301 = vmatprep.subr.bf16.mxu0 0
    %302 = vmatpush1.bf16.xpose.msra.mxu0 0
    %303 = vmatprep.subr.bf16.mxu0 0
    %304 = vmatpush1.bf16.xpose.msra.mxu0 0
    %305 = vmatprep.subr.bf16.mxu0 0
    %306 = vmatpush1.bf16.xpose.msra.mxu0 0
    %307 = vmatprep.subr.bf16.mxu0 0
    %308 = vmatpush1.bf16.xpose.msra.mxu0 0
    %309 = vmatprep.mubr.bf16.mxu0 0
    %310 = vmatmul.mubr.bf16.gmra.mrb[0].mxu0 %v272
    %v311 = vpop.f32.mrb[0].mxu0
    %v312 = vadd.f32 0.0, %v311
    %v313 = vpop.f32.mrb[0].mxu0
    %v314 = vpop.f32.mrb[0].mxu0
    %v315 = vpop.f32.mrb[0].mxu0
    %316 = vdwg.mxu0
    %318 = vrot.lane.b32.xlu0 %v266, 96
    %v319 = vpop.permute.xlu0 %318
    %v321 = vsel %vm270, %v266, 0
    %v324 = vsel %vm270, %v319, 0
    %326 = vmatprep.subr.bf16.mxu0 0
    %327 = vmatpush1.bf16.xpose.msra.mxu0 %v324
    %328 = vmatprep.subr.bf16.mxu0 0
    %329 = vmatpush1.bf16.xpose.msra.mxu0 0
    %330 = vmatprep.subr.bf16.mxu0 0
    %331 = vmatpush1.bf16.xpose.msra.mxu0 0
    %332 = vmatprep.subr.bf16.mxu0 0
    %333 = vmatpush1.bf16.xpose.msra.mxu0 0
    %334 = vmatprep.subr.bf16.mxu0 0
    %335 = vmatpush1.bf16.xpose.msra.mxu0 0
    %336 = vmatprep.subr.bf16.mxu0 0
    %337 = vmatpush1.bf16.xpose.msra.mxu0 0
    %338 = vmatprep.subr.bf16.mxu0 0
    %339 = vmatpush1.bf16.xpose.msra.mxu0 0
    %340 = vmatprep.subr.bf16.mxu0 0
    %341 = vmatpush1.bf16.xpose.msra.mxu0 0
    %342 = vmatprep.subr.bf16.mxu0 0
    %343 = vmatpush1.bf16.xpose.msra.mxu0 0
    %344 = vmatprep.subr.bf16.mxu0 0
    %345 = vmatpush1.bf16.xpose.msra.mxu0 0
    %346 = vmatprep.subr.bf16.mxu0 0
    %347 = vmatpush1.bf16.xpose.msra.mxu0 0
    %348 = vmatprep.subr.bf16.mxu0 0
    %349 = vmatpush1.bf16.xpose.msra.mxu0 0
    %350 = vmatprep.subr.bf16.mxu0 0
    %351 = vmatpush1.bf16.xpose.msra.mxu0 0
    %352 = vmatprep.subr.bf16.mxu0 0
    %353 = vmatpush1.bf16.xpose.msra.mxu0 0
    %354 = vmatprep.subr.bf16.mxu0 0
    %355 = vmatpush1.bf16.xpose.msra.mxu0 0
    %356 = vmatprep.subr.bf16.mxu0 0
    %357 = vmatpush1.bf16.xpose.msra.mxu0 0
    %358 = vmatprep.mubr.bf16.mxu0 0
    %359 = vmatmul.mubr.bf16.gmra.mrb[0].mxu0 %v321
    %v360 = vpop.f32.mrb[0].mxu0
    %v361 = vadd.f32 0.0, %v360
    %v362 = vpop.f32.mrb[0].mxu0
    %v363 = vpop.f32.mrb[0].mxu0
    %v364 = vpop.f32.mrb[0].mxu0
    %365 = vdwg.mxu0
    %v366 = vsel %vm270, %v312, -inf
    %367 = vmax.xlane.f32.xlu0 %v366
    %v368 = vpop.xlane.xlu0 %367
    %v369 = vsel %vm270, %v361, -inf
    %370 = vmax.xlane.f32.xlu0 %v369
    %v371 = vpop.xlane.xlu0 %370
    %v372 = vsub.f32 %v312, %v368
    %v373 = vsub.f32 %v361, %v371
    %v374 = vmul.f32 %v372, 1.442695
    %v375 = vpow.pop %v374
    %v376 = vmul.f32 %v373, 1.442695
    %v377 = vpow.pop %v376
    %v378 = vsel %vm270, %v375, 0.0
    %379 = vadd.xlane.f32.xlu0 %v378
    %v380 = vpop.xlane.xlu0 %379
    %v381 = vsel %vm270, %v377, 0.0
    %382 = vadd.xlane.f32.xlu0 %v381
    %v383 = vpop.xlane.xlu0 %382
    %v384 = vrcp.pop %v380
    %v385 = vrcp.pop %v383
    %v386 = vmul.f32 %v375, %v384
    %v387 = vmul.f32 %v377, %v385
    %v388 = vpack.c.bf16 %v386, %v386
    %v389 = vpack.c.bf16 %v387, %v387
    %390 = vrot.lane.b32.xlu0 %v265, 64
    %v391 = vpop.permute.xlu0 %390
    %v393 = vsel %vm270, %v388, 0
    %vm395 = vcmask 1043456
    %v397 = vsel %vm395, %v391, 0
    %399 = vmatprep.subr.bf16.mxu0 0
    %400 = vmatpush1.bf16.msra.mxu0 %v397
    %401 = vmatprep.subr.bf16.mxu0 0
    %402 = vmatpush1.bf16.msra.mxu0 0
    %403 = vmatprep.subr.bf16.mxu0 0
    %404 = vmatpush1.bf16.msra.mxu0 0
    %405 = vmatprep.subr.bf16.mxu0 0
    %406 = vmatpush1.bf16.msra.mxu0 0
    %407 = vmatprep.subr.bf16.mxu0 0
    %408 = vmatpush1.bf16.msra.mxu0 0
    %409 = vmatprep.subr.bf16.mxu0 0
    %410 = vmatpush1.bf16.msra.mxu0 0
    %411 = vmatprep.subr.bf16.mxu0 0
    %412 = vmatpush1.bf16.msra.mxu0 0
    %413 = vmatprep.subr.bf16.mxu0 0
    %414 = vmatpush1.bf16.msra.mxu0 0
    %415 = vmatprep.subr.bf16.mxu0 0
    %416 = vmatpush1.bf16.msra.mxu0 0
    %417 = vmatprep.subr.bf16.mxu0 0
    %418 = vmatpush1.bf16.msra.mxu0 0
    %419 = vmatprep.subr.bf16.mxu0 0
    %420 = vmatpush1.bf16.msra.mxu0 0
    %421 = vmatprep.subr.bf16.mxu0 0
    %422 = vmatpush1.bf16.msra.mxu0 0
    %423 = vmatprep.subr.bf16.mxu0 0
    %424 = vmatpush1.bf16.msra.mxu0 0
    %425 = vmatprep.subr.bf16.mxu0 0
    %426 = vmatpush1.bf16.msra.mxu0 0
    %427 = vmatprep.subr.bf16.mxu0 0
    %428 = vmatpush1.bf16.msra.mxu0 0
    %429 = vmatprep.subr.bf16.mxu0 0
    %430 = vmatpush1.bf16.msra.mxu0 0
    %431 = vmatprep.mubr.bf16.mxu0 0
    %432 = vmatmul.mubr.bf16.gmra.mrb[0].mxu0 %v393
    %v433 = vpop.f32.mrb[0].mxu0
    %v434 = vadd.f32 0.0, %v433
    %v435 = vpop.f32.mrb[0].mxu0
    %v436 = vpop.f32.mrb[0].mxu0
    %v437 = vpop.f32.mrb[0].mxu0
    %438 = vdwg.mxu0
    %439 = vrot.lane.b32.xlu0 %v266, 64
    %v440 = vpop.permute.xlu0 %439
    %v442 = vsel %vm270, %v389, 0
    %v445 = vsel %vm395, %v440, 0
    %447 = vmatprep.subr.bf16.mxu0 0
    %448 = vmatpush1.bf16.msra.mxu0 %v445
    %449 = vmatprep.subr.bf16.mxu0 0
    %450 = vmatpush1.bf16.msra.mxu0 0
    %451 = vmatprep.subr.bf16.mxu0 0
    %452 = vmatpush1.bf16.msra.mxu0 0
    %453 = vmatprep.subr.bf16.mxu0 0
    %454 = vmatpush1.bf16.msra.mxu0 0
    %455 = vmatprep.subr.bf16.mxu0 0
    %456 = vmatpush1.bf16.msra.mxu0 0
    %457 = vmatprep.subr.bf16.mxu0 0
    %458 = vmatpush1.bf16.msra.mxu0 0
    %459 = vmatprep.subr.bf16.mxu0 0
    %460 = vmatpush1.bf16.msra.mxu0 0
    %461 = vmatprep.subr.bf16.mxu0 0
    %462 = vmatpush1.bf16.msra.mxu0 0
    %463 = vmatprep.subr.bf16.mxu0 0
    %464 = vmatpush1.bf16.msra.mxu0 0
    %465 = vmatprep.subr.bf16.mxu0 0
    %466 = vmatpush1.bf16.msra.mxu0 0
    %467 = vmatprep.subr.bf16.mxu0 0
    %468 = vmatpush1.bf16.msra.mxu0 0
    %469 = vmatprep.subr.bf16.mxu0 0
    %470 = vmatpush1.bf16.msra.mxu0 0
    %471 = vmatprep.subr.bf16.mxu0 0
    %472 = vmatpush1.bf16.msra.mxu0 0
    %473 = vmatprep.subr.bf16.mxu0 0
    %474 = vmatpush1.bf16.msra.mxu0 0
    %475 = vmatprep.subr.bf16.mxu0 0
    %476 = vmatpush1.bf16.msra.mxu0 0
    %477 = vmatprep.subr.bf16.mxu0 0
    %478 = vmatpush1.bf16.msra.mxu0 0
    %479 = vmatprep.mubr.bf16.mxu0 0
    %480 = vmatmul.mubr.bf16.gmra.mrb[0].mxu0 %v442
    %v481 = vpop.f32.mrb[0].mxu0
    %v482 = vadd.f32 0.0, %v481
    %v483 = vpop.f32.mrb[0].mxu0
    %v484 = vpop.f32.mrb[0].mxu0
    %v485 = vpop.f32.mrb[0].mxu0
    %486 = vdwg.mxu0
    %487 = vst.msk [vmem:[#allocation2] sm:$0xff] %vm270, %v434
    %488 = vst.msk [vmem:[#allocation2 + $0x8] sm:$0xff] %vm270, %v482
    %489 = vrot.lane.b32.xlu0 %v265, 120
    %v490 = vpop.permute.xlu0 %489
    %491 = vrot.lane.b32.xlu0 %v265, 88
    %v492 = vpop.permute.xlu0 %491
    %v494 = vsel %vm270, %v490, 0
    %v497 = vsel %vm270, %v492, 0
    %499 = vmatprep.subr.bf16.mxu0 0
    %500 = vmatpush1.bf16.xpose.msra.mxu0 %v497
    %501 = vmatprep.subr.bf16.mxu0 0
    %502 = vmatpush1.bf16.xpose.msra.mxu0 0
    %503 = vmatprep.subr.bf16.mxu0 0
    %504 = vmatpush1.bf16.xpose.msra.mxu0 0
    %505 = vmatprep.subr.bf16.mxu0 0
    %506 = vmatpush1.bf16.xpose.msra.mxu0 0
    %507 = vmatprep.subr.bf16.mxu0 0
    %508 = vmatpush1.bf16.xpose.msra.mxu0 0
    %509 = vmatprep.subr.bf16.mxu0 0
    %510 = vmatpush1.bf16.xpose.msra.mxu0 0
    %511 = vmatprep.subr.bf16.mxu0 0
    %512 = vmatpush1.bf16.xpose.msra.mxu0 0
    %513 = vmatprep.subr.bf16.mxu0 0
    %514 = vmatpush1.bf16.xpose.msra.mxu0 0
    %515 = vmatprep.subr.bf16.mxu0 0
    %516 = vmatpush1.bf16.xpose.msra.mxu0 0
    %517 = vmatprep.subr.bf16.mxu0 0
    %518 = vmatpush1.bf16.xpose.msra.mxu0 0
    %519 = vmatprep.subr.bf16.mxu0 0
    %520 = vmatpush1.bf16.xpose.msra.mxu0 0
    %521 = vmatprep.subr.bf16.mxu0 0
    %522 = vmatpush1.bf16.xpose.msra.mxu0 0
    %523 = vmatprep.subr.bf16.mxu0 0
    %524 = vmatpush1.bf16.xpose.msra.mxu0 0
    %525 = vmatprep.subr.bf16.mxu0 0
    %526 = vmatpush1.bf16.xpose.msra.mxu0 0
    %527 = vmatprep.subr.bf16.mxu0 0
    %528 = vmatpush1.bf16.xpose.msra.mxu0 0
    %529 = vmatprep.subr.bf16.mxu0 0
    %530 = vmatpush1.bf16.xpose.msra.mxu0 0
    %531 = vmatprep.mubr.bf16.mxu0 0
    %532 = vmatmul.mubr.bf16.gmra.mrb[0].mxu0 %v494
    %v533 = vpop.f32.mrb[0].mxu0
    %v534 = vadd.f32 0.0, %v533
    %v535 = vpop.f32.mrb[0].mxu0
    %v536 = vpop.f32.mrb[0].mxu0
    %v537 = vpop.f32.mrb[0].mxu0
    %538 = vdwg.mxu0
    %539 = vrot.lane.b32.xlu0 %v266, 120
    %v540 = vpop.permute.xlu0 %539
    %541 = vrot.lane.b32.xlu0 %v266, 88
    %v542 = vpop.permute.xlu0 %541
    %v544 = vsel %vm270, %v540, 0
    %v547 = vsel %vm270, %v542, 0
    %549 = vmatprep.subr.bf16.mxu0 0
    %550 = vmatpush1.bf16.xpose.msra.mxu0 %v547
    %551 = vmatprep.subr.bf16.mxu0 0
    %552 = vmatpush1.bf16.xpose.msra.mxu0 0
    %553 = vmatprep.subr.bf16.mxu0 0
    %554 = vmatpush1.bf16.xpose.msra.mxu0 0
    %555 = vmatprep.subr.bf16.mxu0 0
    %556 = vmatpush1.bf16.xpose.msra.mxu0 0
    %557 = vmatprep.subr.bf16.mxu0 0
    %558 = vmatpush1.bf16.xpose.msra.mxu0 0
    %559 = vmatprep.subr.bf16.mxu0 0
    %560 = vmatpush1.bf16.xpose.msra.mxu0 0
    %561 = vmatprep.subr.bf16.mxu0 0
    %562 = vmatpush1.bf16.xpose.msra.mxu0 0
    %563 = vmatprep.subr.bf16.mxu0 0
    %564 = vmatpush1.bf16.xpose.msra.mxu0 0
    %565 = vmatprep.subr.bf16.mxu0 0
    %566 = vmatpush1.bf16.xpose.msra.mxu0 0
    %567 = vmatprep.subr.bf16.mxu0 0
    %568 = vmatpush1.bf16.xpose.msra.mxu0 0
    %569 = vmatprep.subr.bf16.mxu0 0
    %570 = vmatpush1.bf16.xpose.msra.mxu0 0
    %571 = vmatprep.subr.bf16.mxu0 0
    %572 = vmatpush1.bf16.xpose.msra.mxu0 0
    %573 = vmatprep.subr.bf16.mxu0 0
    %574 = vmatpush1.bf16.xpose.msra.mxu0 0
    %575 = vmatprep.subr.bf16.mxu0 0
    %576 = vmatpush1.bf16.xpose.msra.mxu0 0
    %577 = vmatprep.subr.bf16.mxu0 0
    %578 = vmatpush1.bf16.xpose.msra.mxu0 0
    %579 = vmatprep.subr.bf16.mxu0 0
    %580 = vmatpush1.bf16.xpose.msra.mxu0 0
    %581 = vmatprep.mubr.bf16.mxu0 0
    %582 = vmatmul.mubr.bf16.gmra.mrb[0].mxu0 %v544
    %v583 = vpop.f32.mrb[0].mxu0
    %v584 = vadd.f32 0.0, %v583
    %v585 = vpop.f32.mrb[0].mxu0
    %v586 = vpop.f32.mrb[0].mxu0
    %v587 = vpop.f32.mrb[0].mxu0
    %588 = vdwg.mxu0
    %v589 = vsel %vm270, %v534, -inf
    %590 = vmax.xlane.f32.xlu0 %v589
    %v591 = vpop.xlane.xlu0 %590
    %v592 = vsel %vm270, %v584, -inf
    %593 = vmax.xlane.f32.xlu0 %v592
    %v594 = vpop.xlane.xlu0 %593
    %v595 = vsub.f32 %v534, %v591
    %v596 = vsub.f32 %v584, %v594
    %v597 = vmul.f32 %v595, 1.442695
    %v598 = vpow.pop %v597
    %v599 = vmul.f32 %v596, 1.442695
    %v600 = vpow.pop %v599
    %v601 = vsel %vm270, %v598, 0.0
    %602 = vadd.xlane.f32.xlu0 %v601
    %v603 = vpop.xlane.xlu0 %602
    %v604 = vsel %vm270, %v600, 0.0
    %605 = vadd.xlane.f32.xlu0 %v604
    %v606 = vpop.xlane.xlu0 %605
    %v607 = vrcp.pop %v603
    %v608 = vrcp.pop %v606
    %v609 = vmul.f32 %v598, %v607
    %v610 = vmul.f32 %v600, %v608
    %v611 = vpack.c.bf16 %v609, %v609
    %v612 = vpack.c.bf16 %v610, %v610
    %613 = vrot.lane.b32.xlu0 %v265, 56
    %v614 = vpop.permute.xlu0 %613
    %v616 = vsel %vm270, %v611, 0
    %v619 = vsel %vm395, %v614, 0
    %621 = vmatprep.subr.bf16.mxu0 0
    %622 = vmatpush1.bf16.msra.mxu0 %v619
    %623 = vmatprep.subr.bf16.mxu0 0
    %624 = vmatpush1.bf16.msra.mxu0 0
    %625 = vmatprep.subr.bf16.mxu0 0
    %626 = vmatpush1.bf16.msra.mxu0 0
    %627 = vmatprep.subr.bf16.mxu0 0
    %628 = vmatpush1.bf16.msra.mxu0 0
    %629 = vmatprep.subr.bf16.mxu0 0
    %630 = vmatpush1.bf16.msra.mxu0 0
    %631 = vmatprep.subr.bf16.mxu0 0
    %632 = vmatpush1.bf16.msra.mxu0 0
    %633 = vmatprep.subr.bf16.mxu0 0
    %634 = vmatpush1.bf16.msra.mxu0 0
    %635 = vmatprep.subr.bf16.mxu0 0
    %636 = vmatpush1.bf16.msra.mxu0 0
    %637 = vmatprep.subr.bf16.mxu0 0
    %638 = vmatpush1.bf16.msra.mxu0 0
    %639 = vmatprep.subr.bf16.mxu0 0
    %640 = vmatpush1.bf16.msra.mxu0 0
    %641 = vmatprep.subr.bf16.mxu0 0
    %642 = vmatpush1.bf16.msra.mxu0 0
    %643 = vmatprep.subr.bf16.mxu0 0
    %644 = vmatpush1.bf16.msra.mxu0 0
    %645 = vmatprep.subr.bf16.mxu0 0
    %646 = vmatpush1.bf16.msra.mxu0 0
    %647 = vmatprep.subr.bf16.mxu0 0
    %648 = vmatpush1.bf16.msra.mxu0 0
    %649 = vmatprep.subr.bf16.mxu0 0
    %650 = vmatpush1.bf16.msra.mxu0 0
    %651 = vmatprep.subr.bf16.mxu0 0
    %652 = vmatpush1.bf16.msra.mxu0 0
    %653 = vmatprep.mubr.bf16.mxu0 0
    %654 = vmatmul.mubr.bf16.gmra.mrb[0].mxu0 %v616
    %v655 = vpop.f32.mrb[0].mxu0
    %v656 = vadd.f32 0.0, %v655
    %v657 = vpop.f32.mrb[0].mxu0
    %v658 = vpop.f32.mrb[0].mxu0
    %v659 = vpop.f32.mrb[0].mxu0
    %660 = vdwg.mxu0
    %661 = vrot.lane.b32.xlu0 %v266, 56
    %v662 = vpop.permute.xlu0 %661
    %v664 = vsel %vm270, %v612, 0
    %v667 = vsel %vm395, %v662, 0
    %669 = vmatprep.subr.bf16.mxu0 0
    %670 = vmatpush1.bf16.msra.mxu0 %v667
    %671 = vmatprep.subr.bf16.mxu0 0
    %672 = vmatpush1.bf16.msra.mxu0 0
    %673 = vmatprep.subr.bf16.mxu0 0
    %674 = vmatpush1.bf16.msra.mxu0 0
    %675 = vmatprep.subr.bf16.mxu0 0
    %676 = vmatpush1.bf16.msra.mxu0 0
    %677 = vmatprep.subr.bf16.mxu0 0
    %678 = vmatpush1.bf16.msra.mxu0 0
    %679 = vmatprep.subr.bf16.mxu0 0
    %680 = vmatpush1.bf16.msra.mxu0 0
    %681 = vmatprep.subr.bf16.mxu0 0
    %682 = vmatpush1.bf16.msra.mxu0 0
    %683 = vmatprep.subr.bf16.mxu0 0
    %684 = vmatpush1.bf16.msra.mxu0 0
    %685 = vmatprep.subr.bf16.mxu0 0
    %686 = vmatpush1.bf16.msra.mxu0 0
    %687 = vmatprep.subr.bf16.mxu0 0
    %688 = vmatpush1.bf16.msra.mxu0 0
    %689 = vmatprep.subr.bf16.mxu0 0
    %690 = vmatpush1.bf16.msra.mxu0 0
    %691 = vmatprep.subr.bf16.mxu0 0
    %692 = vmatpush1.bf16.msra.mxu0 0
    %693 = vmatprep.subr.bf16.mxu0 0
    %694 = vmatpush1.bf16.msra.mxu0 0
    %695 = vmatprep.subr.bf16.mxu0 0
    %696 = vmatpush1.bf16.msra.mxu0 0
    %697 = vmatprep.subr.bf16.mxu0 0
    %698 = vmatpush1.bf16.msra.mxu0 0
    %699 = vmatprep.subr.bf16.mxu0 0
    %700 = vmatpush1.bf16.msra.mxu0 0
    %701 = vmatprep.mubr.bf16.mxu0 0
    %702 = vmatmul.mubr.bf16.gmra.mrb[0].mxu0 %v664
    %v703 = vpop.f32.mrb[0].mxu0
    %v704 = vadd.f32 0.0, %v703
    %v705 = vpop.f32.mrb[0].mxu0
    %v706 = vpop.f32.mrb[0].mxu0
    %v707 = vpop.f32.mrb[0].mxu0
    %708 = vdwg.mxu0
    %711 = vrot.lane.b32.xlu0 %v656, 8
    %v712 = vpop.permute.xlu0 %711
    %713 = vrot.lane.b32.xlu0 %v704, 8
    %v714 = vpop.permute.xlu0 %713
    %vm717 = vcmask 130112
    %718 = vst.msk [vmem:[#allocation2] sm:$0xff] %vm717, %v712
    %719 = vst.msk [vmem:[#allocation2 + $0x8] sm:$0xff] %vm717, %v714
    %720 = vrot.lane.b32.xlu0 %v265, 112
    %v721 = vpop.permute.xlu0 %720
    %722 = vrot.lane.b32.xlu0 %v265, 80
    %v723 = vpop.permute.xlu0 %722
    %v725 = vsel %vm270, %v721, 0
    %v728 = vsel %vm270, %v723, 0
    %730 = vmatprep.subr.bf16.mxu0 0
    %731 = vmatpush1.bf16.xpose.msra.mxu0 %v728
    %732 = vmatprep.subr.bf16.mxu0 0
    %733 = vmatpush1.bf16.xpose.msra.mxu0 0
    %734 = vmatprep.subr.bf16.mxu0 0
    %735 = vmatpush1.bf16.xpose.msra.mxu0 0
    %736 = vmatprep.subr.bf16.mxu0 0
    %737 = vmatpush1.bf16.xpose.msra.mxu0 0
    %738 = vmatprep.subr.bf16.mxu0 0
    %739 = vmatpush1.bf16.xpose.msra.mxu0 0
    %740 = vmatprep.subr.bf16.mxu0 0
    %741 = vmatpush1.bf16.xpose.msra.mxu0 0
    %742 = vmatprep.subr.bf16.mxu0 0
    %743 = vmatpush1.bf16.xpose.msra.mxu0 0
    %744 = vmatprep.subr.bf16.mxu0 0
    %745 = vmatpush1.bf16.xpose.msra.mxu0 0
    %746 = vmatprep.subr.bf16.mxu0 0
    %747 = vmatpush1.bf16.xpose.msra.mxu0 0
    %748 = vmatprep.subr.bf16.mxu0 0
    %749 = vmatpush1.bf16.xpose.msra.mxu0 0
    %750 = vmatprep.subr.bf16.mxu0 0
    %751 = vmatpush1.bf16.xpose.msra.mxu0 0
    %752 = vmatprep.subr.bf16.mxu0 0
    %753 = vmatpush1.bf16.xpose.msra.mxu0 0
    %754 = vmatprep.subr.bf16.mxu0 0
    %755 = vmatpush1.bf16.xpose.msra.mxu0 0
    %756 = vmatprep.subr.bf16.mxu0 0
    %757 = vmatpush1.bf16.xpose.msra.mxu0 0
    %758 = vmatprep.subr.bf16.mxu0 0
    %759 = vmatpush1.bf16.xpose.msra.mxu0 0
    %760 = vmatprep.subr.bf16.mxu0 0
    %761 = vmatpush1.bf16.xpose.msra.mxu0 0
    %762 = vmatprep.mubr.bf16.mxu0 0
    %763 = vmatmul.mubr.bf16.gmra.mrb[0].mxu0 %v725
    %v764 = vpop.f32.mrb[0].mxu0
    %v765 = vadd.f32 0.0, %v764
    %v766 = vpop.f32.mrb[0].mxu0
    %v767 = vpop.f32.mrb[0].mxu0
    %v768 = vpop.f32.mrb[0].mxu0
    %769 = vdwg.mxu0
    %770 = vrot.lane.b32.xlu0 %v266, 112
    %v771 = vpop.permute.xlu0 %770
    %772 = vrot.lane.b32.xlu0 %v266, 80
    %v773 = vpop.permute.xlu0 %772
    %v775 = vsel %vm270, %v771, 0
    %v778 = vsel %vm270, %v773, 0
    %780 = vmatprep.subr.bf16.mxu0 0
    %781 = vmatpush1.bf16.xpose.msra.mxu0 %v778
    %782 = vmatprep.subr.bf16.mxu0 0
    %783 = vmatpush1.bf16.xpose.msra.mxu0 0
    %784 = vmatprep.subr.bf16.mxu0 0
    %785 = vmatpush1.bf16.xpose.msra.mxu0 0
    %786 = vmatprep.subr.bf16.mxu0 0
    %787 = vmatpush1.bf16.xpose.msra.mxu0 0
    %788 = vmatprep.subr.bf16.mxu0 0
    %789 = vmatpush1.bf16.xpose.msra.mxu0 0
    %790 = vmatprep.subr.bf16.mxu0 0
    %791 = vmatpush1.bf16.xpose.msra.mxu0 0
    %792 = vmatprep.subr.bf16.mxu0 0
    %793 = vmatpush1.bf16.xpose.msra.mxu0 0
    %794 = vmatprep.subr.bf16.mxu0 0
    %795 = vmatpush1.bf16.xpose.msra.mxu0 0
    %796 = vmatprep.subr.bf16.mxu0 0
    %797 = vmatpush1.bf16.xpose.msra.mxu0 0
    %798 = vmatprep.subr.bf16.mxu0 0
    %799 = vmatpush1.bf16.xpose.msra.mxu0 0
    %800 = vmatprep.subr.bf16.mxu0 0
    %801 = vmatpush1.bf16.xpose.msra.mxu0 0
    %802 = vmatprep.subr.bf16.mxu0 0
    %803 = vmatpush1.bf16.xpose.msra.mxu0 0
    %804 = vmatprep.subr.bf16.mxu0 0
    %805 = vmatpush1.bf16.xpose.msra.mxu0 0
    %806 = vmatprep.subr.bf16.mxu0 0
    %807 = vmatpush1.bf16.xpose.msra.mxu0 0
    %808 = vmatprep.subr.bf16.mxu0 0
    %809 = vmatpush1.bf16.xpose.msra.mxu0 0
    %810 = vmatprep.subr.bf16.mxu0 0
    %811 = vmatpush1.bf16.xpose.msra.mxu0 0
    %812 = vmatprep.mubr.bf16.mxu0 0
    %813 = vmatmul.mubr.bf16.gmra.mrb[0].mxu0 %v775
    %v814 = vpop.f32.mrb[0].mxu0
    %v815 = vadd.f32 0.0, %v814
    %v816 = vpop.f32.mrb[0].mxu0
    %v817 = vpop.f32.mrb[0].mxu0
    %v818 = vpop.f32.mrb[0].mxu0
    %819 = vdwg.mxu0
    %v820 = vsel %vm270, %v765, -inf
    %821 = vmax.xlane.f32.xlu0 %v820
    %v822 = vpop.xlane.xlu0 %821
    %v823 = vsel %vm270, %v815, -inf
    %824 = vmax.xlane.f32.xlu0 %v823
    %v825 = vpop.xlane.xlu0 %824
    %v826 = vsub.f32 %v765, %v822
    %v827 = vsub.f32 %v815, %v825
    %v828 = vmul.f32 %v826, 1.442695
    %v829 = vpow.pop %v828
    %v830 = vmul.f32 %v827, 1.442695
    %v831 = vpow.pop %v830
    %v832 = vsel %vm270, %v829, 0.0
    %833 = vadd.xlane.f32.xlu0 %v832
    %v834 = vpop.xlane.xlu0 %833
    %v835 = vsel %vm270, %v831, 0.0
    %836 = vadd.xlane.f32.xlu0 %v835
    %v837 = vpop.xlane.xlu0 %836
    %v838 = vrcp.pop %v834
    %v839 = vrcp.pop %v837
    %v840 = vmul.f32 %v829, %v838
    %v841 = vmul.f32 %v831, %v839
    %v842 = vpack.c.bf16 %v840, %v840
    %v843 = vpack.c.bf16 %v841, %v841
    %844 = vrot.lane.b32.xlu0 %v265, 48
    %v845 = vpop.permute.xlu0 %844
    %v847 = vsel %vm270, %v842, 0
    %v850 = vsel %vm395, %v845, 0
    %852 = vmatprep.subr.bf16.mxu0 0
    %853 = vmatpush1.bf16.msra.mxu0 %v850
    %854 = vmatprep.subr.bf16.mxu0 0
    %855 = vmatpush1.bf16.msra.mxu0 0
    %856 = vmatprep.subr.bf16.mxu0 0
    %857 = vmatpush1.bf16.msra.mxu0 0
    %858 = vmatprep.subr.bf16.mxu0 0
    %859 = vmatpush1.bf16.msra.mxu0 0
    %860 = vmatprep.subr.bf16.mxu0 0
    %861 = vmatpush1.bf16.msra.mxu0 0
    %862 = vmatprep.subr.bf16.mxu0 0
    %863 = vmatpush1.bf16.msra.mxu0 0
    %864 = vmatprep.subr.bf16.mxu0 0
    %865 = vmatpush1.bf16.msra.mxu0 0
    %866 = vmatprep.subr.bf16.mxu0 0
    %867 = vmatpush1.bf16.msra.mxu0 0
    %868 = vmatprep.subr.bf16.mxu0 0
    %869 = vmatpush1.bf16.msra.mxu0 0
    %870 = vmatprep.subr.bf16.mxu0 0
    %871 = vmatpush1.bf16.msra.mxu0 0
    %872 = vmatprep.subr.bf16.mxu0 0
    %873 = vmatpush1.bf16.msra.mxu0 0
    %874 = vmatprep.subr.bf16.mxu0 0
    %875 = vmatpush1.bf16.msra.mxu0 0
    %876 = vmatprep.subr.bf16.mxu0 0
    %877 = vmatpush1.bf16.msra.mxu0 0
    %878 = vmatprep.subr.bf16.mxu0 0
    %879 = vmatpush1.bf16.msra.mxu0 0
    %880 = vmatprep.subr.bf16.mxu0 0
    %881 = vmatpush1.bf16.msra.mxu0 0
    %882 = vmatprep.subr.bf16.mxu0 0
    %883 = vmatpush1.bf16.msra.mxu0 0
    %884 = vmatprep.mubr.bf16.mxu0 0
    %885 = vmatmul.mubr.bf16.gmra.mrb[0].mxu0 %v847
    %v886 = vpop.f32.mrb[0].mxu0
    %v887 = vadd.f32 0.0, %v886
    %v888 = vpop.f32.mrb[0].mxu0
    %v889 = vpop.f32.mrb[0].mxu0
    %v890 = vpop.f32.mrb[0].mxu0
    %891 = vdwg.mxu0
    %892 = vrot.lane.b32.xlu0 %v266, 48
    %v893 = vpop.permute.xlu0 %892
    %v895 = vsel %vm270, %v843, 0
    %v898 = vsel %vm395, %v893, 0
    %900 = vmatprep.subr.bf16.mxu0 0
    %901 = vmatpush1.bf16.msra.mxu0 %v898
    %902 = vmatprep.subr.bf16.mxu0 0
    %903 = vmatpush1.bf16.msra.mxu0 0
    %904 = vmatprep.subr.bf16.mxu0 0
    %905 = vmatpush1.bf16.msra.mxu0 0
    %906 = vmatprep.subr.bf16.mxu0 0
    %907 = vmatpush1.bf16.msra.mxu0 0
    %908 = vmatprep.subr.bf16.mxu0 0
    %909 = vmatpush1.bf16.msra.mxu0 0
    %910 = vmatprep.subr.bf16.mxu0 0
    %911 = vmatpush1.bf16.msra.mxu0 0
    %912 = vmatprep.subr.bf16.mxu0 0
    %913 = vmatpush1.bf16.msra.mxu0 0
    %914 = vmatprep.subr.bf16.mxu0 0
    %915 = vmatpush1.bf16.msra.mxu0 0
    %916 = vmatprep.subr.bf16.mxu0 0
    %917 = vmatpush1.bf16.msra.mxu0 0
    %918 = vmatprep.subr.bf16.mxu0 0
    %919 = vmatpush1.bf16.msra.mxu0 0
    %920 = vmatprep.subr.bf16.mxu0 0
    %921 = vmatpush1.bf16.msra.mxu0 0
    %922 = vmatprep.subr.bf16.mxu0 0
    %923 = vmatpush1.bf16.msra.mxu0 0
    %924 = vmatprep.subr.bf16.mxu0 0
    %925 = vmatpush1.bf16.msra.mxu0 0
    %926 = vmatprep.subr.bf16.mxu0 0
    %927 = vmatpush1.bf16.msra.mxu0 0
    %928 = vmatprep.subr.bf16.mxu0 0
    %929 = vmatpush1.bf16.msra.mxu0 0
    %930 = vmatprep.subr.bf16.mxu0 0
    %931 = vmatpush1.bf16.msra.mxu0 0
    %932 = vmatprep.mubr.bf16.mxu0 0
    %933 = vmatmul.mubr.bf16.gmra.mrb[0].mxu0 %v895
    %v934 = vpop.f32.mrb[0].mxu0
    %v935 = vadd.f32 0.0, %v934
    %v936 = vpop.f32.mrb[0].mxu0
    %v937 = vpop.f32.mrb[0].mxu0
    %v938 = vpop.f32.mrb[0].mxu0
    %939 = vdwg.mxu0
    %942 = vrot.lane.b32.xlu0 %v887, 16
    %v943 = vpop.permute.xlu0 %942
    %944 = vrot.lane.b32.xlu0 %v935, 16
    %v945 = vpop.permute.xlu0 %944
    %vm948 = vcmask 195712
    %949 = vst.msk [vmem:[#allocation2] sm:$0xff] %vm948, %v943
    %950 = vst.msk [vmem:[#allocation2 + $0x8] sm:$0xff] %vm948, %v945
    %951 = vrot.lane.b32.xlu0 %v265, 104
    %v952 = vpop.permute.xlu0 %951
    %953 = vrot.lane.b32.xlu0 %v265, 72
    %v954 = vpop.permute.xlu0 %953
    %v956 = vsel %vm270, %v952, 0
    %v959 = vsel %vm270, %v954, 0
    %961 = vmatprep.subr.bf16.mxu0 0
    %962 = vmatpush1.bf16.xpose.msra.mxu0 %v959
    %963 = vmatprep.subr.bf16.mxu0 0
    %964 = vmatpush1.bf16.xpose.msra.mxu0 0
    %965 = vmatprep.subr.bf16.mxu0 0
    %966 = vmatpush1.bf16.xpose.msra.mxu0 0
    %967 = vmatprep.subr.bf16.mxu0 0
    %968 = vmatpush1.bf16.xpose.msra.mxu0 0
    %969 = vmatprep.subr.bf16.mxu0 0
    %970 = vmatpush1.bf16.xpose.msra.mxu0 0
    %971 = vmatprep.subr.bf16.mxu0 0
    %972 = vmatpush1.bf16.xpose.msra.mxu0 0
    %973 = vmatprep.subr.bf16.mxu0 0
    %974 = vmatpush1.bf16.xpose.msra.mxu0 0
    %975 = vmatprep.subr.bf16.mxu0 0
    %976 = vmatpush1.bf16.xpose.msra.mxu0 0
    %977 = vmatprep.subr.bf16.mxu0 0
    %978 = vmatpush1.bf16.xpose.msra.mxu0 0
    %979 = vmatprep.subr.bf16.mxu0 0
    %980 = vmatpush1.bf16.xpose.msra.mxu0 0
    %981 = vmatprep.subr.bf16.mxu0 0
    %982 = vmatpush1.bf16.xpose.msra.mxu0 0
    %983 = vmatprep.subr.bf16.mxu0 0
    %984 = vmatpush1.bf16.xpose.msra.mxu0 0
    %985 = vmatprep.subr.bf16.mxu0 0
    %986 = vmatpush1.bf16.xpose.msra.mxu0 0
    %987 = vmatprep.subr.bf16.mxu0 0
    %988 = vmatpush1.bf16.xpose.msra.mxu0 0
    %989 = vmatprep.subr.bf16.mxu0 0
    %990 = vmatpush1.bf16.xpose.msra.mxu0 0
    %991 = vmatprep.subr.bf16.mxu0 0
    %992 = vmatpush1.bf16.xpose.msra.mxu0 0
    %993 = vmatprep.mubr.bf16.mxu0 0
    %994 = vmatmul.mubr.bf16.gmra.mrb[0].mxu0 %v956
    %v995 = vpop.f32.mrb[0].mxu0
    %v996 = vadd.f32 0.0, %v995
    %v997 = vpop.f32.mrb[0].mxu0
    %v998 = vpop.f32.mrb[0].mxu0
    %v999 = vpop.f32.mrb[0].mxu0
    %1000 = vdwg.mxu0
    %1001 = vrot.lane.b32.xlu0 %v266, 104
    %v1002 = vpop.permute.xlu0 %1001
    %1003 = vrot.lane.b32.xlu0 %v266, 72
    %v1004 = vpop.permute.xlu0 %1003
    %v1006 = vsel %vm270, %v1002, 0
    %v1009 = vsel %vm270, %v1004, 0
    %1011 = vmatprep.subr.bf16.mxu0 0
    %1012 = vmatpush1.bf16.xpose.msra.mxu0 %v1009
    %1013 = vmatprep.subr.bf16.mxu0 0
    %1014 = vmatpush1.bf16.xpose.msra.mxu0 0
    %1015 = vmatprep.subr.bf16.mxu0 0
    %1016 = vmatpush1.bf16.xpose.msra.mxu0 0
    %1017 = vmatprep.subr.bf16.mxu0 0
    %1018 = vmatpush1.bf16.xpose.msra.mxu0 0
    %1019 = vmatprep.subr.bf16.mxu0 0
    %1020 = vmatpush1.bf16.xpose.msra.mxu0 0
    %1021 = vmatprep.subr.bf16.mxu0 0
    %1022 = vmatpush1.bf16.xpose.msra.mxu0 0
    %1023 = vmatprep.subr.bf16.mxu0 0
    %1024 = vmatpush1.bf16.xpose.msra.mxu0 0
    %1025 = vmatprep.subr.bf16.mxu0 0
    %1026 = vmatpush1.bf16.xpose.msra.mxu0 0
    %1027 = vmatprep.subr.bf16.mxu0 0
    %1028 = vmatpush1.bf16.xpose.msra.mxu0 0
    %1029 = vmatprep.subr.bf16.mxu0 0
    %1030 = vmatpush1.bf16.xpose.msra.mxu0 0
    %1031 = vmatprep.subr.bf16.mxu0 0
    %1032 = vmatpush1.bf16.xpose.msra.mxu0 0
    %1033 = vmatprep.subr.bf16.mxu0 0
    %1034 = vmatpush1.bf16.xpose.msra.mxu0 0
    %1035 = vmatprep.subr.bf16.mxu0 0
    %1036 = vmatpush1.bf16.xpose.msra.mxu0 0
    %1037 = vmatprep.subr.bf16.mxu0 0
    %1038 = vmatpush1.bf16.xpose.msra.mxu0 0
    %1039 = vmatprep.subr.bf16.mxu0 0
    %1040 = vmatpush1.bf16.xpose.msra.mxu0 0
    %1041 = vmatprep.subr.bf16.mxu0 0
    %1042 = vmatpush1.bf16.xpose.msra.mxu0 0
    %1043 = vmatprep.mubr.bf16.mxu0 0
    %1044 = vmatmul.mubr.bf16.gmra.mrb[0].mxu0 %v1006
    %v1045 = vpop.f32.mrb[0].mxu0
    %v1046 = vadd.f32 0.0, %v1045
    %v1047 = vpop.f32.mrb[0].mxu0
    %v1048 = vpop.f32.mrb[0].mxu0
    %v1049 = vpop.f32.mrb[0].mxu0
    %1050 = vdwg.mxu0
    %v1051 = vsel %vm270, %v996, -inf
    %1052 = vmax.xlane.f32.xlu0 %v1051
    %v1053 = vpop.xlane.xlu0 %1052
    %v1054 = vsel %vm270, %v1046, -inf
    %1055 = vmax.xlane.f32.xlu0 %v1054
    %v1056 = vpop.xlane.xlu0 %1055
    %v1057 = vsub.f32 %v996, %v1053
    %v1058 = vsub.f32 %v1046, %v1056
    %v1059 = vmul.f32 %v1057, 1.442695
    %v1060 = vpow.pop %v1059
    %v1061 = vmul.f32 %v1058, 1.442695
    %v1062 = vpow.pop %v1061
    %v1063 = vsel %vm270, %v1060, 0.0
    %1064 = vadd.xlane.f32.xlu0 %v1063
    %v1065 = vpop.xlane.xlu0 %1064
    %v1066 = vsel %vm270, %v1062, 0.0
    %1067 = vadd.xlane.f32.xlu0 %v1066
    %v1068 = vpop.xlane.xlu0 %1067
    %v1069 = vrcp.pop %v1065
    %v1070 = vrcp.pop %v1068
    %v1071 = vmul.f32 %v1060, %v1069
    %v1072 = vmul.f32 %v1062, %v1070
    %v1073 = vpack.c.bf16 %v1071, %v1071
    %v1074 = vpack.c.bf16 %v1072, %v1072
    %1075 = vrot.lane.b32.xlu0 %v265, 40
    %v1076 = vpop.permute.xlu0 %1075
    %v1078 = vsel %vm270, %v1073, 0
    %v1081 = vsel %vm395, %v1076, 0
    %1083 = vmatprep.subr.bf16.mxu0 0
    %1084 = vmatpush1.bf16.msra.mxu0 %v1081
    %1085 = vmatprep.subr.bf16.mxu0 0
    %1086 = vmatpush1.bf16.msra.mxu0 0
    %1087 = vmatprep.subr.bf16.mxu0 0
    %1088 = vmatpush1.bf16.msra.mxu0 0
    %1089 = vmatprep.subr.bf16.mxu0 0
    %1090 = vmatpush1.bf16.msra.mxu0 0
    %1091 = vmatprep.subr.bf16.mxu0 0
    %1092 = vmatpush1.bf16.msra.mxu0 0
    %1093 = vmatprep.subr.bf16.mxu0 0
    %1094 = vmatpush1.bf16.msra.mxu0 0
    %1095 = vmatprep.subr.bf16.mxu0 0
    %1096 = vmatpush1.bf16.msra.mxu0 0
    %1097 = vmatprep.subr.bf16.mxu0 0
    %1098 = vmatpush1.bf16.msra.mxu0 0
    %1099 = vmatprep.subr.bf16.mxu0 0
    %1100 = vmatpush1.bf16.msra.mxu0 0
    %1101 = vmatprep.subr.bf16.mxu0 0
    %1102 = vmatpush1.bf16.msra.mxu0 0
    %1103 = vmatprep.subr.bf16.mxu0 0
    %1104 = vmatpush1.bf16.msra.mxu0 0
    %1105 = vmatprep.subr.bf16.mxu0 0
    %1106 = vmatpush1.bf16.msra.mxu0 0
    %1107 = vmatprep.subr.bf16.mxu0 0
    %1108 = vmatpush1.bf16.msra.mxu0 0
    %1109 = vmatprep.subr.bf16.mxu0 0
    %1110 = vmatpush1.bf16.msra.mxu0 0
    %1111 = vmatprep.subr.bf16.mxu0 0
    %1112 = vmatpush1.bf16.msra.mxu0 0
    %1113 = vmatprep.subr.bf16.mxu0 0
    %1114 = vmatpush1.bf16.msra.mxu0 0
    %1115 = vmatprep.mubr.bf16.mxu0 0
    %1116 = vmatmul.mubr.bf16.gmra.mrb[0].mxu0 %v1078
    %v1117 = vpop.f32.mrb[0].mxu0
    %v1118 = vadd.f32 0.0, %v1117
    %v1119 = vpop.f32.mrb[0].mxu0
    %v1120 = vpop.f32.mrb[0].mxu0
    %v1121 = vpop.f32.mrb[0].mxu0
    %1122 = vdwg.mxu0
    %1123 = vrot.lane.b32.xlu0 %v266, 40
    %v1124 = vpop.permute.xlu0 %1123
    %v1126 = vsel %vm270, %v1074, 0
    %v1129 = vsel %vm395, %v1124, 0
    %1131 = vmatprep.subr.bf16.mxu0 0
    %1132 = vmatpush1.bf16.msra.mxu0 %v1129
    %1133 = vmatprep.subr.bf16.mxu0 0
    %1134 = vmatpush1.bf16.msra.mxu0 0
    %1135 = vmatprep.subr.bf16.mxu0 0
    %1136 = vmatpush1.bf16.msra.mxu0 0
    %1137 = vmatprep.subr.bf16.mxu0 0
    %1138 = vmatpush1.bf16.msra.mxu0 0
    %1139 = vmatprep.subr.bf16.mxu0 0
    %1140 = vmatpush1.bf16.msra.mxu0 0
    %1141 = vmatprep.subr.bf16.mxu0 0
    %1142 = vmatpush1.bf16.msra.mxu0 0
    %1143 = vmatprep.subr.bf16.mxu0 0
    %1144 = vmatpush1.bf16.msra.mxu0 0
    %1145 = vmatprep.subr.bf16.mxu0 0
    %1146 = vmatpush1.bf16.msra.mxu0 0
    %1147 = vmatprep.subr.bf16.mxu0 0
    %1148 = vmatpush1.bf16.msra.mxu0 0
    %1149 = vmatprep.subr.bf16.mxu0 0
    %1150 = vmatpush1.bf16.msra.mxu0 0
    %1151 = vmatprep.subr.bf16.mxu0 0
    %1152 = vmatpush1.bf16.msra.mxu0 0
    %1153 = vmatprep.subr.bf16.mxu0 0
    %1154 = vmatpush1.bf16.msra.mxu0 0
    %1155 = vmatprep.subr.bf16.mxu0 0
    %1156 = vmatpush1.bf16.msra.mxu0 0
    %1157 = vmatprep.subr.bf16.mxu0 0
    %1158 = vmatpush1.bf16.msra.mxu0 0
    %1159 = vmatprep.subr.bf16.mxu0 0
    %1160 = vmatpush1.bf16.msra.mxu0 0
    %1161 = vmatprep.subr.bf16.mxu0 0
    %1162 = vmatpush1.bf16.msra.mxu0 0
    %1163 = vmatprep.mubr.bf16.mxu0 0
    %1164 = vmatmul.mubr.bf16.gmra.mrb[0].mxu0 %v1126
    %v1165 = vpop.f32.mrb[0].mxu0
    %v1166 = vadd.f32 0.0, %v1165
    %v1167 = vpop.f32.mrb[0].mxu0
    %v1168 = vpop.f32.mrb[0].mxu0
    %v1169 = vpop.f32.mrb[0].mxu0
    %1170 = vdwg.mxu0
    %1173 = vrot.lane.b32.xlu0 %v1118, 24
    %v1174 = vpop.permute.xlu0 %1173
    %1175 = vrot.lane.b32.xlu0 %v1166, 24
    %v1176 = vpop.permute.xlu0 %1175
    %vm1179 = vcmask 261312
    %1180 = vst.msk [vmem:[#allocation2] sm:$0xff] %vm1179, %v1174
    %1181 = vst.msk [vmem:[#allocation2 + $0x8] sm:$0xff] %vm1179, %v1176
    %v1182 = vld [vmem:[#allocation2] sm:$0xff]
    %v1183 = vld [vmem:[#allocation2 + $0x8] sm:$0xff]
    %v1184 = vpack.c.bf16 %v1183, %v1182
    %v1185 = vld [vmem:[%s3] sm:$0xf]
    %v1186 = vld [vmem:[%s3 + $0x4] sm:$0xf]
    %v1187 = vld [vmem:[%s3 + $0x8] sm:$0xf]
    %v1188 = vld [vmem:[%s3 + $0xc] sm:$0xf]
    %v1189 = vld [vmem:[#allocation8] sm:$0x1]
    %v1191 = vlaneseq
    %v1192 = vshrl.u32 %v1191, 7
    %v1193 = vsub.s32 0, %v1192
    %v1194 = vrot.slane %v1189, %v1193
    %v1200 = vunpack.c.l.b16 %v1185
    %v1201 = vunpack.c.l.b16 %v1186
    %v1202 = vunpack.c.l.b16 %v1187
    %v1203 = vunpack.c.l.b16 %v1188
    %v1204 = vpack.c.b16 %v1201, %v1200
    %v1205 = vpack.c.b16 %v1203, %v1202
    %v1209 = vsel %vm220, %v1184, 0
    %1211 = vmatprep.subr.bf16.mxu0 0
    %1212 = vmatpush1.bf16.msra.mxu0 %v1204
    %1213 = vmatprep.subr.bf16.mxu0 0
    %1214 = vmatpush1.bf16.msra.mxu0 %v1205
    %1215 = vmatprep.subr.bf16.mxu0 0
    %1216 = vmatpush1.bf16.msra.mxu0 0
    %1217 = vmatprep.subr.bf16.mxu0 0
    %1218 = vmatpush1.bf16.msra.mxu0 0
    %1219 = vmatprep.subr.bf16.mxu0 0
    %1220 = vmatpush1.bf16.msra.mxu0 0
    %1221 = vmatprep.subr.bf16.mxu0 0
    %1222 = vmatpush1.bf16.msra.mxu0 0
    %1223 = vmatprep.subr.bf16.mxu0 0
    %1224 = vmatpush1.bf16.msra.mxu0 0
    %1225 = vmatprep.subr.bf16.mxu0 0
    %1226 = vmatpush1.bf16.msra.mxu0 0
    %1227 = vmatprep.subr.bf16.mxu0 0
    %1228 = vmatpush1.bf16.msra.mxu0 0
    %1229 = vmatprep.subr.bf16.mxu0 0
    %1230 = vmatpush1.bf16.msra.mxu0 0
    %1231 = vmatprep.subr.bf16.mxu0 0
    %1232 = vmatpush1.bf16.msra.mxu0 0
    %1233 = vmatprep.subr.bf16.mxu0 0
    %1234 = vmatpush1.bf16.msra.mxu0 0
    %1235 = vmatprep.subr.bf16.mxu0 0
    %1236 = vmatpush1.bf16.msra.mxu0 0
    %1237 = vmatprep.subr.bf16.mxu0 0
    %1238 = vmatpush1.bf16.msra.mxu0 0
    %1239 = vmatprep.subr.bf16.mxu0 0
    %1240 = vmatpush1.bf16.msra.mxu0 0
    %1241 = vmatprep.subr.bf16.mxu0 0
    %1242 = vmatpush1.bf16.msra.mxu0 0
    %1243 = vmatprep.mubr.bf16.mxu0 0
    %1244 = vmatmul.mubr.bf16.gmra.mrb[0].mxu0 %v1209
    %v1245 = vpop.f32.mrb[0].mxu0
    %v1246 = vadd.f32 %v1194, %v1245
    %v1247 = vpop.f32.mrb[0].mxu0
    %v1248 = vpop.f32.mrb[0].mxu0
    %v1249 = vadd.f32 %v1194, %v1248
    %v1250 = vpop.f32.mrb[0].mxu0
    %1251 = vdwg.mxu0
    %v1252 = vadd.f32 %v194, %v1246
    %v1253 = vadd.f32 %v195, %v1249
    %v1254 = vld [vmem:[#allocation9] sm:$0x1]
    %v1255 = vld [vmem:[#allocation11] sm:$0x1]
    %v1256 = vsel %vm220, %v1252, 0.0
    %1257 = vadd.xlane.f32.xlu0 %v1256
    %v1258 = vpop.xlane.xlu0 %1257
    %v1259 = vsel %vm220, %v1253, 0.0
    %1260 = vadd.xlane.f32.xlu0 %v1259
    %v1261 = vpop.xlane.xlu0 %1260
    %v1262 = vrcp.pop 32.0
    %v1263 = vmul.f32 %v1258, %v1262
    %v1264 = vmul.f32 %v1261, %v1262
    %v1265 = vsub.f32 %v1252, %v1263
    %v1266 = vsub.f32 %v1253, %v1264
    %v1267 = vmul.f32 %v1265, %v1265
    %v1268 = vmul.f32 %v1266, %v1266
    %v1269 = vsel %vm220, %v1267, 0.0
    %1270 = vadd.xlane.f32.xlu0 %v1269
    %v1271 = vpop.xlane.xlu0 %1270
    %v1272 = vsel %vm220, %v1268, 0.0
    %1273 = vadd.xlane.f32.xlu0 %v1272
    %v1274 = vpop.xlane.xlu0 %1273
    %v1275 = vmul.f32 %v1271, %v1262
    %v1276 = vmul.f32 %v1274, %v1262
    %v1277 = vadd.f32 %v1275, 1e-05
    %v1278 = vadd.f32 %v1276, 1e-05
    %v1279 = vrsqrt.pop %v1277
    %v1280 = vrsqrt.pop %v1278
    %v1281 = vmul.f32 %v1265, %v1279
    %v1282 = vmul.f32 %v1266, %v1280
    %v1284 = vlaneseq
    %v1285 = vshrl.u32 %v1284, 7
    %v1286 = vsub.s32 0, %v1285
    %v1287 = vrot.slane %v1254, %v1286
    %v1289 = vmul.f32 %v1281, %v1287
    %v1290 = vmul.f32 %v1282, %v1287
    %v1292 = vlaneseq
    %v1293 = vshrl.u32 %v1292, 7
    %v1294 = vsub.s32 0, %v1293
    %v1295 = vrot.slane %v1255, %v1294
    %v1297 = vadd.f32 %v1289, %v1295
    %v1298 = vadd.f32 %v1290, %v1295
    %v1299 = vpack.c.bf16 %v1298, %v1297
    %v1300 = vld [vmem:[%s7] sm:$0xf]
    %v1301 = vld [vmem:[%s7 + $0x4] sm:$0xf]
    %v1302 = vld [vmem:[%s7 + $0x8] sm:$0xf]
    %v1303 = vld [vmem:[%s7 + $0xc] sm:$0xf]
    %v1304 = vld [vmem:[#allocation12] sm:$0x1]
    %v1306 = vlaneseq
    %v1307 = vshrl.u32 %v1306, 7
    %v1308 = vsub.s32 0, %v1307
    %v1309 = vrot.slane %v1304, %v1308
    %v1315 = vunpack.c.l.b16 %v1300
    %v1316 = vunpack.c.l.b16 %v1301
    %v1317 = vunpack.c.l.b16 %v1302
    %v1318 = vunpack.c.l.b16 %v1303
    %v1319 = vpack.c.b16 %v1316, %v1315
    %v1320 = vpack.c.b16 %v1318, %v1317
    %v1324 = vsel %vm220, %v1299, 0
    %1326 = vmatprep.subr.bf16.mxu0 0
    %1327 = vmatpush1.bf16.msra.mxu0 %v1319
    %1328 = vmatprep.subr.bf16.mxu0 0
    %1329 = vmatpush1.bf16.msra.mxu0 %v1320
    %1330 = vmatprep.subr.bf16.mxu0 0
    %1331 = vmatpush1.bf16.msra.mxu0 0
    %1332 = vmatprep.subr.bf16.mxu0 0
    %1333 = vmatpush1.bf16.msra.mxu0 0
    %1334 = vmatprep.subr.bf16.mxu0 0
    %1335 = vmatpush1.bf16.msra.mxu0 0
    %1336 = vmatprep.subr.bf16.mxu0 0
    %1337 = vmatpush1.bf16.msra.mxu0 0
    %1338 = vmatprep.subr.bf16.mxu0 0
    %1339 = vmatpush1.bf16.msra.mxu0 0
    %1340 = vmatprep.subr.bf16.mxu0 0
    %1341 = vmatpush1.bf16.msra.mxu0 0
    %1342 = vmatprep.subr.bf16.mxu0 0
    %1343 = vmatpush1.bf16.msra.mxu0 0
    %1344 = vmatprep.subr.bf16.mxu0 0
    %1345 = vmatpush1.bf16.msra.mxu0 0
    %1346 = vmatprep.subr.bf16.mxu0 0
    %1347 = vmatpush1.bf16.msra.mxu0 0
    %1348 = vmatprep.subr.bf16.mxu0 0
    %1349 = vmatpush1.bf16.msra.mxu0 0
    %1350 = vmatprep.subr.bf16.mxu0 0
    %1351 = vmatpush1.bf16.msra.mxu0 0
    %1352 = vmatprep.subr.bf16.mxu0 0
    %1353 = vmatpush1.bf16.msra.mxu0 0
    %1354 = vmatprep.subr.bf16.mxu0 0
    %1355 = vmatpush1.bf16.msra.mxu0 0
    %1356 = vmatprep.subr.bf16.mxu0 0
    %1357 = vmatpush1.bf16.msra.mxu0 0
    %1358 = vmatprep.mubr.bf16.mxu0 0
    %1359 = vmatmul.mubr.bf16.gmra.mrb[0].mxu0 %v1324
    %v1360 = vpop.f32.mrb[0].mxu0
    %v1361 = vadd.f32 %v1309, %v1360
    %v1362 = vpop.f32.mrb[0].mxu0
    %v1363 = vpop.f32.mrb[0].mxu0
    %v1364 = vadd.f32 %v1309, %v1363
    %v1365 = vpop.f32.mrb[0].mxu0
    %1366 = vdwg.mxu0
    %v1367 = vmax.f32 %v1361, 0.0
    %v1368 = vmax.f32 %v1364, 0.0
    %v1369 = vpack.c.bf16 %v1368, %v1367
    %v1370 = vld [vmem:[%s9] sm:$0xf]
    %v1371 = vld [vmem:[%s9 + $0x4] sm:$0xf]
    %v1372 = vld [vmem:[%s9 + $0x8] sm:$0xf]
    %v1373 = vld [vmem:[%s9 + $0xc] sm:$0xf]
    %v1374 = vld [vmem:[%s9 + $0x10] sm:$0xf]
    %v1375 = vld [vmem:[%s9 + $0x14] sm:$0xf]
    %v1376 = vld [vmem:[%s9 + $0x18] sm:$0xf]
    %v1377 = vld [vmem:[%s9 + $0x1c] sm:$0xf]
    %v1378 = vld [vmem:[#allocation14] sm:$0x1]
    %v1380 = vlaneseq
    %v1381 = vshrl.u32 %v1380, 7
    %v1382 = vsub.s32 0, %v1381
    %v1383 = vrot.slane %v1378, %v1382
    %v1393 = vunpack.c.l.b16 %v1370
    %v1394 = vunpack.c.l.b16 %v1371
    %v1395 = vunpack.c.l.b16 %v1372
    %v1396 = vunpack.c.l.b16 %v1373
    %v1397 = vunpack.c.l.b16 %v1374
    %v1398 = vunpack.c.l.b16 %v1375
    %v1399 = vunpack.c.l.b16 %v1376
    %v1400 = vunpack.c.l.b16 %v1377
    %v1401 = vpack.c.b16 %v1394, %v1393
    %v1402 = vpack.c.b16 %v1396, %v1395
    %v1403 = vpack.c.b16 %v1398, %v1397
    %v1404 = vpack.c.b16 %v1400, %v1399
    %vm1409 = vcmask 523264
    %v1411 = vsel %vm1409, %v1369, 0
    %1413 = vmatprep.subr.bf16.mxu0 0
    %1414 = vmatpush1.bf16.msra.mxu0 %v1401
    %1415 = vmatprep.subr.bf16.mxu0 0
    %1416 = vmatpush1.bf16.msra.mxu0 %v1402
    %1417 = vmatprep.subr.bf16.mxu0 0
    %1418 = vmatpush1.bf16.msra.mxu0 %v1403
    %1419 = vmatprep.subr.bf16.mxu0 0
    %1420 = vmatpush1.bf16.msra.mxu0 %v1404
    %1421 = vmatprep.subr.bf16.mxu0 0
    %1422 = vmatpush1.bf16.msra.mxu0 0
    %1423 = vmatprep.subr.bf16.mxu0 0
    %1424 = vmatpush1.bf16.msra.mxu0 0
    %1425 = vmatprep.subr.bf16.mxu0 0
    %1426 = vmatpush1.bf16.msra.mxu0 0
    %1427 = vmatprep.subr.bf16.mxu0 0
    %1428 = vmatpush1.bf16.msra.mxu0 0
    %1429 = vmatprep.subr.bf16.mxu0 0
    %1430 = vmatpush1.bf16.msra.mxu0 0
    %1431 = vmatprep.subr.bf16.mxu0 0
    %1432 = vmatpush1.bf16.msra.mxu0 0
    %1433 = vmatprep.subr.bf16.mxu0 0
    %1434 = vmatpush1.bf16.msra.mxu0 0
    %1435 = vmatprep.subr.bf16.mxu0 0
    %1436 = vmatpush1.bf16.msra.mxu0 0
    %1437 = vmatprep.subr.bf16.mxu0 0
    %1438 = vmatpush1.bf16.msra.mxu0 0
    %1439 = vmatprep.subr.bf16.mxu0 0
    %1440 = vmatpush1.bf16.msra.mxu0 0
    %1441 = vmatprep.subr.bf16.mxu0 0
    %1442 = vmatpush1.bf16.msra.mxu0 0
    %1443 = vmatprep.subr.bf16.mxu0 0
    %1444 = vmatpush1.bf16.msra.mxu0 0
    %1445 = vmatprep.mubr.bf16.mxu0 0
    %1446 = vmatmul.mubr.bf16.gmra.mrb[0].mxu0 %v1411
    %v1447 = vpop.f32.mrb[0].mxu0
    %v1448 = vadd.f32 %v1383, %v1447
    %v1449 = vpop.f32.mrb[0].mxu0
    %v1450 = vpop.f32.mrb[0].mxu0
    %v1451 = vadd.f32 %v1383, %v1450
    %v1452 = vpop.f32.mrb[0].mxu0
    %1453 = vdwg.mxu0
    %v1454 = vadd.f32 %v1297, %v1448
    %v1455 = vadd.f32 %v1298, %v1451
    %v1456 = vld [vmem:[#allocation15] sm:$0x1]
    %v1457 = vld [vmem:[#allocation17] sm:$0x1]
    %v1458 = vsel %vm220, %v1454, 0.0
    %1459 = vadd.xlane.f32.xlu0 %v1458
    %v1460 = vpop.xlane.xlu0 %1459
    %v1461 = vsel %vm220, %v1455, 0.0
    %1462 = vadd.xlane.f32.xlu0 %v1461
    %v1463 = vpop.xlane.xlu0 %1462
    %v1464 = vmul.f32 %v1460, %v1262
    %v1465 = vmul.f32 %v1463, %v1262
    %v1466 = vsub.f32 %v1454, %v1464
    %v1467 = vsub.f32 %v1455, %v1465
    %v1468 = vmul.f32 %v1466, %v1466
    %v1469 = vmul.f32 %v1467, %v1467
    %v1470 = vsel %vm220, %v1468, 0.0
    %1471 = vadd.xlane.f32.xlu0 %v1470
    %v1472 = vpop.xlane.xlu0 %1471
    %v1473 = vsel %vm220, %v1469, 0.0
    %1474 = vadd.xlane.f32.xlu0 %v1473
    %v1475 = vpop.xlane.xlu0 %1474
    %v1476 = vmul.f32 %v1472, %v1262
    %v1477 = vmul.f32 %v1475, %v1262
    %v1478 = vadd.f32 %v1476, 1e-05
    %v1479 = vadd.f32 %v1477, 1e-05
    %v1480 = vrsqrt.pop %v1478
    %v1481 = vrsqrt.pop %v1479
    %v1482 = vmul.f32 %v1466, %v1480
    %v1483 = vmul.f32 %v1467, %v1481
    %v1485 = vlaneseq
    %v1486 = vshrl.u32 %v1485, 7
    %v1487 = vsub.s32 0, %v1486
    %v1488 = vrot.slane %v1456, %v1487
    %v1490 = vmul.f32 %v1482, %v1488
    %v1491 = vmul.f32 %v1483, %v1488
    %v1493 = vlaneseq
    %v1494 = vshrl.u32 %v1493, 7
    %v1495 = vsub.s32 0, %v1494
    %v1496 = vrot.slane %v1457, %v1495
    %v1498 = vadd.f32 %v1490, %v1496
    %v1499 = vadd.f32 %v1491, %v1496
    %v1500 = vpack.c.bf16 %v1499, %v1498
    %s1501 = scalar_lea.vmem %s1, 16
    %v1502 = vld [vmem:[%s1501] sm:$0xf]
    %v1503 = vld [vmem:[%s1501 + $0x4] sm:$0xf]
    %v1504 = vld [vmem:[%s1501 + $0x8] sm:$0xf]
    %v1505 = vld [vmem:[%s1501 + $0xc] sm:$0xf]
    %s1506 = scalar_lea.vmem [#allocation6], 1
    %v1507 = vld [vmem:[%s1506] sm:$0x1]
    %v1509 = vlaneseq
    %v1510 = vshrl.u32 %v1509, 7
    %v1511 = vsub.s32 0, %v1510
    %v1512 = vrot.slane %v1507, %v1511
    %v1518 = vunpack.c.l.b16 %v1502
    %v1519 = vunpack.c.l.b16 %v1503
    %v1520 = vunpack.c.l.b16 %v1504
    %v1521 = vunpack.c.l.b16 %v1505
    %v1522 = vpack.c.b16 %v1519, %v1518
    %v1523 = vpack.c.b16 %v1521, %v1520
    %v1527 = vsel %vm220, %v1500, 0
    %1529 = vmatprep.subr.bf16.mxu0 0
    %1530 = vmatpush1.bf16.msra.mxu0 %v1522
    %1531 = vmatprep.subr.bf16.mxu0 0
    %1532 = vmatpush1.bf16.msra.mxu0 %v1523
    %1533 = vmatprep.subr.bf16.mxu0 0
    %1534 = vmatpush1.bf16.msra.mxu0 0
    %1535 = vmatprep.subr.bf16.mxu0 0
    %1536 = vmatpush1.bf16.msra.mxu0 0
    %1537 = vmatprep.subr.bf16.mxu0 0
    %1538 = vmatpush1.bf16.msra.mxu0 0
    %1539 = vmatprep.subr.bf16.mxu0 0
    %1540 = vmatpush1.bf16.msra.mxu0 0
    %1541 = vmatprep.subr.bf16.mxu0 0
    %1542 = vmatpush1.bf16.msra.mxu0 0
    %1543 = vmatprep.subr.bf16.mxu0 0
    %1544 = vmatpush1.bf16.msra.mxu0 0
    %1545 = vmatprep.subr.bf16.mxu0 0
    %1546 = vmatpush1.bf16.msra.mxu0 0
    %1547 = vmatprep.subr.bf16.mxu0 0
    %1548 = vmatpush1.bf16.msra.mxu0 0
    %1549 = vmatprep.subr.bf16.mxu0 0
    %1550 = vmatpush1.bf16.msra.mxu0 0
    %1551 = vmatprep.subr.bf16.mxu0 0
    %1552 = vmatpush1.bf16.msra.mxu0 0
    %1553 = vmatprep.subr.bf16.mxu0 0
    %1554 = vmatpush1.bf16.msra.mxu0 0
    %1555 = vmatprep.subr.bf16.mxu0 0
    %1556 = vmatpush1.bf16.msra.mxu0 0
    %1557 = vmatprep.subr.bf16.mxu0 0
    %1558 = vmatpush1.bf16.msra.mxu0 0
    %1559 = vmatprep.subr.bf16.mxu0 0
    %1560 = vmatpush1.bf16.msra.mxu0 0
    %1561 = vmatprep.mubr.bf16.mxu0 0
    %1562 = vmatmul.mubr.bf16.gmra.mrb[0].mxu0 %v1527
    %v1563 = vpop.f32.mrb[0].mxu0
    %v1564 = vadd.f32 %v1512, %v1563
    %v1565 = vpop.f32.mrb[0].mxu0
    %v1566 = vpop.f32.mrb[0].mxu0
    %v1567 = vadd.f32 %v1512, %v1566
    %v1568 = vpop.f32.mrb[0].mxu0
    %1569 = vdwg.mxu0
    %v1570 = vpack.c.bf16 %v1564, %v1564
    %v1571 = vpack.c.bf16 %v1567, %v1567
    %1573 = vrot.lane.b32.xlu0 %v1570, 96
    %v1574 = vpop.permute.xlu0 %1573
    %v1576 = vsel %vm270, %v1570, 0
    %v1579 = vsel %vm270, %v1574, 0
    %1581 = vmatprep.subr.bf16.mxu0 0
    %1582 = vmatpush1.bf16.xpose.msra.mxu0 %v1579
    %1583 = vmatprep.subr.bf16.mxu0 0
    %1584 = vmatpush1.bf16.xpose.msra.mxu0 0
    %1585 = vmatprep.subr.bf16.mxu0 0
    %1586 = vmatpush1.bf16.xpose.msra.mxu0 0
    %1587 = vmatprep.subr.bf16.mxu0 0
    %1588 = vmatpush1.bf16.xpose.msra.mxu0 0
    %1589 = vmatprep.subr.bf16.mxu0 0
    %1590 = vmatpush1.bf16.xpose.msra.mxu0 0
    %1591 = vmatprep.subr.bf16.mxu0 0
    %1592 = vmatpush1.bf16.xpose.msra.mxu0 0
    %1593 = vmatprep.subr.bf16.mxu0 0
    %1594 = vmatpush1.bf16.xpose.msra.mxu0 0
    %1595 = vmatprep.subr.bf16.mxu0 0
    %1596 = vmatpush1.bf16.xpose.msra.mxu0 0
    %1597 = vmatprep.subr.bf16.mxu0 0
    %1598 = vmatpush1.bf16.xpose.msra.mxu0 0
    %1599 = vmatprep.subr.bf16.mxu0 0
    %1600 = vmatpush1.bf16.xpose.msra.mxu0 0
    %1601 = vmatprep.subr.bf16.mxu0 0
    %1602 = vmatpush1.bf16.xpose.msra.mxu0 0
    %1603 = vmatprep.subr.bf16.mxu0 0
    %1604 = vmatpush1.bf16.xpose.msra.mxu0 0
    %1605 = vmatprep.subr.bf16.mxu0 0
    %1606 = vmatpush1.bf16.xpose.msra.mxu0 0
    %1607 = vmatprep.subr.bf16.mxu0 0
    %1608 = vmatpush1.bf16.xpose.msra.mxu0 0
    %1609 = vmatprep.subr.bf16.mxu0 0
    %1610 = vmatpush1.bf16.xpose.msra.mxu0 0
    %1611 = vmatprep.subr.bf16.mxu0 0
    %1612 = vmatpush1.bf16.xpose.msra.mxu0 0
    %1613 = vmatprep.mubr.bf16.mxu0 0
    %1614 = vmatmul.mubr.bf16.gmra.mrb[0].mxu0 %v1576
    %v1615 = vpop.f32.mrb[0].mxu0
    %v1616 = vadd.f32 0.0, %v1615
    %v1617 = vpop.f32.mrb[0].mxu0
    %v1618 = vpop.f32.mrb[0].mxu0
    %v1619 = vpop.f32.mrb[0].mxu0
    %1620 = vdwg.mxu0
    %1622 = vrot.lane.b32.xlu0 %v1571, 96
    %v1623 = vpop.permute.xlu0 %1622
    %v1625 = vsel %vm270, %v1571, 0
    %v1628 = vsel %vm270, %v1623, 0
    %1630 = vmatprep.subr.bf16.mxu0 0
    %1631 = vmatpush1.bf16.xpose.msra.mxu0 %v1628
    %1632 = vmatprep.subr.bf16.mxu0 0
    %1633 = vmatpush1.bf16.xpose.msra.mxu0 0
    %1634 = vmatprep.subr.bf16.mxu0 0
    %1635 = vmatpush1.bf16.xpose.msra.mxu0 0
    %1636 = vmatprep.subr.bf16.mxu0 0
    %1637 = vmatpush1.bf16.xpose.msra.mxu0 0
    %1638 = vmatprep.subr.bf16.mxu0 0
    %1639 = vmatpush1.bf16.xpose.msra.mxu0 0
    %1640 = vmatprep.subr.bf16.mxu0 0
    %1641 = vmatpush1.bf16.xpose.msra.mxu0 0
    %1642 = vmatprep.subr.bf16.mxu0 0
    %1643 = vmatpush1.bf16.xpose.msra.mxu0 0
    %1644 = vmatprep.subr.bf16.mxu0 0
    %1645 = vmatpush1.bf16.xpose.msra.mxu0 0
    %1646 = vmatprep.subr.bf16.mxu0 0
    %1647 = vmatpush1.bf16.xpose.msra.mxu0 0
    %1648 = vmatprep.subr.bf16.mxu0 0
    %1649 = vmatpush1.bf16.xpose.msra.mxu0 0
    %1650 = vmatprep.subr.bf16.mxu0 0
    %1651 = vmatpush1.bf16.xpose.msra.mxu0 0
    %1652 = vmatprep.subr.bf16.mxu0 0
    %1653 = vmatpush1.bf16.xpose.msra.mxu0 0
    %1654 = vmatprep.subr.bf16.mxu0 0
    %1655 = vmatpush1.bf16.xpose.msra.mxu0 0
    %1656 = vmatprep.subr.bf16.mxu0 0
    %1657 = vmatpush1.bf16.xpose.msra.mxu0 0
    %1658 = vmatprep.subr.bf16.mxu0 0
    %1659 = vmatpush1.bf16.xpose.msra.mxu0 0
    %1660 = vmatprep.subr.bf16.mxu0 0
    %1661 = vmatpush1.bf16.xpose.msra.mxu0 0
    %1662 = vmatprep.mubr.bf16.mxu0 0
    %1663 = vmatmul.mubr.bf16.gmra.mrb[0].mxu0 %v1625
    %v1664 = vpop.f32.mrb[0].mxu0
    %v1665 = vadd.f32 0.0, %v1664
    %v1666 = vpop.f32.mrb[0].mxu0
    %v1667 = vpop.f32.mrb[0].mxu0
    %v1668 = vpop.f32.mrb[0].mxu0
    %1669 = vdwg.mxu0
    %v1670 = vsel %vm270, %v1616, -inf
    %1671 = vmax.xlane.f32.xlu0 %v1670
    %v1672 = vpop.xlane.xlu0 %1671
    %v1673 = vsel %vm270, %v1665, -inf
    %1674 = vmax.xlane.f32.xlu0 %v1673
    %v1675 = vpop.xlane.xlu0 %1674
    %v1676 = vsub.f32 %v1616, %v1672
    %v1677 = vsub.f32 %v1665, %v1675
    %v1678 = vmul.f32 %v1676, 1.442695
    %v1679 = vpow.pop %v1678
    %v1680 = vmul.f32 %v1677, 1.442695
    %v1681 = vpow.pop %v1680
    %v1682 = vsel %vm270, %v1679, 0.0
    %1683 = vadd.xlane.f32.xlu0 %v1682
    %v1684 = vpop.xlane.xlu0 %1683
    %v1685 = vsel %vm270, %v1681, 0.0
    %1686 = vadd.xlane.f32.xlu0 %v1685
    %v1687 = vpop.xlane.xlu0 %1686
    %v1688 = vrcp.pop %v1684
    %v1689 = vrcp.pop %v1687
    %v1690 = vmul.f32 %v1679, %v1688
    %v1691 = vmul.f32 %v1681, %v1689
    %v1692 = vpack.c.bf16 %v1690, %v1690
    %v1693 = vpack.c.bf16 %v1691, %v1691
    %1694 = vrot.lane.b32.xlu0 %v1570, 64
    %v1695 = vpop.permute.xlu0 %1694
    %v1697 = vsel %vm270, %v1692, 0
    %v1700 = vsel %vm395, %v1695, 0
    %1702 = vmatprep.subr.bf16.mxu0 0
    %1703 = vmatpush1.bf16.msra.mxu0 %v1700
    %1704 = vmatprep.subr.bf16.mxu0 0
    %1705 = vmatpush1.bf16.msra.mxu0 0
    %1706 = vmatprep.subr.bf16.mxu0 0
    %1707 = vmatpush1.bf16.msra.mxu0 0
    %1708 = vmatprep.subr.bf16.mxu0 0
    %1709 = vmatpush1.bf16.msra.mxu0 0
    %1710 = vmatprep.subr.bf16.mxu0 0
    %1711 = vmatpush1.bf16.msra.mxu0 0
    %1712 = vmatprep.subr.bf16.mxu0 0
    %1713 = vmatpush1.bf16.msra.mxu0 0
    %1714 = vmatprep.subr.bf16.mxu0 0
    %1715 = vmatpush1.bf16.msra.mxu0 0
    %1716 = vmatprep.subr.bf16.mxu0 0
    %1717 = vmatpush1.bf16.msra.mxu0 0
    %1718 = vmatprep.subr.bf16.mxu0 0
    %1719 = vmatpush1.bf16.msra.mxu0 0
    %1720 = vmatprep.subr.bf16.mxu0 0
    %1721 = vmatpush1.bf16.msra.mxu0 0
    %1722 = vmatprep.subr.bf16.mxu0 0
    %1723 = vmatpush1.bf16.msra.mxu0 0
    %1724 = vmatprep.subr.bf16.mxu0 0
    %1725 = vmatpush1.bf16.msra.mxu0 0
    %1726 = vmatprep.subr.bf16.mxu0 0
    %1727 = vmatpush1.bf16.msra.mxu0 0
    %1728 = vmatprep.subr.bf16.mxu0 0
    %1729 = vmatpush1.bf16.msra.mxu0 0
    %1730 = vmatprep.subr.bf16.mxu0 0
    %1731 = vmatpush1.bf16.msra.mxu0 0
    %1732 = vmatprep.subr.bf16.mxu0 0
    %1733 = vmatpush1.bf16.msra.mxu0 0
    %1734 = vmatprep.mubr.bf16.mxu0 0
    %1735 = vmatmul.mubr.bf16.gmra.mrb[0].mxu0 %v1697
    %v1736 = vpop.f32.mrb[0].mxu0
    %v1737 = vadd.f32 0.0, %v1736
    %v1738 = vpop.f32.mrb[0].mxu0
    %v1739 = vpop.f32.mrb[0].mxu0
    %v1740 = vpop.f32.mrb[0].mxu0
    %1741 = vdwg.mxu0
    %1742 = vrot.lane.b32.xlu0 %v1571, 64
    %v1743 = vpop.permute.xlu0 %1742
    %v1745 = vsel %vm270, %v1693, 0
    %v1748 = vsel %vm395, %v1743, 0
    %1750 = vmatprep.subr.bf16.mxu0 0
    %1751 = vmatpush1.bf16.msra.mxu0 %v1748
    %1752 = vmatprep.subr.bf16.mxu0 0
    %1753 = vmatpush1.bf16.msra.mxu0 0
    %1754 = vmatprep.subr.bf16.mxu0 0
    %1755 = vmatpush1.bf16.msra.mxu0 0
    %1756 = vmatprep.subr.bf16.mxu0 0
    %1757 = vmatpush1.bf16.msra.mxu0 0
    %1758 = vmatprep.subr.bf16.mxu0 0
    %1759 = vmatpush1.bf16.msra.mxu0 0
    %1760 = vmatprep.subr.bf16.mxu0 0
    %1761 = vmatpush1.bf16.msra.mxu0 0
    %1762 = vmatprep.subr.bf16.mxu0 0
    %1763 = vmatpush1.bf16.msra.mxu0 0
    %1764 = vmatprep.subr.bf16.mxu0 0
    %1765 = vmatpush1.bf16.msra.mxu0 0
    %1766 = vmatprep.subr.bf16.mxu0 0
    %1767 = vmatpush1.bf16.msra.mxu0 0
    %1768 = vmatprep.subr.bf16.mxu0 0
    %1769 = vmatpush1.bf16.msra.mxu0 0
    %1770 = vmatprep.subr.bf16.mxu0 0
    %1771 = vmatpush1.bf16.msra.mxu0 0
    %1772 = vmatprep.subr.bf16.mxu0 0
    %1773 = vmatpush1.bf16.msra.mxu0 0
    %1774 = vmatprep.subr.bf16.mxu0 0
    %1775 = vmatpush1.bf16.msra.mxu0 0
    %1776 = vmatprep.subr.bf16.mxu0 0
    %1777 = vmatpush1.bf16.msra.mxu0 0
    %1778 = vmatprep.subr.bf16.mxu0 0
    %1779 = vmatpush1.bf16.msra.mxu0 0
    %1780 = vmatprep.subr.bf16.mxu0 0
    %1781 = vmatpush1.bf16.msra.mxu0 0
    %1782 = vmatprep.mubr.bf16.mxu0 0
    %1783 = vmatmul.mubr.bf16.gmra.mrb[0].mxu0 %v1745
    %v1784 = vpop.f32.mrb[0].mxu0
    %v1785 = vadd.f32 0.0, %v1784
    %v1786 = vpop.f32.mrb[0].mxu0
    %v1787 = vpop.f32.mrb[0].mxu0
    %v1788 = vpop.f32.mrb[0].mxu0
    %1789 = vdwg.mxu0
    %1790 = vst.msk [vmem:[#allocation2] sm:$0xff] %vm270, %v1737
    %1791 = vst.msk [vmem:[#allocation2 + $0x8] sm:$0xff] %vm270, %v1785
    %1792 = vrot.lane.b32.xlu0 %v1570, 120
    %v1793 = vpop.permute.xlu0 %1792
    %1794 = vrot.lane.b32.xlu0 %v1570, 88
    %v1795 = vpop.permute.xlu0 %1794
    %v1797 = vsel %vm270, %v1793, 0
    %v1800 = vsel %vm270, %v1795, 0
    %1802 = vmatprep.subr.bf16.mxu0 0
    %1803 = vmatpush1.bf16.xpose.msra.mxu0 %v1800
    %1804 = vmatprep.subr.bf16.mxu0 0
    %1805 = vmatpush1.bf16.xpose.msra.mxu0 0
    %1806 = vmatprep.subr.bf16.mxu0 0
    %1807 = vmatpush1.bf16.xpose.msra.mxu0 0
    %1808 = vmatprep.subr.bf16.mxu0 0
    %1809 = vmatpush1.bf16.xpose.msra.mxu0 0
    %1810 = vmatprep.subr.bf16.mxu0 0
    %1811 = vmatpush1.bf16.xpose.msra.mxu0 0
    %1812 = vmatprep.subr.bf16.mxu0 0
    %1813 = vmatpush1.bf16.xpose.msra.mxu0 0
    %1814 = vmatprep.subr.bf16.mxu0 0
    %1815 = vmatpush1.bf16.xpose.msra.mxu0 0
    %1816 = vmatprep.subr.bf16.mxu0 0
    %1817 = vmatpush1.bf16.xpose.msra.mxu0 0
    %1818 = vmatprep.subr.bf16.mxu0 0
    %1819 = vmatpush1.bf16.xpose.msra.mxu0 0
    %1820 = vmatprep.subr.bf16.mxu0 0
    %1821 = vmatpush1.bf16.xpose.msra.mxu0 0
    %1822 = vmatprep.subr.bf16.mxu0 0
    %1823 = vmatpush1.bf16.xpose.msra.mxu0 0
    %1824 = vmatprep.subr.bf16.mxu0 0
    %1825 = vmatpush1.bf16.xpose.msra.mxu0 0
    %1826 = vmatprep.subr.bf16.mxu0 0
    %1827 = vmatpush1.bf16.xpose.msra.mxu0 0
    %1828 = vmatprep.subr.bf16.mxu0 0
    %1829 = vmatpush1.bf16.xpose.msra.mxu0 0
    %1830 = vmatprep.subr.bf16.mxu0 0
    %1831 = vmatpush1.bf16.xpose.msra.mxu0 0
    %1832 = vmatprep.subr.bf16.mxu0 0
    %1833 = vmatpush1.bf16.xpose.msra.mxu0 0
    %1834 = vmatprep.mubr.bf16.mxu0 0
    %1835 = vmatmul.mubr.bf16.gmra.mrb[0].mxu0 %v1797
    %v1836 = vpop.f32.mrb[0].mxu0
    %v1837 = vadd.f32 0.0, %v1836
    %v1838 = vpop.f32.mrb[0].mxu0
    %v1839 = vpop.f32.mrb[0].mxu0
    %v1840 = vpop.f32.mrb[0].mxu0
    %1841 = vdwg.mxu0
    %1842 = vrot.lane.b32.xlu0 %v1571, 120
    %v1843 = vpop.permute.xlu0 %1842
    %1844 = vrot.lane.b32.xlu0 %v1571, 88
    %v1845 = vpop.permute.xlu0 %1844
    %v1847 = vsel %vm270, %v1843, 0
    %v1850 = vsel %vm270, %v1845, 0
    %1852 = vmatprep.subr.bf16.mxu0 0
    %1853 = vmatpush1.bf16.xpose.msra.mxu0 %v1850
    %1854 = vmatprep.subr.bf16.mxu0 0
    %1855 = vmatpush1.bf16.xpose.msra.mxu0 0
    %1856 = vmatprep.subr.bf16.mxu0 0
    %1857 = vmatpush1.bf16.xpose.msra.mxu0 0
    %1858 = vmatprep.subr.bf16.mxu0 0
    %1859 = vmatpush1.bf16.xpose.msra.mxu0 0
    %1860 = vmatprep.subr.bf16.mxu0 0
    %1861 = vmatpush1.bf16.xpose.msra.mxu0 0
    %1862 = vmatprep.subr.bf16.mxu0 0
    %1863 = vmatpush1.bf16.xpose.msra.mxu0 0
    %1864 = vmatprep.subr.bf16.mxu0 0
    %1865 = vmatpush1.bf16.xpose.msra.mxu0 0
    %1866 = vmatprep.subr.bf16.mxu0 0
    %1867 = vmatpush1.bf16.xpose.msra.mxu0 0
    %1868 = vmatprep.subr.bf16.mxu0 0
    %1869 = vmatpush1.bf16.xpose.msra.mxu0 0
    %1870 = vmatprep.subr.bf16.mxu0 0
    %1871 = vmatpush1.bf16.xpose.msra.mxu0 0
    %1872 = vmatprep.subr.bf16.mxu0 0
    %1873 = vmatpush1.bf16.xpose.msra.mxu0 0
    %1874 = vmatprep.subr.bf16.mxu0 0
    %1875 = vmatpush1.bf16.xpose.msra.mxu0 0
    %1876 = vmatprep.subr.bf16.mxu0 0
    %1877 = vmatpush1.bf16.xpose.msra.mxu0 0
    %1878 = vmatprep.subr.bf16.mxu0 0
    %1879 = vmatpush1.bf16.xpose.msra.mxu0 0
    %1880 = vmatprep.subr.bf16.mxu0 0
    %1881 = vmatpush1.bf16.xpose.msra.mxu0 0
    %1882 = vmatprep.subr.bf16.mxu0 0
    %1883 = vmatpush1.bf16.xpose.msra.mxu0 0
    %1884 = vmatprep.mubr.bf16.mxu0 0
    %1885 = vmatmul.mubr.bf16.gmra.mrb[0].mxu0 %v1847
    %v1886 = vpop.f32.mrb[0].mxu0
    %v1887 = vadd.f32 0.0, %v1886
    %v1888 = vpop.f32.mrb[0].mxu0
    %v1889 = vpop.f32.mrb[0].mxu0
    %v1890 = vpop.f32.mrb[0].mxu0
    %1891 = vdwg.mxu0
    %v1892 = vsel %vm270, %v1837, -inf
    %1893 = vmax.xlane.f32.xlu0 %v1892
    %v1894 = vpop.xlane.xlu0 %1893
    %v1895 = vsel %vm270, %v1887, -inf
    %1896 = vmax.xlane.f32.xlu0 %v1895
    %v1897 = vpop.xlane.xlu0 %1896
    %v1898 = vsub.f32 %v1837, %v1894
    %v1899 = vsub.f32 %v1887, %v1897
    %v1900 = vmul.f32 %v1898, 1.442695
    %v1901 = vpow.pop %v1900
    %v1902 = vmul.f32 %v1899, 1.442695
    %v1903 = vpow.pop %v1902
    %v1904 = vsel %vm270, %v1901, 0.0
    %1905 = vadd.xlane.f32.xlu0 %v1904
    %v1906 = vpop.xlane.xlu0 %1905
    %v1907 = vsel %vm270, %v1903, 0.0
    %1908 = vadd.xlane.f32.xlu0 %v1907
    %v1909 = vpop.xlane.xlu0 %1908
    %v1910 = vrcp.pop %v1906
    %v1911 = vrcp.pop %v1909
    %v1912 = vmul.f32 %v1901, %v1910
    %v1913 = vmul.f32 %v1903, %v1911
    %v1914 = vpack.c.bf16 %v1912, %v1912
    %v1915 = vpack.c.bf16 %v1913, %v1913
    %1916 = vrot.lane.b32.xlu0 %v1570, 56
    %v1917 = vpop.permute.xlu0 %1916
    %v1919 = vsel %vm270, %v1914, 0
    %v1922 = vsel %vm395, %v1917, 0
    %1924 = vmatprep.subr.bf16.mxu0 0
    %1925 = vmatpush1.bf16.msra.mxu0 %v1922
    %1926 = vmatprep.subr.bf16.mxu0 0
    %1927 = vmatpush1.bf16.msra.mxu0 0
    %1928 = vmatprep.subr.bf16.mxu0 0
    %1929 = vmatpush1.bf16.msra.mxu0 0
    %1930 = vmatprep.subr.bf16.mxu0 0
    %1931 = vmatpush1.bf16.msra.mxu0 0
    %1932 = vmatprep.subr.bf16.mxu0 0
    %1933 = vmatpush1.bf16.msra.mxu0 0
    %1934 = vmatprep.subr.bf16.mxu0 0
    %1935 = vmatpush1.bf16.msra.mxu0 0
    %1936 = vmatprep.subr.bf16.mxu0 0
    %1937 = vmatpush1.bf16.msra.mxu0 0
    %1938 = vmatprep.subr.bf16.mxu0 0
    %1939 = vmatpush1.bf16.msra.mxu0 0
    %1940 = vmatprep.subr.bf16.mxu0 0
    %1941 = vmatpush1.bf16.msra.mxu0 0
    %1942 = vmatprep.subr.bf16.mxu0 0
    %1943 = vmatpush1.bf16.msra.mxu0 0
    %1944 = vmatprep.subr.bf16.mxu0 0
    %1945 = vmatpush1.bf16.msra.mxu0 0
    %1946 = vmatprep.subr.bf16.mxu0 0
    %1947 = vmatpush1.bf16.msra.mxu0 0
    %1948 = vmatprep.subr.bf16.mxu0 0
    %1949 = vmatpush1.bf16.msra.mxu0 0
    %1950 = vmatprep.subr.bf16.mxu0 0
    %1951 = vmatpush1.bf16.msra.mxu0 0
    %1952 = vmatprep.subr.bf16.mxu0 0
    %1953 = vmatpush1.bf16.msra.mxu0 0
    %1954 = vmatprep.subr.bf16.mxu0 0
    %1955 = vmatpush1.bf16.msra.mxu0 0
    %1956 = vmatprep.mubr.bf16.mxu0 0
    %1957 = vmatmul.mubr.bf16.gmra.mrb[0].mxu0 %v1919
    %v1958 = vpop.f32.mrb[0].mxu0
    %v1959 = vadd.f32 0.0, %v1958
    %v1960 = vpop.f32.mrb[0].mxu0
    %v1961 = vpop.f32.mrb[0].mxu0
    %v1962 = vpop.f32.mrb[0].mxu0
    %1963 = vdwg.mxu0
    %1964 = vrot.lane.b32.xlu0 %v1571, 56
    %v1965 = vpop.permute.xlu0 %1964
    %v1967 = vsel %vm270, %v1915, 0
    %v1970 = vsel %vm395, %v1965, 0
    %1972 = vmatprep.subr.bf16.mxu0 0
    %1973 = vmatpush1.bf16.msra.mxu0 %v1970
    %1974 = vmatprep.subr.bf16.mxu0 0
    %1975 = vmatpush1.bf16.msra.mxu0 0
    %1976 = vmatprep.subr.bf16.mxu0 0
    %1977 = vmatpush1.bf16.msra.mxu0 0
    %1978 = vmatprep.subr.bf16.mxu0 0
    %1979 = vmatpush1.bf16.msra.mxu0 0
    %1980 = vmatprep.subr.bf16.mxu0 0
    %1981 = vmatpush1.bf16.msra.mxu0 0
    %1982 = vmatprep.subr.bf16.mxu0 0
    %1983 = vmatpush1.bf16.msra.mxu0 0
    %1984 = vmatprep.subr.bf16.mxu0 0
    %1985 = vmatpush1.bf16.msra.mxu0 0
    %1986 = vmatprep.subr.bf16.mxu0 0
    %1987 = vmatpush1.bf16.msra.mxu0 0
    %1988 = vmatprep.subr.bf16.mxu0 0
    %1989 = vmatpush1.bf16.msra.mxu0 0
    %1990 = vmatprep.subr.bf16.mxu0 0
    %1991 = vmatpush1.bf16.msra.mxu0 0
    %1992 = vmatprep.subr.bf16.mxu0 0
    %1993 = vmatpush1.bf16.msra.mxu0 0
    %1994 = vmatprep.subr.bf16.mxu0 0
    %1995 = vmatpush1.bf16.msra.mxu0 0
    %1996 = vmatprep.subr.bf16.mxu0 0
    %1997 = vmatpush1.bf16.msra.mxu0 0
    %1998 = vmatprep.subr.bf16.mxu0 0
    %1999 = vmatpush1.bf16.msra.mxu0 0
    %2000 = vmatprep.subr.bf16.mxu0 0
    %2001 = vmatpush1.bf16.msra.mxu0 0
    %2002 = vmatprep.subr.bf16.mxu0 0
    %2003 = vmatpush1.bf16.msra.mxu0 0
    %2004 = vmatprep.mubr.bf16.mxu0 0
    %2005 = vmatmul.mubr.bf16.gmra.mrb[0].mxu0 %v1967
    %v2006 = vpop.f32.mrb[0].mxu0
    %v2007 = vadd.f32 0.0, %v2006
    %v2008 = vpop.f32.mrb[0].mxu0
    %v2009 = vpop.f32.mrb[0].mxu0
    %v2010 = vpop.f32.mrb[0].mxu0
    %2011 = vdwg.mxu0
    %2014 = vrot.lane.b32.xlu0 %v1959, 8
    %v2015 = vpop.permute.xlu0 %2014
    %2016 = vrot.lane.b32.xlu0 %v2007, 8
    %v2017 = vpop.permute.xlu0 %2016
    %2020 = vst.msk [vmem:[#allocation2] sm:$0xff] %vm717, %v2015
    %2021 = vst.msk [vmem:[#allocation2 + $0x8] sm:$0xff] %vm717, %v2017
    %2022 = vrot.lane.b32.xlu0 %v1570, 112
    %v2023 = vpop.permute.xlu0 %2022
    %2024 = vrot.lane.b32.xlu0 %v1570, 80
    %v2025 = vpop.permute.xlu0 %2024
    %v2027 = vsel %vm270, %v2023, 0
    %v2030 = vsel %vm270, %v2025, 0
    %2032 = vmatprep.subr.bf16.mxu0 0
    %2033 = vmatpush1.bf16.xpose.msra.mxu0 %v2030
    %2034 = vmatprep.subr.bf16.mxu0 0
    %2035 = vmatpush1.bf16.xpose.msra.mxu0 0
    %2036 = vmatprep.subr.bf16.mxu0 0
    %2037 = vmatpush1.bf16.xpose.msra.mxu0 0
    %2038 = vmatprep.subr.bf16.mxu0 0
    %2039 = vmatpush1.bf16.xpose.msra.mxu0 0
    %2040 = vmatprep.subr.bf16.mxu0 0
    %2041 = vmatpush1.bf16.xpose.msra.mxu0 0
    %2042 = vmatprep.subr.bf16.mxu0 0
    %2043 = vmatpush1.bf16.xpose.msra.mxu0 0
    %2044 = vmatprep.subr.bf16.mxu0 0
    %2045 = vmatpush1.bf16.xpose.msra.mxu0 0
    %2046 = vmatprep.subr.bf16.mxu0 0
    %2047 = vmatpush1.bf16.xpose.msra.mxu0 0
    %2048 = vmatprep.subr.bf16.mxu0 0
    %2049 = vmatpush1.bf16.xpose.msra.mxu0 0
    %2050 = vmatprep.subr.bf16.mxu0 0
    %2051 = vmatpush1.bf16.xpose.msra.mxu0 0
    %2052 = vmatprep.subr.bf16.mxu0 0
    %2053 = vmatpush1.bf16.xpose.msra.mxu0 0
    %2054 = vmatprep.subr.bf16.mxu0 0
    %2055 = vmatpush1.bf16.xpose.msra.mxu0 0
    %2056 = vmatprep.subr.bf16.mxu0 0
    %2057 = vmatpush1.bf16.xpose.msra.mxu0 0
    %2058 = vmatprep.subr.bf16.mxu0 0
    %2059 = vmatpush1.bf16.xpose.msra.mxu0 0
    %2060 = vmatprep.subr.bf16.mxu0 0
    %2061 = vmatpush1.bf16.xpose.msra.mxu0 0
    %2062 = vmatprep.subr.bf16.mxu0 0
    %2063 = vmatpush1.bf16.xpose.msra.mxu0 0
    %2064 = vmatprep.mubr.bf16.mxu0 0
    %2065 = vmatmul.mubr.bf16.gmra.mrb[0].mxu0 %v2027
    %v2066 = vpop.f32.mrb[0].mxu0
    %v2067 = vadd.f32 0.0, %v2066
    %v2068 = vpop.f32.mrb[0].mxu0
    %v2069 = vpop.f32.mrb[0].mxu0
    %v2070 = vpop.f32.mrb[0].mxu0
    %2071 = vdwg.mxu0
    %2072 = vrot.lane.b32.xlu0 %v1571, 112
    %v2073 = vpop.permute.xlu0 %2072
    %2074 = vrot.lane.b32.xlu0 %v1571, 80
    %v2075 = vpop.permute.xlu0 %2074
    %v2077 = vsel %vm270, %v2073, 0
    %v2080 = vsel %vm270, %v2075, 0
    %2082 = vmatprep.subr.bf16.mxu0 0
    %2083 = vmatpush1.bf16.xpose.msra.mxu0 %v2080
    %2084 = vmatprep.subr.bf16.mxu0 0
    %2085 = vmatpush1.bf16.xpose.msra.mxu0 0
    %2086 = vmatprep.subr.bf16.mxu0 0
    %2087 = vmatpush1.bf16.xpose.msra.mxu0 0
    %2088 = vmatprep.subr.bf16.mxu0 0
    %2089 = vmatpush1.bf16.xpose.msra.mxu0 0
    %2090 = vmatprep.subr.bf16.mxu0 0
    %2091 = vmatpush1.bf16.xpose.msra.mxu0 0
    %2092 = vmatprep.subr.bf16.mxu0 0
    %2093 = vmatpush1.bf16.xpose.msra.mxu0 0
    %2094 = vmatprep.subr.bf16.mxu0 0
    %2095 = vmatpush1.bf16.xpose.msra.mxu0 0
    %2096 = vmatprep.subr.bf16.mxu0 0
    %2097 = vmatpush1.bf16.xpose.msra.mxu0 0
    %2098 = vmatprep.subr.bf16.mxu0 0
    %2099 = vmatpush1.bf16.xpose.msra.mxu0 0
    %2100 = vmatprep.subr.bf16.mxu0 0
    %2101 = vmatpush1.bf16.xpose.msra.mxu0 0
    %2102 = vmatprep.subr.bf16.mxu0 0
    %2103 = vmatpush1.bf16.xpose.msra.mxu0 0
    %2104 = vmatprep.subr.bf16.mxu0 0
    %2105 = vmatpush1.bf16.xpose.msra.mxu0 0
    %2106 = vmatprep.subr.bf16.mxu0 0
    %2107 = vmatpush1.bf16.xpose.msra.mxu0 0
    %2108 = vmatprep.subr.bf16.mxu0 0
    %2109 = vmatpush1.bf16.xpose.msra.mxu0 0
    %2110 = vmatprep.subr.bf16.mxu0 0
    %2111 = vmatpush1.bf16.xpose.msra.mxu0 0
    %2112 = vmatprep.subr.bf16.mxu0 0
    %2113 = vmatpush1.bf16.xpose.msra.mxu0 0
    %2114 = vmatprep.mubr.bf16.mxu0 0
    %2115 = vmatmul.mubr.bf16.gmra.mrb[0].mxu0 %v2077
    %v2116 = vpop.f32.mrb[0].mxu0
    %v2117 = vadd.f32 0.0, %v2116
    %v2118 = vpop.f32.mrb[0].mxu0
    %v2119 = vpop.f32.mrb[0].mxu0
    %v2120 = vpop.f32.mrb[0].mxu0
    %2121 = vdwg.mxu0
    %v2122 = vsel %vm270, %v2067, -inf
    %2123 = vmax.xlane.f32.xlu0 %v2122
    %v2124 = vpop.xlane.xlu0 %2123
    %v2125 = vsel %vm270, %v2117, -inf
    %2126 = vmax.xlane.f32.xlu0 %v2125
    %v2127 = vpop.xlane.xlu0 %2126
    %v2128 = vsub.f32 %v2067, %v2124
    %v2129 = vsub.f32 %v2117, %v2127
    %v2130 = vmul.f32 %v2128, 1.442695
    %v2131 = vpow.pop %v2130
    %v2132 = vmul.f32 %v2129, 1.442695
    %v2133 = vpow.pop %v2132
    %v2134 = vsel %vm270, %v2131, 0.0
    %2135 = vadd.xlane.f32.xlu0 %v2134
    %v2136 = vpop.xlane.xlu0 %2135
    %v2137 = vsel %vm270, %v2133, 0.0
    %2138 = vadd.xlane.f32.xlu0 %v2137
    %v2139 = vpop.xlane.xlu0 %2138
    %v2140 = vrcp.pop %v2136
    %v2141 = vrcp.pop %v2139
    %v2142 = vmul.f32 %v2131, %v2140
    %v2143 = vmul.f32 %v2133, %v2141
    %v2144 = vpack.c.bf16 %v2142, %v2142
    %v2145 = vpack.c.bf16 %v2143, %v2143
    %2146 = vrot.lane.b32.xlu0 %v1570, 48
    %v2147 = vpop.permute.xlu0 %2146
    %v2149 = vsel %vm270, %v2144, 0
    %v2152 = vsel %vm395, %v2147, 0
    %2154 = vmatprep.subr.bf16.mxu0 0
    %2155 = vmatpush1.bf16.msra.mxu0 %v2152
    %2156 = vmatprep.subr.bf16.mxu0 0
    %2157 = vmatpush1.bf16.msra.mxu0 0
    %2158 = vmatprep.subr.bf16.mxu0 0
    %2159 = vmatpush1.bf16.msra.mxu0 0
    %2160 = vmatprep.subr.bf16.mxu0 0
    %2161 = vmatpush1.bf16.msra.mxu0 0
    %2162 = vmatprep.subr.bf16.mxu0 0
    %2163 = vmatpush1.bf16.msra.mxu0 0
    %2164 = vmatprep.subr.bf16.mxu0 0
    %2165 = vmatpush1.bf16.msra.mxu0 0
    %2166 = vmatprep.subr.bf16.mxu0 0
    %2167 = vmatpush1.bf16.msra.mxu0 0
    %2168 = vmatprep.subr.bf16.mxu0 0
    %2169 = vmatpush1.bf16.msra.mxu0 0
    %2170 = vmatprep.subr.bf16.mxu0 0
    %2171 = vmatpush1.bf16.msra.mxu0 0
    %2172 = vmatprep.subr.bf16.mxu0 0
    %2173 = vmatpush1.bf16.msra.mxu0 0
    %2174 = vmatprep.subr.bf16.mxu0 0
    %2175 = vmatpush1.bf16.msra.mxu0 0
    %2176 = vmatprep.subr.bf16.mxu0 0
    %2177 = vmatpush1.bf16.msra.mxu0 0
    %2178 = vmatprep.subr.bf16.mxu0 0
    %2179 = vmatpush1.bf16.msra.mxu0 0
    %2180 = vmatprep.subr.bf16.mxu0 0
    %2181 = vmatpush1.bf16.msra.mxu0 0
    %2182 = vmatprep.subr.bf16.mxu0 0
    %2183 = vmatpush1.bf16.msra.mxu0 0
    %2184 = vmatprep.subr.bf16.mxu0 0
    %2185 = vmatpush1.bf16.msra.mxu0 0
    %2186 = vmatprep.mubr.bf16.mxu0 0
    %2187 = vmatmul.mubr.bf16.gmra.mrb[0].mxu0 %v2149
    %v2188 = vpop.f32.mrb[0].mxu0
    %v2189 = vadd.f32 0.0, %v2188
    %v2190 = vpop.f32.mrb[0].mxu0
    %v2191 = vpop.f32.mrb[0].mxu0
    %v2192 = vpop.f32.mrb[0].mxu0
    %2193 = vdwg.mxu0
    %2194 = vrot.lane.b32.xlu0 %v1571, 48
    %v2195 = vpop.permute.xlu0 %2194
    %v2197 = vsel %vm270, %v2145, 0
    %v2200 = vsel %vm395, %v2195, 0
    %2202 = vmatprep.subr.bf16.mxu0 0
    %2203 = vmatpush1.bf16.msra.mxu0 %v2200
    %2204 = vmatprep.subr.bf16.mxu0 0
    %2205 = vmatpush1.bf16.msra.mxu0 0
    %2206 = vmatprep.subr.bf16.mxu0 0
    %2207 = vmatpush1.bf16.msra.mxu0 0
    %2208 = vmatprep.subr.bf16.mxu0 0
    %2209 = vmatpush1.bf16.msra.mxu0 0
    %2210 = vmatprep.subr.bf16.mxu0 0
    %2211 = vmatpush1.bf16.msra.mxu0 0
    %2212 = vmatprep.subr.bf16.mxu0 0
    %2213 = vmatpush1.bf16.msra.mxu0 0
    %2214 = vmatprep.subr.bf16.mxu0 0
    %2215 = vmatpush1.bf16.msra.mxu0 0
    %2216 = vmatprep.subr.bf16.mxu0 0
    %2217 = vmatpush1.bf16.msra.mxu0 0
    %2218 = vmatprep.subr.bf16.mxu0 0
    %2219 = vmatpush1.bf16.msra.mxu0 0
    %2220 = vmatprep.subr.bf16.mxu0 0
    %2221 = vmatpush1.bf16.msra.mxu0 0
    %2222 = vmatprep.subr.bf16.mxu0 0
    %2223 = vmatpush1.bf16.msra.mxu0 0
    %2224 = vmatprep.subr.bf16.mxu0 0
    %2225 = vmatpush1.bf16.msra.mxu0 0
    %2226 = vmatprep.subr.bf16.mxu0 0
    %2227 = vmatpush1.bf16.msra.mxu0 0
    %2228 = vmatprep.subr.bf16.mxu0 0
    %2229 = vmatpush1.bf16.msra.mxu0 0
    %2230 = vmatprep.subr.bf16.mxu0 0
    %2231 = vmatpush1.bf16.msra.mxu0 0
    %2232 = vmatprep.subr.bf16.mxu0 0
    %2233 = vmatpush1.bf16.msra.mxu0 0
    %2234 = vmatprep.mubr.bf16.mxu0 0
    %2235 = vmatmul.mubr.bf16.gmra.mrb[0].mxu0 %v2197
    %v2236 = vpop.f32.mrb[0].mxu0
    %v2237 = vadd.f32 0.0, %v2236
    %v2238 = vpop.f32.mrb[0].mxu0
    %v2239 = vpop.f32.mrb[0].mxu0
    %v2240 = vpop.f32.mrb[0].mxu0
    %2241 = vdwg.mxu0
    %2244 = vrot.lane.b32.xlu0 %v2189, 16
    %v2245 = vpop.permute.xlu0 %2244
    %2246 = vrot.lane.b32.xlu0 %v2237, 16
    %v2247 = vpop.permute.xlu0 %2246
    %2250 = vst.msk [vmem:[#allocation2] sm:$0xff] %vm948, %v2245
    %2251 = vst.msk [vmem:[#allocation2 + $0x8] sm:$0xff] %vm948, %v2247
    %2252 = vrot.lane.b32.xlu0 %v1570, 104
    %v2253 = vpop.permute.xlu0 %2252
    %2254 = vrot.lane.b32.xlu0 %v1570, 72
    %v2255 = vpop.permute.xlu0 %2254
    %v2257 = vsel %vm270, %v2253, 0
    %v2260 = vsel %vm270, %v2255, 0
    %2262 = vmatprep.subr.bf16.mxu0 0
    %2263 = vmatpush1.bf16.xpose.msra.mxu0 %v2260
    %2264 = vmatprep.subr.bf16.mxu0 0
    %2265 = vmatpush1.bf16.xpose.msra.mxu0 0
    %2266 = vmatprep.subr.bf16.mxu0 0
    %2267 = vmatpush1.bf16.xpose.msra.mxu0 0
    %2268 = vmatprep.subr.bf16.mxu0 0
    %2269 = vmatpush1.bf16.xpose.msra.mxu0 0
    %2270 = vmatprep.subr.bf16.mxu0 0
    %2271 = vmatpush1.bf16.xpose.msra.mxu0 0
    %2272 = vmatprep.subr.bf16.mxu0 0
    %2273 = vmatpush1.bf16.xpose.msra.mxu0 0
    %2274 = vmatprep.subr.bf16.mxu0 0
    %2275 = vmatpush1.bf16.xpose.msra.mxu0 0
    %2276 = vmatprep.subr.bf16.mxu0 0
    %2277 = vmatpush1.bf16.xpose.msra.mxu0 0
    %2278 = vmatprep.subr.bf16.mxu0 0
    %2279 = vmatpush1.bf16.xpose.msra.mxu0 0
    %2280 = vmatprep.subr.bf16.mxu0 0
    %2281 = vmatpush1.bf16.xpose.msra.mxu0 0
    %2282 = vmatprep.subr.bf16.mxu0 0
    %2283 = vmatpush1.bf16.xpose.msra.mxu0 0
    %2284 = vmatprep.subr.bf16.mxu0 0
    %2285 = vmatpush1.bf16.xpose.msra.mxu0 0
    %2286 = vmatprep.subr.bf16.mxu0 0
    %2287 = vmatpush1.bf16.xpose.msra.mxu0 0
    %2288 = vmatprep.subr.bf16.mxu0 0
    %2289 = vmatpush1.bf16.xpose.msra.mxu0 0
    %2290 = vmatprep.subr.bf16.mxu0 0
    %2291 = vmatpush1.bf16.xpose.msra.mxu0 0
    %2292 = vmatprep.subr.bf16.mxu0 0
    %2293 = vmatpush1.bf16.xpose.msra.mxu0 0
    %2294 = vmatprep.mubr.bf16.mxu0 0
    %2295 = vmatmul.mubr.bf16.gmra.mrb[0].mxu0 %v2257
    %v2296 = vpop.f32.mrb[0].mxu0
    %v2297 = vadd.f32 0.0, %v2296
    %v2298 = vpop.f32.mrb[0].mxu0
    %v2299 = vpop.f32.mrb[0].mxu0
    %v2300 = vpop.f32.mrb[0].mxu0
    %2301 = vdwg.mxu0
    %2302 = vrot.lane.b32.xlu0 %v1571, 104
    %v2303 = vpop.permute.xlu0 %2302
    %2304 = vrot.lane.b32.xlu0 %v1571, 72
    %v2305 = vpop.permute.xlu0 %2304
    %v2307 = vsel %vm270, %v2303, 0
    %v2310 = vsel %vm270, %v2305, 0
    %2312 = vmatprep.subr.bf16.mxu0 0
    %2313 = vmatpush1.bf16.xpose.msra.mxu0 %v2310
    %2314 = vmatprep.subr.bf16.mxu0 0
    %2315 = vmatpush1.bf16.xpose.msra.mxu0 0
    %2316 = vmatprep.subr.bf16.mxu0 0
    %2317 = vmatpush1.bf16.xpose.msra.mxu0 0
    %2318 = vmatprep.subr.bf16.mxu0 0
    %2319 = vmatpush1.bf16.xpose.msra.mxu0 0
    %2320 = vmatprep.subr.bf16.mxu0 0
    %2321 = vmatpush1.bf16.xpose.msra.mxu0 0
    %2322 = vmatprep.subr.bf16.mxu0 0
    %2323 = vmatpush1.bf16.xpose.msra.mxu0 0
    %2324 = vmatprep.subr.bf16.mxu0 0
    %2325 = vmatpush1.bf16.xpose.msra.mxu0 0
    %2326 = vmatprep.subr.bf16.mxu0 0
    %2327 = vmatpush1.bf16.xpose.msra.mxu0 0
    %2328 = vmatprep.subr.bf16.mxu0 0
    %2329 = vmatpush1.bf16.xpose.msra.mxu0 0
    %2330 = vmatprep.subr.bf16.mxu0 0
    %2331 = vmatpush1.bf16.xpose.msra.mxu0 0
    %2332 = vmatprep.subr.bf16.mxu0 0
    %2333 = vmatpush1.bf16.xpose.msra.mxu0 0
    %2334 = vmatprep.subr.bf16.mxu0 0
    %2335 = vmatpush1.bf16.xpose.msra.mxu0 0
    %2336 = vmatprep.subr.bf16.mxu0 0
    %2337 = vmatpush1.bf16.xpose.msra.mxu0 0
    %2338 = vmatprep.subr.bf16.mxu0 0
    %2339 = vmatpush1.bf16.xpose.msra.mxu0 0
    %2340 = vmatprep.subr.bf16.mxu0 0
    %2341 = vmatpush1.bf16.xpose.msra.mxu0 0
    %2342 = vmatprep.subr.bf16.mxu0 0
    %2343 = vmatpush1.bf16.xpose.msra.mxu0 0
    %2344 = vmatprep.mubr.bf16.mxu0 0
    %2345 = vmatmul.mubr.bf16.gmra.mrb[0].mxu0 %v2307
    %v2346 = vpop.f32.mrb[0].mxu0
    %v2347 = vadd.f32 0.0, %v2346
    %v2348 = vpop.f32.mrb[0].mxu0
    %v2349 = vpop.f32.mrb[0].mxu0
    %v2350 = vpop.f32.mrb[0].mxu0
    %2351 = vdwg.mxu0
    %v2352 = vsel %vm270, %v2297, -inf
    %2353 = vmax.xlane.f32.xlu0 %v2352
    %v2354 = vpop.xlane.xlu0 %2353
    %v2355 = vsel %vm270, %v2347, -inf
    %2356 = vmax.xlane.f32.xlu0 %v2355
    %v2357 = vpop.xlane.xlu0 %2356
    %v2358 = vsub.f32 %v2297, %v2354
    %v2359 = vsub.f32 %v2347, %v2357
    %v2360 = vmul.f32 %v2358, 1.442695
    %v2361 = vpow.pop %v2360
    %v2362 = vmul.f32 %v2359, 1.442695
    %v2363 = vpow.pop %v2362
    %v2364 = vsel %vm270, %v2361, 0.0
    %2365 = vadd.xlane.f32.xlu0 %v2364
    %v2366 = vpop.xlane.xlu0 %2365
    %v2367 = vsel %vm270, %v2363, 0.0
    %2368 = vadd.xlane.f32.xlu0 %v2367
    %v2369 = vpop.xlane.xlu0 %2368
    %v2370 = vrcp.pop %v2366
    %v2371 = vrcp.pop %v2369
    %v2372 = vmul.f32 %v2361, %v2370
    %v2373 = vmul.f32 %v2363, %v2371
    %v2374 = vpack.c.bf16 %v2372, %v2372
    %v2375 = vpack.c.bf16 %v2373, %v2373
    %2376 = vrot.lane.b32.xlu0 %v1570, 40
    %v2377 = vpop.permute.xlu0 %2376
    %v2379 = vsel %vm270, %v2374, 0
    %v2382 = vsel %vm395, %v2377, 0
    %2384 = vmatprep.subr.bf16.mxu0 0
    %2385 = vmatpush1.bf16.msra.mxu0 %v2382
    %2386 = vmatprep.subr.bf16.mxu0 0
    %2387 = vmatpush1.bf16.msra.mxu0 0
    %2388 = vmatprep.subr.bf16.mxu0 0
    %2389 = vmatpush1.bf16.msra.mxu0 0
    %2390 = vmatprep.subr.bf16.mxu0 0
    %2391 = vmatpush1.bf16.msra.mxu0 0
    %2392 = vmatprep.subr.bf16.mxu0 0
    %2393 = vmatpush1.bf16.msra.mxu0 0
    %2394 = vmatprep.subr.bf16.mxu0 0
    %2395 = vmatpush1.bf16.msra.mxu0 0
    %2396 = vmatprep.subr.bf16.mxu0 0
    %2397 = vmatpush1.bf16.msra.mxu0 0
    %2398 = vmatprep.subr.bf16.mxu0 0
    %2399 = vmatpush1.bf16.msra.mxu0 0
    %2400 = vmatprep.subr.bf16.mxu0 0
    %2401 = vmatpush1.bf16.msra.mxu0 0
    %2402 = vmatprep.subr.bf16.mxu0 0
    %2403 = vmatpush1.bf16.msra.mxu0 0
    %2404 = vmatprep.subr.bf16.mxu0 0
    %2405 = vmatpush1.bf16.msra.mxu0 0
    %2406 = vmatprep.subr.bf16.mxu0 0
    %2407 = vmatpush1.bf16.msra.mxu0 0
    %2408 = vmatprep.subr.bf16.mxu0 0
    %2409 = vmatpush1.bf16.msra.mxu0 0
    %2410 = vmatprep.subr.bf16.mxu0 0
    %2411 = vmatpush1.bf16.msra.mxu0 0
    %2412 = vmatprep.subr.bf16.mxu0 0
    %2413 = vmatpush1.bf16.msra.mxu0 0
    %2414 = vmatprep.subr.bf16.mxu0 0
    %2415 = vmatpush1.bf16.msra.mxu0 0
    %2416 = vmatprep.mubr.bf16.mxu0 0
    %2417 = vmatmul.mubr.bf16.gmra.mrb[0].mxu0 %v2379
    %v2418 = vpop.f32.mrb[0].mxu0
    %v2419 = vadd.f32 0.0, %v2418
    %v2420 = vpop.f32.mrb[0].mxu0
    %v2421 = vpop.f32.mrb[0].mxu0
    %v2422 = vpop.f32.mrb[0].mxu0
    %2423 = vdwg.mxu0
    %2424 = vrot.lane.b32.xlu0 %v1571, 40
    %v2425 = vpop.permute.xlu0 %2424
    %v2427 = vsel %vm270, %v2375, 0
    %v2430 = vsel %vm395, %v2425, 0
    %2432 = vmatprep.subr.bf16.mxu0 0
    %2433 = vmatpush1.bf16.msra.mxu0 %v2430
    %2434 = vmatprep.subr.bf16.mxu0 0
    %2435 = vmatpush1.bf16.msra.mxu0 0
    %2436 = vmatprep.subr.bf16.mxu0 0
    %2437 = vmatpush1.bf16.msra.mxu0 0
    %2438 = vmatprep.subr.bf16.mxu0 0
    %2439 = vmatpush1.bf16.msra.mxu0 0
    %2440 = vmatprep.subr.bf16.mxu0 0
    %2441 = vmatpush1.bf16.msra.mxu0 0
    %2442 = vmatprep.subr.bf16.mxu0 0
    %2443 = vmatpush1.bf16.msra.mxu0 0
    %2444 = vmatprep.subr.bf16.mxu0 0
    %2445 = vmatpush1.bf16.msra.mxu0 0
    %2446 = vmatprep.subr.bf16.mxu0 0
    %2447 = vmatpush1.bf16.msra.mxu0 0
    %2448 = vmatprep.subr.bf16.mxu0 0
    %2449 = vmatpush1.bf16.msra.mxu0 0
    %2450 = vmatprep.subr.bf16.mxu0 0
    %2451 = vmatpush1.bf16.msra.mxu0 0
    %2452 = vmatprep.subr.bf16.mxu0 0
    %2453 = vmatpush1.bf16.msra.mxu0 0
    %2454 = vmatprep.subr.bf16.mxu0 0
    %2455 = vmatpush1.bf16.msra.mxu0 0
    %2456 = vmatprep.subr.bf16.mxu0 0
    %2457 = vmatpush1.bf16.msra.mxu0 0
    %2458 = vmatprep.subr.bf16.mxu0 0
    %2459 = vmatpush1.bf16.msra.mxu0 0
    %2460 = vmatprep.subr.bf16.mxu0 0
    %2461 = vmatpush1.bf16.msra.mxu0 0
    %2462 = vmatprep.subr.bf16.mxu0 0
    %2463 = vmatpush1.bf16.msra.mxu0 0
    %2464 = vmatprep.mubr.bf16.mxu0 0
    %2465 = vmatmul.mubr.bf16.gmra.mrb[0].mxu0 %v2427
    %v2466 = vpop.f32.mrb[0].mxu0
    %v2467 = vadd.f32 0.0, %v2466
    %v2468 = vpop.f32.mrb[0].mxu0
    %v2469 = vpop.f32.mrb[0].mxu0
    %v2470 = vpop.f32.mrb[0].mxu0
    %2471 = vdwg.mxu0
    %2474 = vrot.lane.b32.xlu0 %v2419, 24
    %v2475 = vpop.permute.xlu0 %2474
    %2476 = vrot.lane.b32.xlu0 %v2467, 24
    %v2477 = vpop.permute.xlu0 %2476
    %2480 = vst.msk [vmem:[#allocation2] sm:$0xff] %vm1179, %v2475
    %2481 = vst.msk [vmem:[#allocation2 + $0x8] sm:$0xff] %vm1179, %v2477
    %v2482 = vld [vmem:[#allocation2] sm:$0xff]
    %v2483 = vld [vmem:[#allocation2 + $0x8] sm:$0xff]
    %v2484 = vpack.c.bf16 %v2483, %v2482
    %s2485 = scalar_lea.vmem %s3, 16
    %v2486 = vld [vmem:[%s2485] sm:$0xf]
    %v2487 = vld [vmem:[%s2485 + $0x4] sm:$0xf]
    %v2488 = vld [vmem:[%s2485 + $0x8] sm:$0xf]
    %v2489 = vld [vmem:[%s2485 + $0xc] sm:$0xf]
    %s2490 = scalar_lea.vmem [#allocation8], 1
    %v2491 = vld [vmem:[%s2490] sm:$0x1]
    %v2493 = vlaneseq
    %v2494 = vshrl.u32 %v2493, 7
    %v2495 = vsub.s32 0, %v2494
    %v2496 = vrot.slane %v2491, %v2495
    %v2502 = vunpack.c.l.b16 %v2486
    %v2503 = vunpack.c.l.b16 %v2487
    %v2504 = vunpack.c.l.b16 %v2488
    %v2505 = vunpack.c.l.b16 %v2489
    %v2506 = vpack.c.b16 %v2503, %v2502
    %v2507 = vpack.c.b16 %v2505, %v2504
    %v2511 = vsel %vm220, %v2484, 0
    %2513 = vmatprep.subr.bf16.mxu0 0
    %2514 = vmatpush1.bf16.msra.mxu0 %v2506
    %2515 = vmatprep.subr.bf16.mxu0 0
    %2516 = vmatpush1.bf16.msra.mxu0 %v2507
    %2517 = vmatprep.subr.bf16.mxu0 0
    %2518 = vmatpush1.bf16.msra.mxu0 0
    %2519 = vmatprep.subr.bf16.mxu0 0
    %2520 = vmatpush1.bf16.msra.mxu0 0
    %2521 = vmatprep.subr.bf16.mxu0 0
    %2522 = vmatpush1.bf16.msra.mxu0 0
    %2523 = vmatprep.subr.bf16.mxu0 0
    %2524 = vmatpush1.bf16.msra.mxu0 0
    %2525 = vmatprep.subr.bf16.mxu0 0
    %2526 = vmatpush1.bf16.msra.mxu0 0
    %2527 = vmatprep.subr.bf16.mxu0 0
    %2528 = vmatpush1.bf16.msra.mxu0 0
    %2529 = vmatprep.subr.bf16.mxu0 0
    %2530 = vmatpush1.bf16.msra.mxu0 0
    %2531 = vmatprep.subr.bf16.mxu0 0
    %2532 = vmatpush1.bf16.msra.mxu0 0
    %2533 = vmatprep.subr.bf16.mxu0 0
    %2534 = vmatpush1.bf16.msra.mxu0 0
    %2535 = vmatprep.subr.bf16.mxu0 0
    %2536 = vmatpush1.bf16.msra.mxu0 0
    %2537 = vmatprep.subr.bf16.mxu0 0
    %2538 = vmatpush1.bf16.msra.mxu0 0
    %2539 = vmatprep.subr.bf16.mxu0 0
    %2540 = vmatpush1.bf16.msra.mxu0 0
    %2541 = vmatprep.subr.bf16.mxu0 0
    %2542 = vmatpush1.bf16.msra.mxu0 0
    %2543 = vmatprep.subr.bf16.mxu0 0
    %2544 = vmatpush1.bf16.msra.mxu0 0
    %2545 = vmatprep.mubr.bf16.mxu0 0
    %2546 = vmatmul.mubr.bf16.gmra.mrb[0].mxu0 %v2511
    %v2547 = vpop.f32.mrb[0].mxu0
    %v2548 = vadd.f32 %v2496, %v2547
    %v2549 = vpop.f32.mrb[0].mxu0
    %v2550 = vpop.f32.mrb[0].mxu0
    %v2551 = vadd.f32 %v2496, %v2550
    %v2552 = vpop.f32.mrb[0].mxu0
    %2553 = vdwg.mxu0
    %v2554 = vadd.f32 %v1498, %v2548
    %v2555 = vadd.f32 %v1499, %v2551
    %s2556 = scalar_lea.vmem [#allocation9], 1
    %v2557 = vld [vmem:[%s2556] sm:$0x1]
    %s2558 = scalar_lea.vmem [#allocation11], 1
    %v2559 = vld [vmem:[%s2558] sm:$0x1]
    %v2560 = vsel %vm220, %v2554, 0.0
    %2561 = vadd.xlane.f32.xlu0 %v2560
    %v2562 = vpop.xlane.xlu0 %2561
    %v2563 = vsel %vm220, %v2555, 0.0
    %2564 = vadd.xlane.f32.xlu0 %v2563
    %v2565 = vpop.xlane.xlu0 %2564
    %v2566 = vmul.f32 %v2562, %v1262
    %v2567 = vmul.f32 %v2565, %v1262
    %v2568 = vsub.f32 %v2554, %v2566
    %v2569 = vsub.f32 %v2555, %v2567
    %v2570 = vmul.f32 %v2568, %v2568
    %v2571 = vmul.f32 %v2569, %v2569
    %v2572 = vsel %vm220, %v2570, 0.0
    %2573 = vadd.xlane.f32.xlu0 %v2572
    %v2574 = vpop.xlane.xlu0 %2573
    %v2575 = vsel %vm220, %v2571, 0.0
    %2576 = vadd.xlane.f32.xlu0 %v2575
    %v2577 = vpop.xlane.xlu0 %2576
    %v2578 = vmul.f32 %v2574, %v1262
    %v2579 = vmul.f32 %v2577, %v1262
    %v2580 = vadd.f32 %v2578, 1e-05
    %v2581 = vadd.f32 %v2579, 1e-05
    %v2582 = vrsqrt.pop %v2580
    %v2583 = vrsqrt.pop %v2581
    %v2584 = vmul.f32 %v2568, %v2582
    %v2585 = vmul.f32 %v2569, %v2583
    %v2587 = vlaneseq
    %v2588 = vshrl.u32 %v2587, 7
    %v2589 = vsub.s32 0, %v2588
    %v2590 = vrot.slane %v2557, %v2589
    %v2592 = vmul.f32 %v2584, %v2590
    %v2593 = vmul.f32 %v2585, %v2590
    %v2595 = vlaneseq
    %v2596 = vshrl.u32 %v2595, 7
    %v2597 = vsub.s32 0, %v2596
    %v2598 = vrot.slane %v2559, %v2597
    %v2600 = vadd.f32 %v2592, %v2598
    %v2601 = vadd.f32 %v2593, %v2598
    %v2602 = vpack.c.bf16 %v2601, %v2600
    %s2603 = scalar_lea.vmem %s7, 16
    %v2604 = vld [vmem:[%s2603] sm:$0xf]
    %v2605 = vld [vmem:[%s2603 + $0x4] sm:$0xf]
    %v2606 = vld [vmem:[%s2603 + $0x8] sm:$0xf]
    %v2607 = vld [vmem:[%s2603 + $0xc] sm:$0xf]
    %s2608 = scalar_lea.vmem [#allocation12], 1
    %v2609 = vld [vmem:[%s2608] sm:$0x1]
    %v2611 = vlaneseq
    %v2612 = vshrl.u32 %v2611, 7
    %v2613 = vsub.s32 0, %v2612
    %v2614 = vrot.slane %v2609, %v2613
    %v2620 = vunpack.c.l.b16 %v2604
    %v2621 = vunpack.c.l.b16 %v2605
    %v2622 = vunpack.c.l.b16 %v2606
    %v2623 = vunpack.c.l.b16 %v2607
    %v2624 = vpack.c.b16 %v2621, %v2620
    %v2625 = vpack.c.b16 %v2623, %v2622
    %v2629 = vsel %vm220, %v2602, 0
    %2631 = vmatprep.subr.bf16.mxu0 0
    %2632 = vmatpush1.bf16.msra.mxu0 %v2624
    %2633 = vmatprep.subr.bf16.mxu0 0
    %2634 = vmatpush1.bf16.msra.mxu0 %v2625
    %2635 = vmatprep.subr.bf16.mxu0 0
    %2636 = vmatpush1.bf16.msra.mxu0 0
    %2637 = vmatprep.subr.bf16.mxu0 0
    %2638 = vmatpush1.bf16.msra.mxu0 0
    %2639 = vmatprep.subr.bf16.mxu0 0
    %2640 = vmatpush1.bf16.msra.mxu0 0
    %2641 = vmatprep.subr.bf16.mxu0 0
    %2642 = vmatpush1.bf16.msra.mxu0 0
    %2643 = vmatprep.subr.bf16.mxu0 0
    %2644 = vmatpush1.bf16.msra.mxu0 0
    %2645 = vmatprep.subr.bf16.mxu0 0
    %2646 = vmatpush1.bf16.msra.mxu0 0
    %2647 = vmatprep.subr.bf16.mxu0 0
    %2648 = vmatpush1.bf16.msra.mxu0 0
    %2649 = vmatprep.subr.bf16.mxu0 0
    %2650 = vmatpush1.bf16.msra.mxu0 0
    %2651 = vmatprep.subr.bf16.mxu0 0
    %2652 = vmatpush1.bf16.msra.mxu0 0
    %2653 = vmatprep.subr.bf16.mxu0 0
    %2654 = vmatpush1.bf16.msra.mxu0 0
    %2655 = vmatprep.subr.bf16.mxu0 0
    %2656 = vmatpush1.bf16.msra.mxu0 0
    %2657 = vmatprep.subr.bf16.mxu0 0
    %2658 = vmatpush1.bf16.msra.mxu0 0
    %2659 = vmatprep.subr.bf16.mxu0 0
    %2660 = vmatpush1.bf16.msra.mxu0 0
    %2661 = vmatprep.subr.bf16.mxu0 0
    %2662 = vmatpush1.bf16.msra.mxu0 0
    %2663 = vmatprep.mubr.bf16.mxu0 0
    %2664 = vmatmul.mubr.bf16.gmra.mrb[0].mxu0 %v2629
    %v2665 = vpop.f32.mrb[0].mxu0
    %v2666 = vadd.f32 %v2614, %v2665
    %v2667 = vpop.f32.mrb[0].mxu0
    %v2668 = vpop.f32.mrb[0].mxu0
    %v2669 = vadd.f32 %v2614, %v2668
    %v2670 = vpop.f32.mrb[0].mxu0
    %2671 = vdwg.mxu0
    %v2672 = vmax.f32 %v2666, 0.0
    %v2673 = vmax.f32 %v2669, 0.0
    %v2674 = vpack.c.bf16 %v2673, %v2672
    %s2675 = scalar_lea.vmem %s9, 32
    %v2676 = vld [vmem:[%s2675] sm:$0xf]
    %v2677 = vld [vmem:[%s2675 + $0x4] sm:$0xf]
    %v2678 = vld [vmem:[%s2675 + $0x8] sm:$0xf]
    %v2679 = vld [vmem:[%s2675 + $0xc] sm:$0xf]
    %v2680 = vld [vmem:[%s2675 + $0x10] sm:$0xf]
    %v2681 = vld [vmem:[%s2675 + $0x14] sm:$0xf]
    %v2682 = vld [vmem:[%s2675 + $0x18] sm:$0xf]
    %v2683 = vld [vmem:[%s2675 + $0x1c] sm:$0xf]
    %s2684 = scalar_lea.vmem [#allocation14], 1
    %v2685 = vld [vmem:[%s2684] sm:$0x1]
    %v2687 = vlaneseq
    %v2688 = vshrl.u32 %v2687, 7
    %v2689 = vsub.s32 0, %v2688
    %v2690 = vrot.slane %v2685, %v2689
    %v2700 = vunpack.c.l.b16 %v2676
    %v2701 = vunpack.c.l.b16 %v2677
    %v2702 = vunpack.c.l.b16 %v2678
    %v2703 = vunpack.c.l.b16 %v2679
    %v2704 = vunpack.c.l.b16 %v2680
    %v2705 = vunpack.c.l.b16 %v2681
    %v2706 = vunpack.c.l.b16 %v2682
    %v2707 = vunpack.c.l.b16 %v2683
    %v2708 = vpack.c.b16 %v2701, %v2700
    %v2709 = vpack.c.b16 %v2703, %v2702
    %v2710 = vpack.c.b16 %v2705, %v2704
    %v2711 = vpack.c.b16 %v2707, %v2706
    %v2717 = vsel %vm1409, %v2674, 0
    %2719 = vmatprep.subr.bf16.mxu0 0
    %2720 = vmatpush1.bf16.msra.mxu0 %v2708
    %2721 = vmatprep.subr.bf16.mxu0 0
    %2722 = vmatpush1.bf16.msra.mxu0 %v2709
    %2723 = vmatprep.subr.bf16.mxu0 0
    %2724 = vmatpush1.bf16.msra.mxu0 %v2710
    %2725 = vmatprep.subr.bf16.mxu0 0
    %2726 = vmatpush1.bf16.msra.mxu0 %v2711
    %2727 = vmatprep.subr.bf16.mxu0 0
    %2728 = vmatpush1.bf16.msra.mxu0 0
    %2729 = vmatprep.subr.bf16.mxu0 0
    %2730 = vmatpush1.bf16.msra.mxu0 0
    %2731 = vmatprep.subr.bf16.mxu0 0
    %2732 = vmatpush1.bf16.msra.mxu0 0
    %2733 = vmatprep.subr.bf16.mxu0 0
    %2734 = vmatpush1.bf16.msra.mxu0 0
    %2735 = vmatprep.subr.bf16.mxu0 0
    %2736 = vmatpush1.bf16.msra.mxu0 0
    %2737 = vmatprep.subr.bf16.mxu0 0
    %2738 = vmatpush1.bf16.msra.mxu0 0
    %2739 = vmatprep.subr.bf16.mxu0 0
    %2740 = vmatpush1.bf16.msra.mxu0 0
    %2741 = vmatprep.subr.bf16.mxu0 0
    %2742 = vmatpush1.bf16.msra.mxu0 0
    %2743 = vmatprep.subr.bf16.mxu0 0
    %2744 = vmatpush1.bf16.msra.mxu0 0
    %2745 = vmatprep.subr.bf16.mxu0 0
    %2746 = vmatpush1.bf16.msra.mxu0 0
    %2747 = vmatprep.subr.bf16.mxu0 0
    %2748 = vmatpush1.bf16.msra.mxu0 0
    %2749 = vmatprep.subr.bf16.mxu0 0
    %2750 = vmatpush1.bf16.msra.mxu0 0
    %2751 = vmatprep.mubr.bf16.mxu0 0
    %2752 = vmatmul.mubr.bf16.gmra.mrb[0].mxu0 %v2717
    %v2753 = vpop.f32.mrb[0].mxu0
    %v2754 = vadd.f32 %v2690, %v2753
    %v2755 = vpop.f32.mrb[0].mxu0
    %v2756 = vpop.f32.mrb[0].mxu0
    %v2757 = vadd.f32 %v2690, %v2756
    %v2758 = vpop.f32.mrb[0].mxu0
    %2759 = vdwg.mxu0
    %v2760 = vadd.f32 %v2600, %v2754
    %v2761 = vadd.f32 %v2601, %v2757
    %s2762 = scalar_lea.vmem [#allocation15], 1
    %v2763 = vld [vmem:[%s2762] sm:$0x1]
    %s2764 = scalar_lea.vmem [#allocation17], 1
    %v2765 = vld [vmem:[%s2764] sm:$0x1]
    %v2766 = vsel %vm220, %v2760, 0.0
    %2767 = vadd.xlane.f32.xlu0 %v2766
    %v2768 = vpop.xlane.xlu0 %2767
    %v2769 = vsel %vm220, %v2761, 0.0
    %2770 = vadd.xlane.f32.xlu0 %v2769
    %v2771 = vpop.xlane.xlu0 %2770
    %v2772 = vmul.f32 %v2768, %v1262
    %v2773 = vmul.f32 %v2771, %v1262
    %v2774 = vsub.f32 %v2760, %v2772
    %v2775 = vsub.f32 %v2761, %v2773
    %v2776 = vmul.f32 %v2774, %v2774
    %v2777 = vmul.f32 %v2775, %v2775
    %v2778 = vsel %vm220, %v2776, 0.0
    %2779 = vadd.xlane.f32.xlu0 %v2778
    %v2780 = vpop.xlane.xlu0 %2779
    %v2781 = vsel %vm220, %v2777, 0.0
    %2782 = vadd.xlane.f32.xlu0 %v2781
    %v2783 = vpop.xlane.xlu0 %2782
    %v2784 = vmul.f32 %v2780, %v1262
    %v2785 = vmul.f32 %v2783, %v1262
    %v2786 = vadd.f32 %v2784, 1e-05
    %v2787 = vadd.f32 %v2785, 1e-05
    %v2788 = vrsqrt.pop %v2786
    %v2789 = vrsqrt.pop %v2787
    %v2790 = vmul.f32 %v2774, %v2788
    %v2791 = vmul.f32 %v2775, %v2789
    %v2793 = vlaneseq
    %v2794 = vshrl.u32 %v2793, 7
    %v2795 = vsub.s32 0, %v2794
    %v2796 = vrot.slane %v2763, %v2795
    %v2798 = vmul.f32 %v2790, %v2796
    %v2799 = vmul.f32 %v2791, %v2796
    %v2801 = vlaneseq
    %v2802 = vshrl.u32 %v2801, 7
    %v2803 = vsub.s32 0, %v2802
    %v2804 = vrot.slane %v2765, %v2803
    %v2806 = vadd.f32 %v2798, %v2804
    %v2807 = vadd.f32 %v2799, %v2804
    %v2808 = vpack.c.bf16 %v2807, %v2806
    %v2809 = vld [vmem:[%s13] sm:$0xf]
    %v2810 = vld [vmem:[%s13 + $0x4] sm:$0xf]
    %v2811 = vld [vmem:[%s13 + $0x8] sm:$0xf]
    %v2812 = vld [vmem:[%s13 + $0xc] sm:$0xf]
    %v2813 = vld [vmem:[%s14] sm:$0x1]
    %v2815 = vlaneseq
    %v2816 = vshrl.u32 %v2815, 7
    %v2817 = vsub.s32 0, %v2816
    %v2818 = vrot.slane %v2813, %v2817
    %v2824 = vunpack.c.l.b16 %v2809
    %v2825 = vunpack.c.l.b16 %v2810
    %v2826 = vunpack.c.l.b16 %v2811
    %v2827 = vunpack.c.l.b16 %v2812
    %v2828 = vpack.c.b16 %v2825, %v2824
    %v2829 = vpack.c.b16 %v2827, %v2826
    %v2833 = vsel %vm220, %v2808, 0
    %2835 = vmatprep.subr.bf16.mxu0 0
    %2836 = vmatpush1.bf16.msra.mxu0 %v2828
    %2837 = vmatprep.subr.bf16.mxu0 0
    %2838 = vmatpush1.bf16.msra.mxu0 %v2829
    %2839 = vmatprep.subr.bf16.mxu0 0
    %2840 = vmatpush1.bf16.msra.mxu0 0
    %2841 = vmatprep.subr.bf16.mxu0 0
    %2842 = vmatpush1.bf16.msra.mxu0 0
    %2843 = vmatprep.subr.bf16.mxu0 0
    %2844 = vmatpush1.bf16.msra.mxu0 0
    %2845 = vmatprep.subr.bf16.mxu0 0
    %2846 = vmatpush1.bf16.msra.mxu0 0
    %2847 = vmatprep.subr.bf16.mxu0 0
    %2848 = vmatpush1.bf16.msra.mxu0 0
    %2849 = vmatprep.subr.bf16.mxu0 0
    %2850 = vmatpush1.bf16.msra.mxu0 0
    %2851 = vmatprep.subr.bf16.mxu0 0
    %2852 = vmatpush1.bf16.msra.mxu0 0
    %2853 = vmatprep.subr.bf16.mxu0 0
    %2854 = vmatpush1.bf16.msra.mxu0 0
    %2855 = vmatprep.subr.bf16.mxu0 0
    %2856 = vmatpush1.bf16.msra.mxu0 0
    %2857 = vmatprep.subr.bf16.mxu0 0
    %2858 = vmatpush1.bf16.msra.mxu0 0
    %2859 = vmatprep.subr.bf16.mxu0 0
    %2860 = vmatpush1.bf16.msra.mxu0 0
    %2861 = vmatprep.subr.bf16.mxu0 0
    %2862 = vmatpush1.bf16.msra.mxu0 0
    %2863 = vmatprep.subr.bf16.mxu0 0
    %2864 = vmatpush1.bf16.msra.mxu0 0
    %2865 = vmatprep.subr.bf16.mxu0 0
    %2866 = vmatpush1.bf16.msra.mxu0 0
    %2867 = vmatprep.mubr.bf16.mxu0 0
    %2868 = vmatmul.mubr.bf16.gmra.mrb[0].mxu0 %v2833
    %v2869 = vpop.f32.mrb[0].mxu0
    %v2870 = vadd.f32 %v2818, %v2869
    %v2871 = vpop.f32.mrb[0].mxu0
    %v2872 = vpop.f32.mrb[0].mxu0
    %v2873 = vadd.f32 %v2818, %v2872
    %v2874 = vpop.f32.mrb[0].mxu0
    %2875 = vdwg.mxu0
    %v2876 = vmax.f32 %v2870, 0.0
    %v2877 = vmax.f32 %v2873, 0.0
    %v2878 = vmin.f32 %v2876, 6.0
    %v2879 = vmin.f32 %v2877, 6.0
    %v2880 = vpack.c.bf16 %v2879, %v2878
    %v2881 = vld [vmem:[#allocation18] sm:$0xf]
    %v2882 = vld [vmem:[#allocation18 + $0x4] sm:$0xf]
    %v2883 = vld [vmem:[#allocation18 + $0x8] sm:$0xf]
    %v2884 = vld [vmem:[#allocation18 + $0xc] sm:$0xf]
    %v2885 = vld [vmem:[%s16] sm:$0x1]
    %v2887 = vlaneseq
    %v2888 = vshrl.u32 %v2887, 7
    %v2889 = vsub.s32 0, %v2888
    %v2890 = vrot.slane %v2885, %v2889
    %v2896 = vunpack.c.l.b16 %v2881
    %v2897 = vunpack.c.l.b16 %v2882
    %v2898 = vunpack.c.l.b16 %v2883
    %v2899 = vunpack.c.l.b16 %v2884
    %v2900 = vpack.c.b16 %v2897, %v2896
    %v2901 = vpack.c.b16 %v2899, %v2898
    %v2905 = vsel %vm220, %v2880, 0
    %2907 = vmatprep.subr.bf16.mxu0 0
    %2908 = vmatpush1.bf16.msra.mxu0 %v2900
    %2909 = vmatprep.subr.bf16.mxu0 0
    %2910 = vmatpush1.bf16.msra.mxu0 %v2901
    %2911 = vmatprep.subr.bf16.mxu0 0
    %2912 = vmatpush1.bf16.msra.mxu0 0
    %2913 = vmatprep.subr.bf16.mxu0 0
    %2914 = vmatpush1.bf16.msra.mxu0 0
    %2915 = vmatprep.subr.bf16.mxu0 0
    %2916 = vmatpush1.bf16.msra.mxu0 0
    %2917 = vmatprep.subr.bf16.mxu0 0
    %2918 = vmatpush1.bf16.msra.mxu0 0
    %2919 = vmatprep.subr.bf16.mxu0 0
    %2920 = vmatpush1.bf16.msra.mxu0 0
    %2921 = vmatprep.subr.bf16.mxu0 0
    %2922 = vmatpush1.bf16.msra.mxu0 0
    %2923 = vmatprep.subr.bf16.mxu0 0
    %2924 = vmatpush1.bf16.msra.mxu0 0
    %2925 = vmatprep.subr.bf16.mxu0 0
    %2926 = vmatpush1.bf16.msra.mxu0 0
    %2927 = vmatprep.subr.bf16.mxu0 0
    %2928 = vmatpush1.bf16.msra.mxu0 0
    %2929 = vmatprep.subr.bf16.mxu0 0
    %2930 = vmatpush1.bf16.msra.mxu0 0
    %2931 = vmatprep.subr.bf16.mxu0 0
    %2932 = vmatpush1.bf16.msra.mxu0 0
    %2933 = vmatprep.subr.bf16.mxu0 0
    %2934 = vmatpush1.bf16.msra.mxu0 0
    %2935 = vmatprep.subr.bf16.mxu0 0
    %2936 = vmatpush1.bf16.msra.mxu0 0
    %2937 = vmatprep.subr.bf16.mxu0 0
    %2938 = vmatpush1.bf16.msra.mxu0 0
    %2939 = vmatprep.mubr.bf16.mxu0 0
    %2940 = vmatmul.mubr.bf16.gmra.mrb[0].mxu0 %v2905
    %v2941 = vpop.f32.mrb[0].mxu0
    %v2942 = vadd.f32 %v2890, %v2941
    %v2943 = vpop.f32.mrb[0].mxu0
    %v2944 = vpop.f32.mrb[0].mxu0
    %v2945 = vadd.f32 %v2890, %v2944
    %v2946 = vpop.f32.mrb[0].mxu0
    %2947 = vdwg.mxu0
    %2948 = vst [vmem:[#allocation20] sm:$0xff] %v2942
    %2949 = vst [vmem:[#allocation20 + $0x8] sm:$0xff] %v2945
    // Predicated region
    $region110: #{tpu_custom_call.1} parent=1 // pred_check
      _
    $region111: #{tpu_custom_call.1} parent=1 // pred_check_branch
      %2951 = sbr.rel (0) target = $region113
    $region112: #{tpu_custom_call.1} parent=1 // pred_region
      %s2953 = ssub.s32 256, 256
      %2954 = vsyncadd [#allocation5], %s2953
      %s2955 = sshll.u32 [#allocation20], 4
      %s2956 = int_to_ptr.vmem [resolvable:$true] %s2955
      %2961 = dma.vmem_to_hbm [thread:$0]  %s2956, 256, %s17, [#allocation5], 128, 128, 8
    $region113: #{tpu_custom_call.1} parent=1 // pred_fallthru
      _
    // Predicated region
    $region114: #{tpu_custom_call.1} parent=1 // pred_check
      _
    $region115: #{tpu_custom_call.1} parent=1 // pred_check_branch
      %2963 = sbr.rel (0) target = $region117
    $region116: #{tpu_custom_call.1} parent=1 // pred_region
      %2964 = dma.done [#allocation5], 256
    $region117: #{tpu_custom_call.1} parent=1 // pred_fallthru
      _
    %2965 = vsyncpa [#allocation4], 1
    %2966 = vsyncpa [#allocation7], 1
    %2967 = vsyncpa [#allocation10], 1
    %2968 = vsyncpa [#allocation13], 1
    %2969 = vsyncpa [#allocation16], 1
    %2970 = vsyncpa [#allocation19], 1
    %2971 = vsyncpa [#allocation5], 1

</llo_original>
